<compile_context>
chip_gen: v7x
topology: tpu7x:2x2x1
jax: 0.10.0
libtpu: 0.0.40
codegen_flags: <defaults>
</compile_context>

<pallas_src>
import functools

import jax
import jax.numpy as jnp
from jax.experimental import pallas as pl
from jax.experimental.pallas import tpu as pltpu


# ----------------------------------------------------------------------------
# Kernel: conv3x3+bn1+relu -> conv3x3+bn2 -> SE -> *gate + identity -> relu
# One grid step processes `bt` batch samples (M = bt*H*W flattened rows).
# ----------------------------------------------------------------------------
def basic_block_kernel(
    x_ref,            # (M, Cin)        bf16  flattened NHWC input block
    mask_ref,         # (9, M, 1)       bf16  per-tap 0/1 validity per row
    pool_ref,         # (BT, M)         f32   per-sample avg-pool selector (rows sum to 1)
    selt_ref,         # (M, BT)         f32   row -> sample one-hot (gate broadcast)
    w1_ref,           # (9*Cin, Cout)   bf16  conv1 taps, K-stacked (tap major, cin minor)
    s1_ref, b1_ref,   # (1, Cout)       f32   folded bn1 scale / bias
    w2_ref,           # (9*Cout, Cout)  bf16  conv2 taps, K-stacked
    s2_ref, b2_ref,   # (1, Cout)       f32   folded bn2 scale / bias
    fc1w_ref,         # (Cout, Chid)    f32   SE fc1 weight (transposed)
    fc1b_ref,         # (1, Chid)       f32
    fc2w_ref,         # (Chid, Cout)    f32   SE fc2 weight (transposed)
    fc2b_ref,         # (1, Cout)       f32
    out_ref,          # (M, Cout)       f32
    xpad_ref,         # scratch (M + 2*PAD, Cin)  f32  zero-haloed conv1 input
    mid_ref,          # scratch (M + 2*PAD, Cout) f32  zero-haloed conv2 input
    *, bt, h, w, pad,
):
    hw = h * w
    m = bt * hw
    cin = x_ref.shape[-1]
    cout = out_ref.shape[-1]
    f32 = jnp.float32
    bf16 = jnp.bfloat16

    def conv3x3(src_ref, w_ref):
        # K-stack the 9 taps into one (M, 9*C) bf16 operand so the whole conv is
        # one MXU matmul (K = 9*C) instead of nine K=C matmuls + VPU accumulation.
        # Wrap-around rows from the flat layout are killed by the 0/1 tap masks
        # (the centre tap k=4 never needs one).
        taps = []
        for k in range(9):
            shift = (k // 3 - 1) * w + (k % 3 - 1)
            patch = src_ref[pad + shift:pad + shift + m, :].astype(bf16)
            if k != 4:
                patch = patch * mask_ref[k]
            taps.append(patch)
        stacked = jnp.concatenate(taps, axis=-1)               # (M, 9*C) bf16
        return jnp.dot(stacked, w_ref[...], preferred_element_type=f32)

    # ---- stage input into the zero-haloed flat scratch -------------------------
    # Halos re-zeroed every step (a few tiny stores); a program_id(0)==0 guard
    # would be incorrect under megacore grid splitting (per-core scratch).
    xpad_ref[0:pad, :] = jnp.zeros((pad, cin), f32)
    xpad_ref[pad + m:pad + m + pad, :] = jnp.zeros((pad, cin), f32)
    xpad_ref[pad:pad + m, :] = x_ref[...].astype(f32)

    # ---- conv1 + bn1 + relu -----------------------------------------------------
    o1 = conv3x3(xpad_ref, w1_ref)
    o1 = jnp.maximum(o1 * s1_ref[...] + b1_ref[...], 0.0)

    mid_ref[0:pad, :] = jnp.zeros((pad, cout), f32)
    mid_ref[pad + m:pad + m + pad, :] = jnp.zeros((pad, cout), f32)
    mid_ref[pad:pad + m, :] = o1

    # ---- conv2 + bn2 ------------------------------------------------------------
    o2 = conv3x3(mid_ref, w2_ref) * s2_ref[...] + b2_ref[...]          # (M, Cout) f32

    # ---- SE block: avg-pool (selector matmul) -> fc1 -> relu -> fc2 -> sigmoid --
    pooled = jnp.dot(pool_ref[...], o2, preferred_element_type=f32)    # (BT, Cout)
    hid = jnp.maximum(
        jnp.dot(pooled, fc1w_ref[...], preferred_element_type=f32) + fc1b_ref[...],
        0.0)
    z = jnp.dot(hid, fc2w_ref[...], preferred_element_type=f32) + fc2b_ref[...]
    gate = pl.reciprocal(1.0 + jnp.exp(-z), approx=True)               # sigmoid, (BT, Cout)

    # Broadcast each sample's gate back to its rows via a selector matmul
    # (rides the otherwise idle MXU; no per-sample VPU loop).
    gate_rows = jnp.dot(selt_ref[...], gate, preferred_element_type=f32)   # (M, Cout)

    # ---- scale, add identity (downsample is None), final relu — fused epilogue --
    # Identity is reused from the staged copy of x (already bf16-rounded, as in
    # the reference) instead of re-reading / re-casting x_ref.
    identity = xpad_ref[pad:pad + m, :]
    out_ref[...] = jnp.maximum(o2 * gate_rows + identity, 0.0).astype(out_ref.dtype)


# ----------------------------------------------------------------------------
# Wrapper
# ----------------------------------------------------------------------------
def basic_block_forward(x_nchw, params, *, batch_tile=None):
    N, Cin, H, W = x_nchw.shape
    Cout = params["w1s"].shape[-1]
    if Cin != Cout:
        raise NotImplementedError("identity-shortcut path requires Cin == Cout")
    if batch_tile is None:
        # Default keeps >= 2 grid steps so a v7x megacore can split the batch
        # axis across its two TensorCores.  On single-TC chips (v5e/v6e) pass
        # batch_tile=N to collapse the grid to one step.
        batch_tile = N // 2 if (N % 2 == 0 and N >= 2) else N
    if N % batch_tile != 0:
        raise ValueError("batch must be divisible by batch_tile")
    HW = H * W
    M = batch_tile * HW
    PAD = -((W + 1) // -16) * 16                # sublane-aligned halo >= W+1

    # NCHW -> NHWC -> flatten (n, h, w) onto the sublane axis; bf16 MXU operands.
    x_flat = (jnp.transpose(x_nchw, (0, 2, 3, 1))
              .reshape(N * HW, Cin).astype(jnp.bfloat16))
    w1s = params["w1s"].astype(jnp.bfloat16)    # (9*Cin, Cout)
    w2s = params["w2s"].astype(jnp.bfloat16)    # (9*Cout, Cout)

    # Position-dependent constants (identical for every grid step), host-side.
    r = jnp.arange(M, dtype=jnp.int32)
    hh = (r // W) % H
    ww = r % W
    tap_mask = jnp.stack(
        [((hh + dy >= 0) & (hh + dy < H) & (ww + dx >= 0) & (ww + dx < W))
         for dy in (-1, 0, 1) for dx in (-1, 0, 1)],
        axis=0).astype(jnp.bfloat16).reshape(9, M, 1)
    samp = r // HW
    bt_ids = jnp.arange(batch_tile, dtype=jnp.int32)
    pool_sel = (samp[None, :] == bt_ids[:, None]).astype(jnp.float32) / HW   # (BT, M)
    sel_t = (samp[:, None] == bt_ids[None, :]).astype(jnp.float32)           # (M, BT)

    kernel = functools.partial(basic_block_kernel, bt=batch_tile, h=H, w=W, pad=PAD)

    def bcast_spec(shape):
        nd = len(shape)
        return pl.BlockSpec(shape, lambda n, _nd=nd: (0,) * _nd)

    grid_spec = pltpu.PrefetchScalarGridSpec(
        num_scalar_prefetch=0,
        grid=(N // batch_tile,),
        in_specs=[
            pl.BlockSpec((M, Cin), lambda n: (n, 0)),
            bcast_spec(tap_mask.shape),
            bcast_spec(pool_sel.shape),
            bcast_spec(sel_t.shape),
            bcast_spec(w1s.shape),
            bcast_spec(params["s1"].shape), bcast_spec(params["b1"].shape),
            bcast_spec(w2s.shape),
            bcast_spec(params["s2"].shape), bcast_spec(params["b2"].shape),
            bcast_spec(params["fc1w_t"].shape), bcast_spec(params["fc1b"].shape),
            bcast_spec(params["fc2w_t"].shape), bcast_spec(params["fc2b"].shape),
        ],
        out_specs=pl.BlockSpec((M, Cout), lambda n: (n, 0)),
        scratch_shapes=[
            pltpu.VMEM((M + 2 * PAD, Cin), jnp.float32),
            pltpu.VMEM((M + 2 * PAD, Cout), jnp.float32),
        ],
    )

    out_flat = pl.pallas_call(
        kernel,
        out_shape=jax.ShapeDtypeStruct((N * HW, Cout), jnp.float32),
        grid_spec=grid_spec,
        compiler_params=pltpu.CompilerParams(
            dimension_semantics=("parallel",),   # batch tiles independent (2 TCs on v7x)
        ),
    )(
        x_flat, tap_mask, pool_sel, sel_t,
        w1s, params["s1"], params["b1"],
        w2s, params["s2"], params["b2"],
        params["fc1w_t"], params["fc1b"], params["fc2w_t"], params["fc2b"],
    )
    return jnp.transpose(out_flat.reshape(N, H, W, Cout), (0, 3, 1, 2))


# ----------------------------------------------------------------------------
# Deterministic parameters (eval-mode BN folded into scale/bias)
# ----------------------------------------------------------------------------
def make_params(key, cin, cout, reduction_ratio=16):
    chid = cout // reduction_ratio
    ks = jax.random.split(key, 12)
    eps = 1e-5

    w1_hwio = 0.1 * jax.random.normal(ks[0], (3, 3, cin, cout), jnp.float32)
    w2_hwio = 0.1 * jax.random.normal(ks[1], (3, 3, cout, cout), jnp.float32)

    g1 = 1.0 + 0.1 * jax.random.normal(ks[2], (cout,), jnp.float32)
    be1 = 0.1 * jax.random.normal(ks[3], (cout,), jnp.float32)
    rm1 = 0.05 * jax.random.normal(ks[4], (cout,), jnp.float32)
    rv1 = 1.0 + 0.1 * jnp.abs(jax.random.normal(ks[5], (cout,), jnp.float32))
    s1 = g1 / jnp.sqrt(rv1 + eps)
    b1 = be1 - rm1 * s1

    g2 = 1.0 + 0.1 * jax.random.normal(ks[6], (cout,), jnp.float32)
    be2 = 0.1 * jax.random.normal(ks[7], (cout,), jnp.float32)
    rm2 = 0.05 * jax.random.normal(ks[8], (cout,), jnp.float32)
    rv2 = 1.0 + 0.1 * jnp.abs(jax.random.normal(ks[9], (cout,), jnp.float32))
    s2 = g2 / jnp.sqrt(rv2 + eps)
    b2 = be2 - rm2 * s2

    fc1w = 0.2 * jax.random.normal(ks[10], (chid, cout), jnp.float32)  # torch Linear (out,in)
    fc1b = 0.05 * jnp.arange(chid, dtype=jnp.float32)
    fc2w = 0.2 * jax.random.normal(ks[11], (cout, chid), jnp.float32)
    fc2b = 0.02 * jnp.arange(cout, dtype=jnp.float32)

    return dict(
        w1_hwio=w1_hwio, w2_hwio=w2_hwio,
        # K-stacked conv weights: tap-major (k = dy*3 + dx), cin-minor.
        w1s=w1_hwio.reshape(9 * cin, cout),
        w2s=w2_hwio.reshape(9 * cout, cout),
        s1=s1.reshape(1, cout), b1=b1.reshape(1, cout),
        s2=s2.reshape(1, cout), b2=b2.reshape(1, cout),
        fc1w_t=fc1w.T, fc1b=fc1b.reshape(1, chid),
        fc2w_t=fc2w.T, fc2b=fc2b.reshape(1, cout),
    )


# Pure-JAX reference with the same precision choices (bf16 conv operands,
# f32 accumulation / BN / SE / residual) for the numerical sanity check.
def reference_forward(x_nchw, p):
    xb = jnp.transpose(x_nchw, (0, 2, 3, 1)).astype(jnp.bfloat16)
    conv = functools.partial(
        jax.lax.conv_general_dilated,
        window_strides=(1, 1), padding="SAME",
        dimension_numbers=("NHWC", "HWIO", "NHWC"),
        preferred_element_type=jnp.float32,
    )
    o = jnp.maximum(conv(xb, p["w1_hwio"].astype(jnp.bfloat16)) * p["s1"] + p["b1"], 0.0)
    o = conv(o.astype(jnp.bfloat16), p["w2_hwio"].astype(jnp.bfloat16)) * p["s2"] + p["b2"]
    pooled = jnp.mean(o, axis=(1, 2))                                  # (N, C)
    hid = jnp.maximum(pooled @ p["fc1w_t"] + p["fc1b"][0], 0.0)
    gate = jax.nn.sigmoid(hid @ p["fc2w_t"] + p["fc2b"][0])
    o = o * gate[:, None, None, :]
    o = jnp.maximum(o + xb.astype(jnp.float32), 0.0)
    return jnp.transpose(o, (0, 3, 1, 2))


if __name__ == "__main__":
    N, C, H, W = 4, 32, 8, 8              # in_channels == out_channels, stride=1
    key = jax.random.PRNGKey(0)
    kx, kp = jax.random.split(key)
    x = jax.random.normal(kx, (N, C, H, W), jnp.float32)
    params = make_params(kp, C, C, reduction_ratio=16)

    out = jax.block_until_ready(jax.jit(basic_block_forward)(x, params))
    ref = reference_forward(x, params)

    assert out.shape == (N, C, H, W)
    # Tolerance reflects bf16 MXU operands + EUP approx-reciprocal sigmoid.
    max_err = jnp.max(jnp.abs(out - ref))
    assert jnp.allclose(out, ref, rtol=2e-2, atol=2e-2), f"mismatch vs reference (max |err| = {max_err})"

    print("KERNEL_OK")
</pallas_src>

<mosaic_0001>
module attributes {stable_mosaic.version = 11 : i64} {
  func.func @basic_block_kernel(%arg0: i32, %arg1: memref<128x32xbf16, #tpu.memory_space<vmem>>, %arg2: memref<9x128x1xbf16, #tpu.memory_space<vmem>>, %arg3: memref<2x128xf32, #tpu.memory_space<vmem>>, %arg4: memref<128x2xf32, #tpu.memory_space<vmem>>, %arg5: memref<288x32xbf16, #tpu.memory_space<vmem>>, %arg6: memref<1x32xf32, #tpu.memory_space<vmem>>, %arg7: memref<1x32xf32, #tpu.memory_space<vmem>>, %arg8: memref<288x32xbf16, #tpu.memory_space<vmem>>, %arg9: memref<1x32xf32, #tpu.memory_space<vmem>>, %arg10: memref<1x32xf32, #tpu.memory_space<vmem>>, %arg11: memref<32x2xf32, #tpu.memory_space<vmem>>, %arg12: memref<1x2xf32, #tpu.memory_space<vmem>>, %arg13: memref<2x32xf32, #tpu.memory_space<vmem>>, %arg14: memref<1x32xf32, #tpu.memory_space<vmem>>, %arg15: memref<128x32xf32, #tpu.memory_space<vmem>>, %arg16: memref<160x32xf32, #tpu.memory_space<vmem>>, %arg17: memref<160x32xf32, #tpu.memory_space<vmem>>) attributes {dimension_semantics = [#tpu.dimension_semantics<parallel>], iteration_bounds = array<i64: 2>, scalar_prefetch = 0 : i64, scratch_operands = 2 : i64, tpu.core_type = #tpu.core_type<tc>, window_params = [{transform_indices = @transform_0, window_bounds = array<i64: 128, 32>}, {pipeline_mode = #tpu.pipeline_mode<synchronous>, transform_indices = @transform_1, window_bounds = array<i64: 9, 128, 1>}, {pipeline_mode = #tpu.pipeline_mode<synchronous>, transform_indices = @transform_2, window_bounds = array<i64: 2, 128>}, {pipeline_mode = #tpu.pipeline_mode<synchronous>, transform_indices = @transform_3, window_bounds = array<i64: 128, 2>}, {pipeline_mode = #tpu.pipeline_mode<synchronous>, transform_indices = @transform_4, window_bounds = array<i64: 288, 32>}, {pipeline_mode = #tpu.pipeline_mode<synchronous>, transform_indices = @transform_5, window_bounds = array<i64: 1, 32>}, {pipeline_mode = #tpu.pipeline_mode<synchronous>, transform_indices = @transform_6, window_bounds = array<i64: 1, 32>}, {pipeline_mode = #tpu.pipeline_mode<synchronous>, transform_indices = @transform_7, window_bounds = array<i64: 288, 32>}, {pipeline_mode = #tpu.pipeline_mode<synchronous>, transform_indices = @transform_8, window_bounds = array<i64: 1, 32>}, {pipeline_mode = #tpu.pipeline_mode<synchronous>, transform_indices = @transform_9, window_bounds = array<i64: 1, 32>}, {pipeline_mode = #tpu.pipeline_mode<synchronous>, transform_indices = @transform_10, window_bounds = array<i64: 32, 2>}, {pipeline_mode = #tpu.pipeline_mode<synchronous>, transform_indices = @transform_11, window_bounds = array<i64: 1, 2>}, {pipeline_mode = #tpu.pipeline_mode<synchronous>, transform_indices = @transform_12, window_bounds = array<i64: 2, 32>}, {pipeline_mode = #tpu.pipeline_mode<synchronous>, transform_indices = @transform_13, window_bounds = array<i64: 1, 32>}, {transform_indices = @transform_14, window_bounds = array<i64: 128, 32>}]} {
    %cst = arith.constant 0.000000e+00 : f32
    %0 = vector.broadcast %cst : f32 to vector<16x32xf32>
    %c0 = arith.constant 0 : index
    %c0_0 = arith.constant 0 : index
    %1 = vector.load %arg16[%c0, %c0_0] : memref<160x32xf32, #tpu.memory_space<vmem>>, vector<16x32xf32>
    tpu.vector_store %arg16[%c0, %c0_0], %0 {strides = array<i32>} : memref<160x32xf32, #tpu.memory_space<vmem>>, vector<16x32xf32>,
    %cst_1 = arith.constant 0.000000e+00 : f32
    %2 = vector.broadcast %cst_1 : f32 to vector<16x32xf32>
    %c144 = arith.constant 144 : index
    %c0_2 = arith.constant 0 : index
    %3 = vector.load %arg16[%c144, %c0_2] : memref<160x32xf32, #tpu.memory_space<vmem>>, vector<16x32xf32>
    tpu.vector_store %arg16[%c144, %c0_2], %2 {strides = array<i32>} : memref<160x32xf32, #tpu.memory_space<vmem>>, vector<16x32xf32>,
    %c0_3 = arith.constant 0 : index
    %c0_4 = arith.constant 0 : index
    %4 = vector.load %arg1[%c0_3, %c0_4] : memref<128x32xbf16, #tpu.memory_space<vmem>>, vector<128x32xbf16>
    %5 = arith.extf %4 : vector<128x32xbf16> to vector<128x32xf32>
    %c16 = arith.constant 16 : index
    %c0_5 = arith.constant 0 : index
    %6 = vector.load %arg16[%c16, %c0_5] : memref<160x32xf32, #tpu.memory_space<vmem>>, vector<128x32xf32>
    tpu.vector_store %arg16[%c16, %c0_5], %5 {strides = array<i32>} : memref<160x32xf32, #tpu.memory_space<vmem>>, vector<128x32xf32>,
    %c7 = arith.constant 7 : index
    %c0_6 = arith.constant 0 : index
    %7 = vector.load %arg16[%c7, %c0_6] : memref<160x32xf32, #tpu.memory_space<vmem>>, vector<128x32xf32>
    %8 = arith.truncf %7 : vector<128x32xf32> to vector<128x32xbf16>
    %c0_7 = arith.constant 0 : index
    %c0_8 = arith.constant 0 : index
    %c0_9 = arith.constant 0 : index
    %9 = vector.load %arg2[%c0_7, %c0_8, %c0_9] : memref<9x128x1xbf16, #tpu.memory_space<vmem>>, vector<1x128x1xbf16>
    %10 = vector.shape_cast %9 : vector<1x128x1xbf16> to vector<128x1xbf16>
    %11 = vector.broadcast %10 : vector<128x1xbf16> to vector<128x32xbf16>
    %12 = arith.mulf %8, %11 : vector<128x32xbf16>
    %c8 = arith.constant 8 : index
    %c0_10 = arith.constant 0 : index
    %13 = vector.load %arg16[%c8, %c0_10] : memref<160x32xf32, #tpu.memory_space<vmem>>, vector<128x32xf32>
    %14 = arith.truncf %13 : vector<128x32xf32> to vector<128x32xbf16>
    %c1 = arith.constant 1 : index
    %c0_11 = arith.constant 0 : index
    %c0_12 = arith.constant 0 : index
    %15 = vector.load %arg2[%c1, %c0_11, %c0_12] : memref<9x128x1xbf16, #tpu.memory_space<vmem>>, vector<1x128x1xbf16>
    %16 = vector.shape_cast %15 : vector<1x128x1xbf16> to vector<128x1xbf16>
    %17 = vector.broadcast %16 : vector<128x1xbf16> to vector<128x32xbf16>
    %18 = arith.mulf %14, %17 : vector<128x32xbf16>
    %c9 = arith.constant 9 : index
    %c0_13 = arith.constant 0 : index
    %19 = vector.load %arg16[%c9, %c0_13] : memref<160x32xf32, #tpu.memory_space<vmem>>, vector<128x32xf32>
    %20 = arith.truncf %19 : vector<128x32xf32> to vector<128x32xbf16>
    %c2 = arith.constant 2 : index
    %c0_14 = arith.constant 0 : index
    %c0_15 = arith.constant 0 : index
    %21 = vector.load %arg2[%c2, %c0_14, %c0_15] : memref<9x128x1xbf16, #tpu.memory_space<vmem>>, vector<1x128x1xbf16>
    %22 = vector.shape_cast %21 : vector<1x128x1xbf16> to vector<128x1xbf16>
    %23 = vector.broadcast %22 : vector<128x1xbf16> to vector<128x32xbf16>
    %24 = arith.mulf %20, %23 : vector<128x32xbf16>
    %c15 = arith.constant 15 : index
    %c0_16 = arith.constant 0 : index
    %25 = vector.load %arg16[%c15, %c0_16] : memref<160x32xf32, #tpu.memory_space<vmem>>, vector<128x32xf32>
    %26 = arith.truncf %25 : vector<128x32xf32> to vector<128x32xbf16>
    %c3 = arith.constant 3 : index
    %c0_17 = arith.constant 0 : index
    %c0_18 = arith.constant 0 : index
    %27 = vector.load %arg2[%c3, %c0_17, %c0_18] : memref<9x128x1xbf16, #tpu.memory_space<vmem>>, vector<1x128x1xbf16>
    %28 = vector.shape_cast %27 : vector<1x128x1xbf16> to vector<128x1xbf16>
    %29 = vector.broadcast %28 : vector<128x1xbf16> to vector<128x32xbf16>
    %30 = arith.mulf %26, %29 : vector<128x32xbf16>
    %c16_19 = arith.constant 16 : index
    %c0_20 = arith.constant 0 : index
    %31 = vector.load %arg16[%c16_19, %c0_20] : memref<160x32xf32, #tpu.memory_space<vmem>>, vector<128x32xf32>
    %32 = arith.truncf %31 : vector<128x32xf32> to vector<128x32xbf16>
    %c17 = arith.constant 17 : index
    %c0_21 = arith.constant 0 : index
    %33 = vector.load %arg16[%c17, %c0_21] : memref<160x32xf32, #tpu.memory_space<vmem>>, vector<128x32xf32>
    %34 = arith.truncf %33 : vector<128x32xf32> to vector<128x32xbf16>
    %c5 = arith.constant 5 : index
    %c0_22 = arith.constant 0 : index
    %c0_23 = arith.constant 0 : index
    %35 = vector.load %arg2[%c5, %c0_22, %c0_23] : memref<9x128x1xbf16, #tpu.memory_space<vmem>>, vector<1x128x1xbf16>
    %36 = vector.shape_cast %35 : vector<1x128x1xbf16> to vector<128x1xbf16>
    %37 = vector.broadcast %36 : vector<128x1xbf16> to vector<128x32xbf16>
    %38 = arith.mulf %34, %37 : vector<128x32xbf16>
    %c23 = arith.constant 23 : index
    %c0_24 = arith.constant 0 : index
    %39 = vector.load %arg16[%c23, %c0_24] : memref<160x32xf32, #tpu.memory_space<vmem>>, vector<128x32xf32>
    %40 = arith.truncf %39 : vector<128x32xf32> to vector<128x32xbf16>
    %c6 = arith.constant 6 : index
    %c0_25 = arith.constant 0 : index
    %c0_26 = arith.constant 0 : index
    %41 = vector.load %arg2[%c6, %c0_25, %c0_26] : memref<9x128x1xbf16, #tpu.memory_space<vmem>>, vector<1x128x1xbf16>
    %42 = vector.shape_cast %41 : vector<1x128x1xbf16> to vector<128x1xbf16>
    %43 = vector.broadcast %42 : vector<128x1xbf16> to vector<128x32xbf16>
    %44 = arith.mulf %40, %43 : vector<128x32xbf16>
    %c24 = arith.constant 24 : index
    %c0_27 = arith.constant 0 : index
    %45 = vector.load %arg16[%c24, %c0_27] : memref<160x32xf32, #tpu.memory_space<vmem>>, vector<128x32xf32>
    %46 = arith.truncf %45 : vector<128x32xf32> to vector<128x32xbf16>
    %c7_28 = arith.constant 7 : index
    %c0_29 = arith.constant 0 : index
    %c0_30 = arith.constant 0 : index
    %47 = vector.load %arg2[%c7_28, %c0_29, %c0_30] : memref<9x128x1xbf16, #tpu.memory_space<vmem>>, vector<1x128x1xbf16>
    %48 = vector.shape_cast %47 : vector<1x128x1xbf16> to vector<128x1xbf16>
    %49 = vector.broadcast %48 : vector<128x1xbf16> to vector<128x32xbf16>
    %50 = arith.mulf %46, %49 : vector<128x32xbf16>
    %c25 = arith.constant 25 : index
    %c0_31 = arith.constant 0 : index
    %51 = vector.load %arg16[%c25, %c0_31] : memref<160x32xf32, #tpu.memory_space<vmem>>, vector<128x32xf32>
    %52 = arith.truncf %51 : vector<128x32xf32> to vector<128x32xbf16>
    %c8_32 = arith.constant 8 : index
    %c0_33 = arith.constant 0 : index
    %c0_34 = arith.constant 0 : index
    %53 = vector.load %arg2[%c8_32, %c0_33, %c0_34] : memref<9x128x1xbf16, #tpu.memory_space<vmem>>, vector<1x128x1xbf16>
    %54 = vector.shape_cast %53 : vector<1x128x1xbf16> to vector<128x1xbf16>
    %55 = vector.broadcast %54 : vector<128x1xbf16> to vector<128x32xbf16>
    %56 = arith.mulf %52, %55 : vector<128x32xbf16>
    %57 = tpu.concatenate %12, %18, %24, %30, %32, %38, %44, %50, %56 in 1 : vector<128x32xbf16>, vector<128x32xbf16>, vector<128x32xbf16>, vector<128x32xbf16>, vector<128x32xbf16>, vector<128x32xbf16>, vector<128x32xbf16>, vector<128x32xbf16>, vector<128x32xbf16> -> vector<128x288xbf16>
    %c0_35 = arith.constant 0 : index
    %c0_36 = arith.constant 0 : index
    %58 = vector.load %arg5[%c0_35, %c0_36] : memref<288x32xbf16, #tpu.memory_space<vmem>>, vector<288x32xbf16>
    %cst_37 = arith.constant dense<0.000000e+00> : vector<128x32xf32>
    %59 = tpu.matmul %57, %58, %cst_37 {dimension_numbers = #tpu.dot_dimension_numbers<[1], [0], [0], [1], [0, 0, 1, 1], [], []>} : vector<128x288xbf16>, vector<288x32xbf16>, vector<128x32xf32> -> vector<128x32xf32>
    %c0_38 = arith.constant 0 : index
    %c0_39 = arith.constant 0 : index
    %60 = vector.load %arg6[%c0_38, %c0_39] : memref<1x32xf32, #tpu.memory_space<vmem>>, vector<1x32xf32>
    %61 = vector.broadcast %60 : vector<1x32xf32> to vector<128x32xf32>
    %62 = arith.mulf %59, %61 : vector<128x32xf32>
    %c0_40 = arith.constant 0 : index
    %c0_41 = arith.constant 0 : index
    %63 = vector.load %arg7[%c0_40, %c0_41] : memref<1x32xf32, #tpu.memory_space<vmem>>, vector<1x32xf32>
    %64 = vector.broadcast %63 : vector<1x32xf32> to vector<128x32xf32>
    %65 = arith.addf %62, %64 : vector<128x32xf32>
    %cst_42 = arith.constant 0.000000e+00 : f32
    %66 = vector.broadcast %cst_42 : f32 to vector<128x32xf32>
    %67 = arith.maximumf %65, %66 : vector<128x32xf32>
    %cst_43 = arith.constant 0.000000e+00 : f32
    %68 = vector.broadcast %cst_43 : f32 to vector<16x32xf32>
    %c0_44 = arith.constant 0 : index
    %c0_45 = arith.constant 0 : index
    %69 = vector.load %arg17[%c0_44, %c0_45] : memref<160x32xf32, #tpu.memory_space<vmem>>, vector<16x32xf32>
    tpu.vector_store %arg17[%c0_44, %c0_45], %68 {strides = array<i32>} : memref<160x32xf32, #tpu.memory_space<vmem>>, vector<16x32xf32>,
    %cst_46 = arith.constant 0.000000e+00 : f32
    %70 = vector.broadcast %cst_46 : f32 to vector<16x32xf32>
    %c144_47 = arith.constant 144 : index
    %c0_48 = arith.constant 0 : index
    %71 = vector.load %arg17[%c144_47, %c0_48] : memref<160x32xf32, #tpu.memory_space<vmem>>, vector<16x32xf32>
    tpu.vector_store %arg17[%c144_47, %c0_48], %70 {strides = array<i32>} : memref<160x32xf32, #tpu.memory_space<vmem>>, vector<16x32xf32>,
    %c16_49 = arith.constant 16 : index
    %c0_50 = arith.constant 0 : index
    %72 = vector.load %arg17[%c16_49, %c0_50] : memref<160x32xf32, #tpu.memory_space<vmem>>, vector<128x32xf32>
    tpu.vector_store %arg17[%c16_49, %c0_50], %67 {strides = array<i32>} : memref<160x32xf32, #tpu.memory_space<vmem>>, vector<128x32xf32>,
    %c7_51 = arith.constant 7 : index
    %c0_52 = arith.constant 0 : index
    %73 = vector.load %arg17[%c7_51, %c0_52] : memref<160x32xf32, #tpu.memory_space<vmem>>, vector<128x32xf32>
    %74 = arith.truncf %73 : vector<128x32xf32> to vector<128x32xbf16>
    %c0_53 = arith.constant 0 : index
    %c0_54 = arith.constant 0 : index
    %c0_55 = arith.constant 0 : index
    %75 = vector.load %arg2[%c0_53, %c0_54, %c0_55] : memref<9x128x1xbf16, #tpu.memory_space<vmem>>, vector<1x128x1xbf16>
    %76 = vector.shape_cast %75 : vector<1x128x1xbf16> to vector<128x1xbf16>
    %77 = vector.broadcast %76 : vector<128x1xbf16> to vector<128x32xbf16>
    %78 = arith.mulf %74, %77 : vector<128x32xbf16>
    %c8_56 = arith.constant 8 : index
    %c0_57 = arith.constant 0 : index
    %79 = vector.load %arg17[%c8_56, %c0_57] : memref<160x32xf32, #tpu.memory_space<vmem>>, vector<128x32xf32>
    %80 = arith.truncf %79 : vector<128x32xf32> to vector<128x32xbf16>
    %c1_58 = arith.constant 1 : index
    %c0_59 = arith.constant 0 : index
    %c0_60 = arith.constant 0 : index
    %81 = vector.load %arg2[%c1_58, %c0_59, %c0_60] : memref<9x128x1xbf16, #tpu.memory_space<vmem>>, vector<1x128x1xbf16>
    %82 = vector.shape_cast %81 : vector<1x128x1xbf16> to vector<128x1xbf16>
    %83 = vector.broadcast %82 : vector<128x1xbf16> to vector<128x32xbf16>
    %84 = arith.mulf %80, %83 : vector<128x32xbf16>
    %c9_61 = arith.constant 9 : index
    %c0_62 = arith.constant 0 : index
    %85 = vector.load %arg17[%c9_61, %c0_62] : memref<160x32xf32, #tpu.memory_space<vmem>>, vector<128x32xf32>
    %86 = arith.truncf %85 : vector<128x32xf32> to vector<128x32xbf16>
    %c2_63 = arith.constant 2 : index
    %c0_64 = arith.constant 0 : index
    %c0_65 = arith.constant 0 : index
    %87 = vector.load %arg2[%c2_63, %c0_64, %c0_65] : memref<9x128x1xbf16, #tpu.memory_space<vmem>>, vector<1x128x1xbf16>
    %88 = vector.shape_cast %87 : vector<1x128x1xbf16> to vector<128x1xbf16>
    %89 = vector.broadcast %88 : vector<128x1xbf16> to vector<128x32xbf16>
    %90 = arith.mulf %86, %89 : vector<128x32xbf16>
    %c15_66 = arith.constant 15 : index
    %c0_67 = arith.constant 0 : index
    %91 = vector.load %arg17[%c15_66, %c0_67] : memref<160x32xf32, #tpu.memory_space<vmem>>, vector<128x32xf32>
    %92 = arith.truncf %91 : vector<128x32xf32> to vector<128x32xbf16>
    %c3_68 = arith.constant 3 : index
    %c0_69 = arith.constant 0 : index
    %c0_70 = arith.constant 0 : index
    %93 = vector.load %arg2[%c3_68, %c0_69, %c0_70] : memref<9x128x1xbf16, #tpu.memory_space<vmem>>, vector<1x128x1xbf16>
    %94 = vector.shape_cast %93 : vector<1x128x1xbf16> to vector<128x1xbf16>
    %95 = vector.broadcast %94 : vector<128x1xbf16> to vector<128x32xbf16>
    %96 = arith.mulf %92, %95 : vector<128x32xbf16>
    %c16_71 = arith.constant 16 : index
    %c0_72 = arith.constant 0 : index
    %97 = vector.load %arg17[%c16_71, %c0_72] : memref<160x32xf32, #tpu.memory_space<vmem>>, vector<128x32xf32>
    %98 = arith.truncf %97 : vector<128x32xf32> to vector<128x32xbf16>
    %c17_73 = arith.constant 17 : index
    %c0_74 = arith.constant 0 : index
    %99 = vector.load %arg17[%c17_73, %c0_74] : memref<160x32xf32, #tpu.memory_space<vmem>>, vector<128x32xf32>
    %100 = arith.truncf %99 : vector<128x32xf32> to vector<128x32xbf16>
    %c5_75 = arith.constant 5 : index
    %c0_76 = arith.constant 0 : index
    %c0_77 = arith.constant 0 : index
    %101 = vector.load %arg2[%c5_75, %c0_76, %c0_77] : memref<9x128x1xbf16, #tpu.memory_space<vmem>>, vector<1x128x1xbf16>
    %102 = vector.shape_cast %101 : vector<1x128x1xbf16> to vector<128x1xbf16>
    %103 = vector.broadcast %102 : vector<128x1xbf16> to vector<128x32xbf16>
    %104 = arith.mulf %100, %103 : vector<128x32xbf16>
    %c23_78 = arith.constant 23 : index
    %c0_79 = arith.constant 0 : index
    %105 = vector.load %arg17[%c23_78, %c0_79] : memref<160x32xf32, #tpu.memory_space<vmem>>, vector<128x32xf32>
    %106 = arith.truncf %105 : vector<128x32xf32> to vector<128x32xbf16>
    %c6_80 = arith.constant 6 : index
    %c0_81 = arith.constant 0 : index
    %c0_82 = arith.constant 0 : index
    %107 = vector.load %arg2[%c6_80, %c0_81, %c0_82] : memref<9x128x1xbf16, #tpu.memory_space<vmem>>, vector<1x128x1xbf16>
    %108 = vector.shape_cast %107 : vector<1x128x1xbf16> to vector<128x1xbf16>
    %109 = vector.broadcast %108 : vector<128x1xbf16> to vector<128x32xbf16>
    %110 = arith.mulf %106, %109 : vector<128x32xbf16>
    %c24_83 = arith.constant 24 : index
    %c0_84 = arith.constant 0 : index
    %111 = vector.load %arg17[%c24_83, %c0_84] : memref<160x32xf32, #tpu.memory_space<vmem>>, vector<128x32xf32>
    %112 = arith.truncf %111 : vector<128x32xf32> to vector<128x32xbf16>
    %c7_85 = arith.constant 7 : index
    %c0_86 = arith.constant 0 : index
    %c0_87 = arith.constant 0 : index
    %113 = vector.load %arg2[%c7_85, %c0_86, %c0_87] : memref<9x128x1xbf16, #tpu.memory_space<vmem>>, vector<1x128x1xbf16>
    %114 = vector.shape_cast %113 : vector<1x128x1xbf16> to vector<128x1xbf16>
    %115 = vector.broadcast %114 : vector<128x1xbf16> to vector<128x32xbf16>
    %116 = arith.mulf %112, %115 : vector<128x32xbf16>
    %c25_88 = arith.constant 25 : index
    %c0_89 = arith.constant 0 : index
    %117 = vector.load %arg17[%c25_88, %c0_89] : memref<160x32xf32, #tpu.memory_space<vmem>>, vector<128x32xf32>
    %118 = arith.truncf %117 : vector<128x32xf32> to vector<128x32xbf16>
    %c8_90 = arith.constant 8 : index
    %c0_91 = arith.constant 0 : index
    %c0_92 = arith.constant 0 : index
    %119 = vector.load %arg2[%c8_90, %c0_91, %c0_92] : memref<9x128x1xbf16, #tpu.memory_space<vmem>>, vector<1x128x1xbf16>
    %120 = vector.shape_cast %119 : vector<1x128x1xbf16> to vector<128x1xbf16>
    %121 = vector.broadcast %120 : vector<128x1xbf16> to vector<128x32xbf16>
    %122 = arith.mulf %118, %121 : vector<128x32xbf16>
    %123 = tpu.concatenate %78, %84, %90, %96, %98, %104, %110, %116, %122 in 1 : vector<128x32xbf16>, vector<128x32xbf16>, vector<128x32xbf16>, vector<128x32xbf16>, vector<128x32xbf16>, vector<128x32xbf16>, vector<128x32xbf16>, vector<128x32xbf16>, vector<128x32xbf16> -> vector<128x288xbf16>
    %c0_93 = arith.constant 0 : index
    %c0_94 = arith.constant 0 : index
    %124 = vector.load %arg8[%c0_93, %c0_94] : memref<288x32xbf16, #tpu.memory_space<vmem>>, vector<288x32xbf16>
    %cst_95 = arith.constant dense<0.000000e+00> : vector<128x32xf32>
    %125 = tpu.matmul %123, %124, %cst_95 {dimension_numbers = #tpu.dot_dimension_numbers<[1], [0], [0], [1], [0, 0, 1, 1], [], []>} : vector<128x288xbf16>, vector<288x32xbf16>, vector<128x32xf32> -> vector<128x32xf32>
    %c0_96 = arith.constant 0 : index
    %c0_97 = arith.constant 0 : index
    %126 = vector.load %arg9[%c0_96, %c0_97] : memref<1x32xf32, #tpu.memory_space<vmem>>, vector<1x32xf32>
    %127 = vector.broadcast %126 : vector<1x32xf32> to vector<128x32xf32>
    %128 = arith.mulf %125, %127 : vector<128x32xf32>
    %c0_98 = arith.constant 0 : index
    %c0_99 = arith.constant 0 : index
    %129 = vector.load %arg10[%c0_98, %c0_99] : memref<1x32xf32, #tpu.memory_space<vmem>>, vector<1x32xf32>
    %130 = vector.broadcast %129 : vector<1x32xf32> to vector<128x32xf32>
    %131 = arith.addf %128, %130 : vector<128x32xf32>
    %c0_100 = arith.constant 0 : index
    %c0_101 = arith.constant 0 : index
    %132 = vector.load %arg3[%c0_100, %c0_101] : memref<2x128xf32, #tpu.memory_space<vmem>>, vector<2x128xf32>
    %cst_102 = arith.constant dense<0.000000e+00> : vector<2x32xf32>
    %133 = tpu.matmul %132, %131, %cst_102 {dimension_numbers = #tpu.dot_dimension_numbers<[1], [0], [0], [1], [0, 0, 1, 1], [], []>} : vector<2x128xf32>, vector<128x32xf32>, vector<2x32xf32> -> vector<2x32xf32>
    %c0_103 = arith.constant 0 : index
    %c0_104 = arith.constant 0 : index
    %134 = vector.load %arg11[%c0_103, %c0_104] : memref<32x2xf32, #tpu.memory_space<vmem>>, vector<32x2xf32>
    %cst_105 = arith.constant dense<0.000000e+00> : vector<2x2xf32>
    %135 = tpu.matmul %133, %134, %cst_105 {dimension_numbers = #tpu.dot_dimension_numbers<[1], [0], [0], [1], [0, 0, 1, 1], [], []>} : vector<2x32xf32>, vector<32x2xf32>, vector<2x2xf32> -> vector<2x2xf32>
    %c0_106 = arith.constant 0 : index
    %c0_107 = arith.constant 0 : index
    %136 = vector.load %arg12[%c0_106, %c0_107] : memref<1x2xf32, #tpu.memory_space<vmem>>, vector<1x2xf32>
    %137 = vector.broadcast %136 : vector<1x2xf32> to vector<2x2xf32>
    %138 = arith.addf %135, %137 : vector<2x2xf32>
    %cst_108 = arith.constant 0.000000e+00 : f32
    %139 = vector.broadcast %cst_108 : f32 to vector<2x2xf32>
    %140 = arith.maximumf %138, %139 : vector<2x2xf32>
    %c0_109 = arith.constant 0 : index
    %c0_110 = arith.constant 0 : index
    %141 = vector.load %arg13[%c0_109, %c0_110] : memref<2x32xf32, #tpu.memory_space<vmem>>, vector<2x32xf32>
    %cst_111 = arith.constant dense<0.000000e+00> : vector<2x32xf32>
    %142 = tpu.matmul %140, %141, %cst_111 {dimension_numbers = #tpu.dot_dimension_numbers<[1], [0], [0], [1], [0, 0, 1, 1], [], []>} : vector<2x2xf32>, vector<2x32xf32>, vector<2x32xf32> -> vector<2x32xf32>
    %c0_112 = arith.constant 0 : index
    %c0_113 = arith.constant 0 : index
    %143 = vector.load %arg14[%c0_112, %c0_113] : memref<1x32xf32, #tpu.memory_space<vmem>>, vector<1x32xf32>
    %144 = vector.broadcast %143 : vector<1x32xf32> to vector<2x32xf32>
    %145 = arith.addf %142, %144 : vector<2x32xf32>
    %cst_114 = arith.constant 0.000000e+00 : f32
    %146 = vector.broadcast %cst_114 : f32 to vector<2x32xf32>
    %147 = arith.subf %146, %145 : vector<2x32xf32>
    %148 = math.exp %147 : vector<2x32xf32>
    %cst_115 = arith.constant 1.000000e+00 : f32
    %149 = vector.broadcast %cst_115 : f32 to vector<2x32xf32>
    %150 = arith.addf %149, %148 : vector<2x32xf32>
    %151 = tpu.reciprocal %150 {approx = true} : vector<2x32xf32> -> vector<2x32xf32>
    %c0_116 = arith.constant 0 : index
    %c0_117 = arith.constant 0 : index
    %152 = vector.load %arg4[%c0_116, %c0_117] : memref<128x2xf32, #tpu.memory_space<vmem>>, vector<128x2xf32>
    %cst_118 = arith.constant dense<0.000000e+00> : vector<128x32xf32>
    %153 = tpu.matmul %152, %151, %cst_118 {dimension_numbers = #tpu.dot_dimension_numbers<[1], [0], [0], [1], [0, 0, 1, 1], [], []>} : vector<128x2xf32>, vector<2x32xf32>, vector<128x32xf32> -> vector<128x32xf32>
    %c16_119 = arith.constant 16 : index
    %c0_120 = arith.constant 0 : index
    %154 = vector.load %arg16[%c16_119, %c0_120] : memref<160x32xf32, #tpu.memory_space<vmem>>, vector<128x32xf32>
    %155 = arith.mulf %131, %153 : vector<128x32xf32>
    %156 = arith.addf %155, %154 : vector<128x32xf32>
    %cst_121 = arith.constant 0.000000e+00 : f32
    %157 = vector.broadcast %cst_121 : f32 to vector<128x32xf32>
    %158 = arith.maximumf %156, %157 : vector<128x32xf32>
    %c0_122 = arith.constant 0 : index
    %c0_123 = arith.constant 0 : index
    %159 = vector.load %arg15[%c0_122, %c0_123] : memref<128x32xf32, #tpu.memory_space<vmem>>, vector<128x32xf32>
    tpu.vector_store %arg15[%c0_122, %c0_123], %158 {strides = array<i32>} : memref<128x32xf32, #tpu.memory_space<vmem>>, vector<128x32xf32>,
    return
  }
  func.func @transform_0(%arg0: i32) -> (i32, i32) {
    %c0_i32 = arith.constant 0 : i32
    %c0_i32_0 = arith.constant 0 : i32
    return %arg0, %c0_i32 : i32, i32
  }
  func.func @transform_1(%arg0: i32) -> (i32, i32, i32) {
    %c0_i32 = arith.constant 0 : i32
    %c0_i32_0 = arith.constant 0 : i32
    %c0_i32_1 = arith.constant 0 : i32
    %c0_i32_2 = arith.constant 0 : i32
    return %c0_i32, %c0_i32_0, %c0_i32_1 : i32, i32, i32
  }
  func.func @transform_2(%arg0: i32) -> (i32, i32) {
    %c0_i32 = arith.constant 0 : i32
    %c0_i32_0 = arith.constant 0 : i32
    %c0_i32_1 = arith.constant 0 : i32
    return %c0_i32, %c0_i32_0 : i32, i32
  }
  func.func @transform_3(%arg0: i32) -> (i32, i32) {
    %c0_i32 = arith.constant 0 : i32
    %c0_i32_0 = arith.constant 0 : i32
    %c0_i32_1 = arith.constant 0 : i32
    return %c0_i32, %c0_i32_0 : i32, i32
  }
  func.func @transform_4(%arg0: i32) -> (i32, i32) {
    %c0_i32 = arith.constant 0 : i32
    %c0_i32_0 = arith.constant 0 : i32
    %c0_i32_1 = arith.constant 0 : i32
    return %c0_i32, %c0_i32_0 : i32, i32
  }
  func.func @transform_5(%arg0: i32) -> (i32, i32) {
    %c0_i32 = arith.constant 0 : i32
    %c0_i32_0 = arith.constant 0 : i32
    %c0_i32_1 = arith.constant 0 : i32
    return %c0_i32, %c0_i32_0 : i32, i32
  }
  func.func @transform_6(%arg0: i32) -> (i32, i32) {
    %c0_i32 = arith.constant 0 : i32
    %c0_i32_0 = arith.constant 0 : i32
    %c0_i32_1 = arith.constant 0 : i32
    return %c0_i32, %c0_i32_0 : i32, i32
  }
  func.func @transform_7(%arg0: i32) -> (i32, i32) {
    %c0_i32 = arith.constant 0 : i32
    %c0_i32_0 = arith.constant 0 : i32
    %c0_i32_1 = arith.constant 0 : i32
    return %c0_i32, %c0_i32_0 : i32, i32
  }
  func.func @transform_8(%arg0: i32) -> (i32, i32) {
    %c0_i32 = arith.constant 0 : i32
    %c0_i32_0 = arith.constant 0 : i32
    %c0_i32_1 = arith.constant 0 : i32
    return %c0_i32, %c0_i32_0 : i32, i32
  }
  func.func @transform_9(%arg0: i32) -> (i32, i32) {
    %c0_i32 = arith.constant 0 : i32
    %c0_i32_0 = arith.constant 0 : i32
    %c0_i32_1 = arith.constant 0 : i32
    return %c0_i32, %c0_i32_0 : i32, i32
  }
  func.func @transform_10(%arg0: i32) -> (i32, i32) {
    %c0_i32 = arith.constant 0 : i32
    %c0_i32_0 = arith.constant 0 : i32
    %c0_i32_1 = arith.constant 0 : i32
    return %c0_i32, %c0_i32_0 : i32, i32
  }
  func.func @transform_11(%arg0: i32) -> (i32, i32) {
    %c0_i32 = arith.constant 0 : i32
    %c0_i32_0 = arith.constant 0 : i32
    %c0_i32_1 = arith.constant 0 : i32
    return %c0_i32, %c0_i32_0 : i32, i32
  }
  func.func @transform_12(%arg0: i32) -> (i32, i32) {
    %c0_i32 = arith.constant 0 : i32
    %c0_i32_0 = arith.constant 0 : i32
    %c0_i32_1 = arith.constant 0 : i32
    return %c0_i32, %c0_i32_0 : i32, i32
  }
  func.func @transform_13(%arg0: i32) -> (i32, i32) {
    %c0_i32 = arith.constant 0 : i32
    %c0_i32_0 = arith.constant 0 : i32
    %c0_i32_1 = arith.constant 0 : i32
    return %c0_i32, %c0_i32_0 : i32, i32
  }
  func.func @transform_14(%arg0: i32) -> (i32, i32) {
    %c0_i32 = arith.constant 0 : i32
    %c0_i32_0 = arith.constant 0 : i32
    return %arg0, %c0_i32 : i32, i32
  }
}

</mosaic_0001>

<llo_original>
// kernel: basic_block_forward.1
$region0: #{basic_block_forward.1}
  #allocation0 [shape = 'u32[]', space=smem, size = 0x4, offset = 0x4, fixed_abs, tag = 'smem constant byte address 0x4 - core index']
  #allocation1 [shape = 'u32[144,128]{1,0:T(1,128)}', space=vmem, size = 0x12000, scoped, tag = 'internal scratch']
  #allocation2 [shape = 'f32[160,32]{1,0:T(8,128)}', space=vmem, size = 0x14000, scoped, tag = 'scratch operand']
  #allocation3 [shape = 'f32[160,32]{1,0:T(8,128)}', space=vmem, size = 0x14000, scoped, tag = 'scratch operand']
  %s0 = inlined_call_operand.vmem [shape: bf16[256,32], index: 0, kind: input, shape index: {}]
  %s1 = inlined_call_operand.vmem [shape: bf16[9,128,1], index: 1, kind: input, shape index: {}]
  %s2 = inlined_call_operand.vmem [shape: f32[2,128], index: 2, kind: input, shape index: {}]
  %s3 = inlined_call_operand.vmem [shape: f32[128,2], index: 3, kind: input, shape index: {}]
  %s4 = inlined_call_operand.vmem [shape: bf16[288,32], index: 4, kind: input, shape index: {}]
  %s5 = inlined_call_operand.vmem [shape: f32[1,32], index: 5, kind: input, shape index: {}]
  %s6 = inlined_call_operand.vmem [shape: f32[1,32], index: 6, kind: input, shape index: {}]
  %s7 = inlined_call_operand.vmem [shape: bf16[288,32], index: 7, kind: input, shape index: {}]
  %s8 = inlined_call_operand.vmem [shape: f32[1,32], index: 8, kind: input, shape index: {}]
  %s9 = inlined_call_operand.vmem [shape: f32[1,32], index: 9, kind: input, shape index: {}]
  %s10 = inlined_call_operand.vmem [shape: f32[32,2], index: 10, kind: input, shape index: {}]
  %s11 = inlined_call_operand.vmem [shape: f32[1,2], index: 11, kind: input, shape index: {}]
  %s12 = inlined_call_operand.vmem [shape: f32[2,32], index: 12, kind: input, shape index: {}]
  %s13 = inlined_call_operand.vmem [shape: f32[1,32], index: 13, kind: input, shape index: {}]
  %s14 = inlined_call_operand.hbm [shape: f32[256,32], index: 14, kind: output, shape index: {}]
  %s15 = sld [smem:[#allocation0]]
  $region89: #{basic_block_forward.1} parent=0
    _
  %s17 = ssub.s32 1, %s15
  %s18 = scalar_select 0, %s17, %s15
  $region1: #{basic_block_forward.1} parent=0
    #allocation4 [shape = 'u8[131072]{0}', space=vmem, size = 0x20000, scoped, tag = 'output window, operand 0']
    #allocation5 [shape = 's32[2]{0}', space=sflag, size = 0x8, scoped, tag = 'scoped memory for basic_block_forward.1']
    %19 = vsyncpa [#allocation5], 0
    %s20 = scalar_lea.sflag [#allocation5], 1
    %21 = vsyncpa %s20, 0
    loop: start=0, step=1, limit=4
    $region2: #{basic_block_forward.1} parent=1 // loop_pre_header
      _
    $region3: #{basic_block_forward.1} parent=1 // loop_header
      %s23 = sphi 0, %s27
      %p24 = scmp.ge.s32.totalorder %s23, 4
      %s33 = sphi 0, %s35
      %s36 = sphi 0, %s33
      %s37 = sphi 0, %s36
      %s53 = sphi 0, %s37
      %s57 = sphi 0, %s57
      %s59 = sphi 0, %s57
      %s60 = sphi 0, %s59
      %s74 = sphi 0, %s60
      %s78 = sphi 0, %s78
      %s80 = sphi 0, %s78
      %s81 = sphi 0, %s80
      %s95 = sphi 0, %s81
      %s99 = sphi 0, %s99
      %s101 = sphi 0, %s99
      %s102 = sphi 0, %s101
      %s116 = sphi 0, %s102
      %s120 = sphi 0, %s120
      %s122 = sphi 0, %s120
      %s123 = sphi 0, %s122
      %s137 = sphi 0, %s123
      %s141 = sphi 0, %s141
      %s143 = sphi 0, %s141
      %s144 = sphi 0, %s143
      %s158 = sphi 0, %s144
      %s162 = sphi 0, %s162
      %s164 = sphi 0, %s162
      %s165 = sphi 0, %s164
      %s179 = sphi 0, %s165
      %s183 = sphi 0, %s183
      %s185 = sphi 0, %s183
      %s186 = sphi 0, %s185
      %s200 = sphi 0, %s186
      %s204 = sphi 0, %s204
      %s206 = sphi 0, %s204
      %s207 = sphi 0, %s206
      %s221 = sphi 0, %s207
      %s225 = sphi 0, %s225
      %s227 = sphi 0, %s225
      %s228 = sphi 0, %s227
      %s242 = sphi 0, %s228
      %s246 = sphi 0, %s246
      %s248 = sphi 0, %s246
      %s249 = sphi 0, %s248
      %s263 = sphi 0, %s249
      %s267 = sphi 0, %s267
      %s269 = sphi 0, %s267
      %s270 = sphi 0, %s269
      %s284 = sphi 0, %s270
      %s288 = sphi 0, %s288
      %s290 = sphi 0, %s288
      %s291 = sphi 0, %s290
      %s305 = sphi 0, %s291
      %s309 = sphi 0, %s309
      %s311 = sphi 0, %s309
      %s312 = sphi 0, %s311
      %s326 = sphi 0, %s312
      %s332 = sphi 0, %s334
      %s335 = sphi 0, %s332
      %s336 = sphi 0, %s335
      %s352 = sphi 0, %s336
    $region4: #{basic_block_forward.1} parent=1 // loop_header_branch
      %26 = sbr.rel (%p24) target = $region8
    $region5: #{basic_block_forward.1} parent=1 // loop_body
      %s28 = ssub.s32 %s23, 1
      %s29 = ssub.s32 %s23, 2
      %s30 = sadd.s32 %s23, 1
      %s31 = ssub.s32 %s23, %s30
      %p32 = scmp.eq.s32.totalorder %s31, 0
      %s34 = sadd.s32 %s33, 1
      %s35 = scalar_select %p32, %s33, %s34
      %p38 = pneg %p32
      %p39 = scmp.eq.s32.totalorder %s23, 1
      %p40 = por %p38, %p39
      %p41 = scmp.ne.s32.totalorder %s33, %s36
      %p42 = scmp.eq.s32.totalorder %s23, 0
      %p43 = por %p41, %p42
      %p44 = scmp.ne.s32.totalorder %s33, %s36
      %p45 = scmp.eq.s32.totalorder %s28, 1
      %p46 = por %p44, %p45
      %p47 = scmp.ne.s32.totalorder %s36, %s37
      %p48 = scmp.eq.s32.totalorder %s28, 0
      %p49 = por %p47, %p48
      %p50 = scmp.ne.s32.totalorder %s36, %s37
      %p51 = scmp.eq.s32.totalorder %s29, 1
      %p52 = por %p50, %p51
      %p54 = scmp.ne.s32.totalorder %s37, %s53
      %p55 = scmp.eq.s32.totalorder %s29, 0
      %p56 = por %p54, %p55
      %s58 = sadd.s32 %s57, 1
      %p61 = scmp.eq.s32.totalorder %s23, 1
      %p62 = scmp.ne.s32.totalorder %s57, %s59
      %p63 = scmp.eq.s32.totalorder %s23, 0
      %p64 = por %p62, %p63
      %p65 = scmp.ne.s32.totalorder %s57, %s59
      %p66 = scmp.eq.s32.totalorder %s28, 1
      %p67 = por %p65, %p66
      %p68 = scmp.ne.s32.totalorder %s59, %s60
      %p69 = scmp.eq.s32.totalorder %s28, 0
      %p70 = por %p68, %p69
      %p71 = scmp.ne.s32.totalorder %s59, %s60
      %p72 = scmp.eq.s32.totalorder %s29, 1
      %p73 = por %p71, %p72
      %p75 = scmp.ne.s32.totalorder %s60, %s74
      %p76 = scmp.eq.s32.totalorder %s29, 0
      %p77 = por %p75, %p76
      %s79 = sadd.s32 %s78, 1
      %p82 = scmp.eq.s32.totalorder %s23, 1
      %p83 = scmp.ne.s32.totalorder %s78, %s80
      %p84 = scmp.eq.s32.totalorder %s23, 0
      %p85 = por %p83, %p84
      %p86 = scmp.ne.s32.totalorder %s78, %s80
      %p87 = scmp.eq.s32.totalorder %s28, 1
      %p88 = por %p86, %p87
      %p89 = scmp.ne.s32.totalorder %s80, %s81
      %p90 = scmp.eq.s32.totalorder %s28, 0
      %p91 = por %p89, %p90
      %p92 = scmp.ne.s32.totalorder %s80, %s81
      %p93 = scmp.eq.s32.totalorder %s29, 1
      %p94 = por %p92, %p93
      %p96 = scmp.ne.s32.totalorder %s81, %s95
      %p97 = scmp.eq.s32.totalorder %s29, 0
      %p98 = por %p96, %p97
      %s100 = sadd.s32 %s99, 1
      %p103 = scmp.eq.s32.totalorder %s23, 1
      %p104 = scmp.ne.s32.totalorder %s99, %s101
      %p105 = scmp.eq.s32.totalorder %s23, 0
      %p106 = por %p104, %p105
      %p107 = scmp.ne.s32.totalorder %s99, %s101
      %p108 = scmp.eq.s32.totalorder %s28, 1
      %p109 = por %p107, %p108
      %p110 = scmp.ne.s32.totalorder %s101, %s102
      %p111 = scmp.eq.s32.totalorder %s28, 0
      %p112 = por %p110, %p111
      %p113 = scmp.ne.s32.totalorder %s101, %s102
      %p114 = scmp.eq.s32.totalorder %s29, 1
      %p115 = por %p113, %p114
      %p117 = scmp.ne.s32.totalorder %s102, %s116
      %p118 = scmp.eq.s32.totalorder %s29, 0
      %p119 = por %p117, %p118
      %s121 = sadd.s32 %s120, 1
      %p124 = scmp.eq.s32.totalorder %s23, 1
      %p125 = scmp.ne.s32.totalorder %s120, %s122
      %p126 = scmp.eq.s32.totalorder %s23, 0
      %p127 = por %p125, %p126
      %p128 = scmp.ne.s32.totalorder %s120, %s122
      %p129 = scmp.eq.s32.totalorder %s28, 1
      %p130 = por %p128, %p129
      %p131 = scmp.ne.s32.totalorder %s122, %s123
      %p132 = scmp.eq.s32.totalorder %s28, 0
      %p133 = por %p131, %p132
      %p134 = scmp.ne.s32.totalorder %s122, %s123
      %p135 = scmp.eq.s32.totalorder %s29, 1
      %p136 = por %p134, %p135
      %p138 = scmp.ne.s32.totalorder %s123, %s137
      %p139 = scmp.eq.s32.totalorder %s29, 0
      %p140 = por %p138, %p139
      %s142 = sadd.s32 %s141, 1
      %p145 = scmp.eq.s32.totalorder %s23, 1
      %p146 = scmp.ne.s32.totalorder %s141, %s143
      %p147 = scmp.eq.s32.totalorder %s23, 0
      %p148 = por %p146, %p147
      %p149 = scmp.ne.s32.totalorder %s141, %s143
      %p150 = scmp.eq.s32.totalorder %s28, 1
      %p151 = por %p149, %p150
      %p152 = scmp.ne.s32.totalorder %s143, %s144
      %p153 = scmp.eq.s32.totalorder %s28, 0
      %p154 = por %p152, %p153
      %p155 = scmp.ne.s32.totalorder %s143, %s144
      %p156 = scmp.eq.s32.totalorder %s29, 1
      %p157 = por %p155, %p156
      %p159 = scmp.ne.s32.totalorder %s144, %s158
      %p160 = scmp.eq.s32.totalorder %s29, 0
      %p161 = por %p159, %p160
      %s163 = sadd.s32 %s162, 1
      %p166 = scmp.eq.s32.totalorder %s23, 1
      %p167 = scmp.ne.s32.totalorder %s162, %s164
      %p168 = scmp.eq.s32.totalorder %s23, 0
      %p169 = por %p167, %p168
      %p170 = scmp.ne.s32.totalorder %s162, %s164
      %p171 = scmp.eq.s32.totalorder %s28, 1
      %p172 = por %p170, %p171
      %p173 = scmp.ne.s32.totalorder %s164, %s165
      %p174 = scmp.eq.s32.totalorder %s28, 0
      %p175 = por %p173, %p174
      %p176 = scmp.ne.s32.totalorder %s164, %s165
      %p177 = scmp.eq.s32.totalorder %s29, 1
      %p178 = por %p176, %p177
      %p180 = scmp.ne.s32.totalorder %s165, %s179
      %p181 = scmp.eq.s32.totalorder %s29, 0
      %p182 = por %p180, %p181
      %s184 = sadd.s32 %s183, 1
      %p187 = scmp.eq.s32.totalorder %s23, 1
      %p188 = scmp.ne.s32.totalorder %s183, %s185
      %p189 = scmp.eq.s32.totalorder %s23, 0
      %p190 = por %p188, %p189
      %p191 = scmp.ne.s32.totalorder %s183, %s185
      %p192 = scmp.eq.s32.totalorder %s28, 1
      %p193 = por %p191, %p192
      %p194 = scmp.ne.s32.totalorder %s185, %s186
      %p195 = scmp.eq.s32.totalorder %s28, 0
      %p196 = por %p194, %p195
      %p197 = scmp.ne.s32.totalorder %s185, %s186
      %p198 = scmp.eq.s32.totalorder %s29, 1
      %p199 = por %p197, %p198
      %p201 = scmp.ne.s32.totalorder %s186, %s200
      %p202 = scmp.eq.s32.totalorder %s29, 0
      %p203 = por %p201, %p202
      %s205 = sadd.s32 %s204, 1
      %p208 = scmp.eq.s32.totalorder %s23, 1
      %p209 = scmp.ne.s32.totalorder %s204, %s206
      %p210 = scmp.eq.s32.totalorder %s23, 0
      %p211 = por %p209, %p210
      %p212 = scmp.ne.s32.totalorder %s204, %s206
      %p213 = scmp.eq.s32.totalorder %s28, 1
      %p214 = por %p212, %p213
      %p215 = scmp.ne.s32.totalorder %s206, %s207
      %p216 = scmp.eq.s32.totalorder %s28, 0
      %p217 = por %p215, %p216
      %p218 = scmp.ne.s32.totalorder %s206, %s207
      %p219 = scmp.eq.s32.totalorder %s29, 1
      %p220 = por %p218, %p219
      %p222 = scmp.ne.s32.totalorder %s207, %s221
      %p223 = scmp.eq.s32.totalorder %s29, 0
      %p224 = por %p222, %p223
      %s226 = sadd.s32 %s225, 1
      %p229 = scmp.eq.s32.totalorder %s23, 1
      %p230 = scmp.ne.s32.totalorder %s225, %s227
      %p231 = scmp.eq.s32.totalorder %s23, 0
      %p232 = por %p230, %p231
      %p233 = scmp.ne.s32.totalorder %s225, %s227
      %p234 = scmp.eq.s32.totalorder %s28, 1
      %p235 = por %p233, %p234
      %p236 = scmp.ne.s32.totalorder %s227, %s228
      %p237 = scmp.eq.s32.totalorder %s28, 0
      %p238 = por %p236, %p237
      %p239 = scmp.ne.s32.totalorder %s227, %s228
      %p240 = scmp.eq.s32.totalorder %s29, 1
      %p241 = por %p239, %p240
      %p243 = scmp.ne.s32.totalorder %s228, %s242
      %p244 = scmp.eq.s32.totalorder %s29, 0
      %p245 = por %p243, %p244
      %s247 = sadd.s32 %s246, 1
      %p250 = scmp.eq.s32.totalorder %s23, 1
      %p251 = scmp.ne.s32.totalorder %s246, %s248
      %p252 = scmp.eq.s32.totalorder %s23, 0
      %p253 = por %p251, %p252
      %p254 = scmp.ne.s32.totalorder %s246, %s248
      %p255 = scmp.eq.s32.totalorder %s28, 1
      %p256 = por %p254, %p255
      %p257 = scmp.ne.s32.totalorder %s248, %s249
      %p258 = scmp.eq.s32.totalorder %s28, 0
      %p259 = por %p257, %p258
      %p260 = scmp.ne.s32.totalorder %s248, %s249
      %p261 = scmp.eq.s32.totalorder %s29, 1
      %p262 = por %p260, %p261
      %p264 = scmp.ne.s32.totalorder %s249, %s263
      %p265 = scmp.eq.s32.totalorder %s29, 0
      %p266 = por %p264, %p265
      %s268 = sadd.s32 %s267, 1
      %p271 = scmp.eq.s32.totalorder %s23, 1
      %p272 = scmp.ne.s32.totalorder %s267, %s269
      %p273 = scmp.eq.s32.totalorder %s23, 0
      %p274 = por %p272, %p273
      %p275 = scmp.ne.s32.totalorder %s267, %s269
      %p276 = scmp.eq.s32.totalorder %s28, 1
      %p277 = por %p275, %p276
      %p278 = scmp.ne.s32.totalorder %s269, %s270
      %p279 = scmp.eq.s32.totalorder %s28, 0
      %p280 = por %p278, %p279
      %p281 = scmp.ne.s32.totalorder %s269, %s270
      %p282 = scmp.eq.s32.totalorder %s29, 1
      %p283 = por %p281, %p282
      %p285 = scmp.ne.s32.totalorder %s270, %s284
      %p286 = scmp.eq.s32.totalorder %s29, 0
      %p287 = por %p285, %p286
      %s289 = sadd.s32 %s288, 1
      %p292 = scmp.eq.s32.totalorder %s23, 1
      %p293 = scmp.ne.s32.totalorder %s288, %s290
      %p294 = scmp.eq.s32.totalorder %s23, 0
      %p295 = por %p293, %p294
      %p296 = scmp.ne.s32.totalorder %s288, %s290
      %p297 = scmp.eq.s32.totalorder %s28, 1
      %p298 = por %p296, %p297
      %p299 = scmp.ne.s32.totalorder %s290, %s291
      %p300 = scmp.eq.s32.totalorder %s28, 0
      %p301 = por %p299, %p300
      %p302 = scmp.ne.s32.totalorder %s290, %s291
      %p303 = scmp.eq.s32.totalorder %s29, 1
      %p304 = por %p302, %p303
      %p306 = scmp.ne.s32.totalorder %s291, %s305
      %p307 = scmp.eq.s32.totalorder %s29, 0
      %p308 = por %p306, %p307
      %s310 = sadd.s32 %s309, 1
      %p313 = scmp.eq.s32.totalorder %s23, 1
      %p314 = scmp.ne.s32.totalorder %s309, %s311
      %p315 = scmp.eq.s32.totalorder %s23, 0
      %p316 = por %p314, %p315
      %p317 = scmp.ne.s32.totalorder %s309, %s311
      %p318 = scmp.eq.s32.totalorder %s28, 1
      %p319 = por %p317, %p318
      %p320 = scmp.ne.s32.totalorder %s311, %s312
      %p321 = scmp.eq.s32.totalorder %s28, 0
      %p322 = por %p320, %p321
      %p323 = scmp.ne.s32.totalorder %s311, %s312
      %p324 = scmp.eq.s32.totalorder %s29, 1
      %p325 = por %p323, %p324
      %p327 = scmp.ne.s32.totalorder %s312, %s326
      %p328 = scmp.eq.s32.totalorder %s29, 0
      %p329 = por %p327, %p328
      %s330 = ssub.s32 %s23, %s30
      %p331 = scmp.eq.s32.totalorder %s330, 0
      %s333 = sadd.s32 %s332, 1
      %s334 = scalar_select %p331, %s332, %s333
      %p337 = pneg %p331
      %p338 = scmp.eq.s32.totalorder %s23, 1
      %p339 = por %p337, %p338
      %p340 = scmp.ne.s32.totalorder %s332, %s335
      %p341 = scmp.eq.s32.totalorder %s23, 0
      %p342 = por %p340, %p341
      %p343 = scmp.ne.s32.totalorder %s332, %s335
      %p344 = scmp.eq.s32.totalorder %s28, 1
      %p345 = por %p343, %p344
      %p346 = scmp.ne.s32.totalorder %s335, %s336
      %p347 = scmp.eq.s32.totalorder %s28, 0
      %p348 = por %p346, %p347
      %p349 = scmp.ne.s32.totalorder %s335, %s336
      %p350 = scmp.eq.s32.totalorder %s29, 1
      %p351 = por %p349, %p350
      %p353 = scmp.ne.s32.totalorder %s336, %s352
      %p354 = scmp.eq.s32.totalorder %s29, 0
      %p355 = por %p353, %p354
      %p356 = scmp.le.s32.totalorder 1, %s23
      %p357 = scmp.lt.s32.totalorder %s23, 3
      %p358 = pnand %p356, %p357
      %p359 = pneg %p358
      // Predicated region
      $region9: #{basic_block_forward.1} parent=5 // pred_check
        _
      $region10: #{basic_block_forward.1} parent=5 // pred_check_branch
        %361 = sbr.rel (%p358) target = $region12
      $region11: #{basic_block_forward.1} parent=5 // pred_region
        %s362 = ssub.s32 %s23, 1
        // Predicated region
        $region13: #{basic_block_forward.1} parent=11 // pred_check
          %p363 = pneg %p70
        $region14: #{basic_block_forward.1} parent=11 // pred_check_branch
          %365 = sbr.rel (%p363) target = $region16
        $region15: #{basic_block_forward.1} parent=11 // pred_region
          _
        $region16: #{basic_block_forward.1} parent=11 // pred_fallthru
          _
        // Predicated region
        $region17: #{basic_block_forward.1} parent=11 // pred_check
          %p366 = pneg %p91
        $region18: #{basic_block_forward.1} parent=11 // pred_check_branch
          %368 = sbr.rel (%p366) target = $region20
        $region19: #{basic_block_forward.1} parent=11 // pred_region
          _
        $region20: #{basic_block_forward.1} parent=11 // pred_fallthru
          _
        // Predicated region
        $region21: #{basic_block_forward.1} parent=11 // pred_check
          %p369 = pneg %p112
        $region22: #{basic_block_forward.1} parent=11 // pred_check_branch
          %371 = sbr.rel (%p369) target = $region24
        $region23: #{basic_block_forward.1} parent=11 // pred_region
          _
        $region24: #{basic_block_forward.1} parent=11 // pred_fallthru
          _
        // Predicated region
        $region25: #{basic_block_forward.1} parent=11 // pred_check
          %p372 = pneg %p133
        $region26: #{basic_block_forward.1} parent=11 // pred_check_branch
          %374 = sbr.rel (%p372) target = $region28
        $region27: #{basic_block_forward.1} parent=11 // pred_region
          _
        $region28: #{basic_block_forward.1} parent=11 // pred_fallthru
          _
        // Predicated region
        $region29: #{basic_block_forward.1} parent=11 // pred_check
          %p375 = pneg %p154
        $region30: #{basic_block_forward.1} parent=11 // pred_check_branch
          %377 = sbr.rel (%p375) target = $region32
        $region31: #{basic_block_forward.1} parent=11 // pred_region
          _
        $region32: #{basic_block_forward.1} parent=11 // pred_fallthru
          _
        // Predicated region
        $region33: #{basic_block_forward.1} parent=11 // pred_check
          %p378 = pneg %p175
        $region34: #{basic_block_forward.1} parent=11 // pred_check_branch
          %380 = sbr.rel (%p378) target = $region36
        $region35: #{basic_block_forward.1} parent=11 // pred_region
          _
        $region36: #{basic_block_forward.1} parent=11 // pred_fallthru
          _
        // Predicated region
        $region37: #{basic_block_forward.1} parent=11 // pred_check
          %p381 = pneg %p196
        $region38: #{basic_block_forward.1} parent=11 // pred_check_branch
          %383 = sbr.rel (%p381) target = $region40
        $region39: #{basic_block_forward.1} parent=11 // pred_region
          _
        $region40: #{basic_block_forward.1} parent=11 // pred_fallthru
          _
        // Predicated region
        $region41: #{basic_block_forward.1} parent=11 // pred_check
          %p384 = pneg %p217
        $region42: #{basic_block_forward.1} parent=11 // pred_check_branch
          %386 = sbr.rel (%p384) target = $region44
        $region43: #{basic_block_forward.1} parent=11 // pred_region
          _
        $region44: #{basic_block_forward.1} parent=11 // pred_fallthru
          _
        // Predicated region
        $region45: #{basic_block_forward.1} parent=11 // pred_check
          %p387 = pneg %p238
        $region46: #{basic_block_forward.1} parent=11 // pred_check_branch
          %389 = sbr.rel (%p387) target = $region48
        $region47: #{basic_block_forward.1} parent=11 // pred_region
          _
        $region48: #{basic_block_forward.1} parent=11 // pred_fallthru
          _
        // Predicated region
        $region49: #{basic_block_forward.1} parent=11 // pred_check
          %p390 = pneg %p259
        $region50: #{basic_block_forward.1} parent=11 // pred_check_branch
          %392 = sbr.rel (%p390) target = $region52
        $region51: #{basic_block_forward.1} parent=11 // pred_region
          _
        $region52: #{basic_block_forward.1} parent=11 // pred_fallthru
          _
        // Predicated region
        $region53: #{basic_block_forward.1} parent=11 // pred_check
          %p393 = pneg %p280
        $region54: #{basic_block_forward.1} parent=11 // pred_check_branch
          %395 = sbr.rel (%p393) target = $region56
        $region55: #{basic_block_forward.1} parent=11 // pred_region
          _
        $region56: #{basic_block_forward.1} parent=11 // pred_fallthru
          _
        // Predicated region
        $region57: #{basic_block_forward.1} parent=11 // pred_check
          %p396 = pneg %p301
        $region58: #{basic_block_forward.1} parent=11 // pred_check_branch
          %398 = sbr.rel (%p396) target = $region60
        $region59: #{basic_block_forward.1} parent=11 // pred_region
          _
        $region60: #{basic_block_forward.1} parent=11 // pred_fallthru
          _
        // Predicated region
        $region61: #{basic_block_forward.1} parent=11 // pred_check
          %p399 = pneg %p322
        $region62: #{basic_block_forward.1} parent=11 // pred_check_branch
          %401 = sbr.rel (%p399) target = $region64
        $region63: #{basic_block_forward.1} parent=11 // pred_region
          _
        $region64: #{basic_block_forward.1} parent=11 // pred_fallthru
          _
      $region12: #{basic_block_forward.1} parent=5 // pred_fallthru
        _
      %p402 = scmp.lt.s32.totalorder %s23, 2
      // Predicated region
      $region65: #{basic_block_forward.1} parent=5 // pred_check
        %p403 = pneg %p402
      $region66: #{basic_block_forward.1} parent=5 // pred_check_branch
        %405 = sbr.rel (%p403) target = $region68
      $region67: #{basic_block_forward.1} parent=5 // pred_region
        // Predicated region
        $region69: #{basic_block_forward.1} parent=67 // pred_check
          %p406 = pneg %p43
        $region70: #{basic_block_forward.1} parent=67 // pred_check_branch
          %408 = sbr.rel (%p406) target = $region72
        $region71: #{basic_block_forward.1} parent=67 // pred_region
          %s409 = smul.u32 16, %s23
          %p410 = scmp.lt.s32.totalorder %s409, 31
          %s411 = scalar_select %p410, %s409, 31
          %s412 = smul.addr %s411, 4
          %s413 = scalar_lea.vmem %s0, %s412
          %s414 = smul.u32 16, %s23
        $region72: #{basic_block_forward.1} parent=67 // pred_fallthru
          _
      $region68: #{basic_block_forward.1} parent=5 // pred_fallthru
        _
      %p415 = scmp.le.s32.totalorder 1, %s23
      %p416 = scmp.lt.s32.totalorder %s23, 3
      %p417 = pnand %p415, %p416
      %p418 = pneg %p417
      // Predicated region
      $region73: #{basic_block_forward.1} parent=5 // pred_check
        _
      $region74: #{basic_block_forward.1} parent=5 // pred_check_branch
        %420 = sbr.rel (%p417) target = $region76
      $region75: #{basic_block_forward.1} parent=5 // pred_region
        %s421 = ssub.s32 %s23, 1
        %s422 = smul.u32 16, %s28
        %p423 = scmp.lt.s32.totalorder %s422, 31
        %s424 = scalar_select %p423, %s422, 31
        %s425 = smul.addr %s424, 4
        %s426 = scalar_lea.vmem %s0, %s425
        %p427 = pneg %p49
        %p428 = pneg %p46
        %p429 = pneg %p70
        %p430 = pneg %p67
        %p431 = pneg %p91
        %p432 = pneg %p88
        %p433 = pneg %p112
        %p434 = pneg %p109
        %p435 = pneg %p133
        %p436 = pneg %p130
        %p437 = pneg %p154
        %p438 = pneg %p151
        %p439 = pneg %p175
        %p440 = pneg %p172
        %p441 = pneg %p196
        %p442 = pneg %p193
        %p443 = pneg %p217
        %p444 = pneg %p214
        %p445 = pneg %p238
        %p446 = pneg %p235
        %p447 = pneg %p259
        %p448 = pneg %p256
        %p449 = pneg %p280
        %p450 = pneg %p277
        %p451 = pneg %p301
        %p452 = pneg %p298
        %p453 = pneg %p322
        %p454 = pneg %p319
        %p455 = pneg %p348
        %p456 = pneg %p345
        %s457 = sand.u32 %s335, 1
        %s458 = scalar_lea.sflag [#allocation5], %s457
        %s459 = sand.u32 %s335, 1
        %s460 = smul.addr %s459, 128
        %s461 = scalar_lea.vmem [#allocation4], %s460
        %s462 = smul.u32 16, %s28
        %p463 = scmp.lt.s32.totalorder %s462, 31
        %s464 = scalar_select %p463, %s462, 31
        %s465 = smul.addr %s464, 4
        %s466 = scalar_lea.vmem %s0, %s465
        %s467 = smul.u32 16, %s28
        %s468 = smul.u32 16, %s28
        %vm470 = vcmask 261120
        %471 = vst.msk [vmem:[#allocation2] sm:$0xff] %vm470, 0.0
        %472 = vst.msk [vmem:[#allocation2 + $0x8] sm:$0xff] %vm470, 0.0
        %473 = vst.msk [vmem:[#allocation2 + $0x90] sm:$0xff] %vm470, 0.0
        %474 = vst.msk [vmem:[#allocation2 + $0x98] sm:$0xff] %vm470, 0.0
        %v475 = vld [vmem:[%s466] sm:$0xf]
        %v476 = vld [vmem:[%s466 + $0x4] sm:$0xf]
        %v477 = vld [vmem:[%s466 + $0x8] sm:$0xf]
        %v478 = vld [vmem:[%s466 + $0xc] sm:$0xf]
        %v479 = vld [vmem:[%s466 + $0x10] sm:$0xf]
        %v480 = vld [vmem:[%s466 + $0x14] sm:$0xf]
        %v481 = vld [vmem:[%s466 + $0x18] sm:$0xf]
        %v482 = vld [vmem:[%s466 + $0x1c] sm:$0xf]
        %v483 = vld [vmem:[%s466 + $0x20] sm:$0xf]
        %v484 = vld [vmem:[%s466 + $0x24] sm:$0xf]
        %v485 = vld [vmem:[%s466 + $0x28] sm:$0xf]
        %v486 = vld [vmem:[%s466 + $0x2c] sm:$0xf]
        %v487 = vld [vmem:[%s466 + $0x30] sm:$0xf]
        %v488 = vld [vmem:[%s466 + $0x34] sm:$0xf]
        %v489 = vld [vmem:[%s466 + $0x38] sm:$0xf]
        %v490 = vld [vmem:[%s466 + $0x3c] sm:$0xf]
        %v491 = vunpack.c.l.bf16 %v475
        %v492 = vunpack.c.l.bf16 %v476
        %v493 = vunpack.c.l.bf16 %v477
        %v494 = vunpack.c.l.bf16 %v478
        %v495 = vunpack.c.l.bf16 %v479
        %v496 = vunpack.c.l.bf16 %v480
        %v497 = vunpack.c.l.bf16 %v481
        %v498 = vunpack.c.l.bf16 %v482
        %v499 = vunpack.c.l.bf16 %v483
        %v500 = vunpack.c.l.bf16 %v484
        %v501 = vunpack.c.l.bf16 %v485
        %v502 = vunpack.c.l.bf16 %v486
        %v503 = vunpack.c.l.bf16 %v487
        %v504 = vunpack.c.l.bf16 %v488
        %v505 = vunpack.c.l.bf16 %v489
        %v506 = vunpack.c.l.bf16 %v490
        %507 = vst.msk [vmem:[#allocation2 + $0x10] sm:$0xff] %vm470, %v491
        %508 = vst.msk [vmem:[#allocation2 + $0x18] sm:$0xff] %vm470, %v492
        %509 = vst.msk [vmem:[#allocation2 + $0x20] sm:$0xff] %vm470, %v493
        %510 = vst.msk [vmem:[#allocation2 + $0x28] sm:$0xff] %vm470, %v494
        %511 = vst.msk [vmem:[#allocation2 + $0x30] sm:$0xff] %vm470, %v495
        %512 = vst.msk [vmem:[#allocation2 + $0x38] sm:$0xff] %vm470, %v496
        %513 = vst.msk [vmem:[#allocation2 + $0x40] sm:$0xff] %vm470, %v497
        %514 = vst.msk [vmem:[#allocation2 + $0x48] sm:$0xff] %vm470, %v498
        %515 = vst.msk [vmem:[#allocation2 + $0x50] sm:$0xff] %vm470, %v499
        %516 = vst.msk [vmem:[#allocation2 + $0x58] sm:$0xff] %vm470, %v500
        %517 = vst.msk [vmem:[#allocation2 + $0x60] sm:$0xff] %vm470, %v501
        %518 = vst.msk [vmem:[#allocation2 + $0x68] sm:$0xff] %vm470, %v502
        %519 = vst.msk [vmem:[#allocation2 + $0x70] sm:$0xff] %vm470, %v503
        %520 = vst.msk [vmem:[#allocation2 + $0x78] sm:$0xff] %vm470, %v504
        %521 = vst.msk [vmem:[#allocation2 + $0x80] sm:$0xff] %vm470, %v505
        %522 = vst.msk [vmem:[#allocation2 + $0x88] sm:$0xff] %vm470, %v506
        %v523 = vld [vmem:[#allocation2 + $0x7] sm:$0xff]
        %v524 = vld [vmem:[#allocation2 + $0xf] sm:$0xff]
        %v525 = vld [vmem:[#allocation2 + $0x17] sm:$0xff]
        %v526 = vld [vmem:[#allocation2 + $0x1f] sm:$0xff]
        %v527 = vld [vmem:[#allocation2 + $0x27] sm:$0xff]
        %v528 = vld [vmem:[#allocation2 + $0x2f] sm:$0xff]
        %v529 = vld [vmem:[#allocation2 + $0x37] sm:$0xff]
        %v530 = vld [vmem:[#allocation2 + $0x3f] sm:$0xff]
        %v531 = vld [vmem:[#allocation2 + $0x47] sm:$0xff]
        %v532 = vld [vmem:[#allocation2 + $0x4f] sm:$0xff]
        %v533 = vld [vmem:[#allocation2 + $0x57] sm:$0xff]
        %v534 = vld [vmem:[#allocation2 + $0x5f] sm:$0xff]
        %v535 = vld [vmem:[#allocation2 + $0x67] sm:$0xff]
        %v536 = vld [vmem:[#allocation2 + $0x6f] sm:$0xff]
        %v537 = vld [vmem:[#allocation2 + $0x77] sm:$0xff]
        %v538 = vld [vmem:[#allocation2 + $0x7f] sm:$0xff]
        %v539 = vpack.c.bf16 %v524, %v523
        %v540 = vpack.c.bf16 %v526, %v525
        %v541 = vpack.c.bf16 %v528, %v527
        %v542 = vpack.c.bf16 %v530, %v529
        %v543 = vpack.c.bf16 %v532, %v531
        %v544 = vpack.c.bf16 %v534, %v533
        %v545 = vpack.c.bf16 %v536, %v535
        %v546 = vpack.c.bf16 %v538, %v537
        %v547 = vld [vmem:[%s1] sm:$0xf]
        %v548 = vld [vmem:[%s1 + $0x4] sm:$0xf]
        %v549 = vld [vmem:[%s1 + $0x8] sm:$0xf]
        %v550 = vld [vmem:[%s1 + $0xc] sm:$0xf]
        %v551 = vld [vmem:[%s1 + $0x10] sm:$0xf]
        %v552 = vld [vmem:[%s1 + $0x14] sm:$0xf]
        %v553 = vld [vmem:[%s1 + $0x18] sm:$0xf]
        %v554 = vld [vmem:[%s1 + $0x1c] sm:$0xf]
        %v555 = vld [vmem:[%s1 + $0x20] sm:$0xf]
        %v556 = vld [vmem:[%s1 + $0x24] sm:$0xf]
        %v557 = vld [vmem:[%s1 + $0x28] sm:$0xf]
        %v558 = vld [vmem:[%s1 + $0x2c] sm:$0xf]
        %v559 = vld [vmem:[%s1 + $0x30] sm:$0xf]
        %v560 = vld [vmem:[%s1 + $0x34] sm:$0xf]
        %v561 = vld [vmem:[%s1 + $0x38] sm:$0xf]
        %v562 = vld [vmem:[%s1 + $0x3c] sm:$0xf]
        %564 = vset.pattern.permute.xlu0 0
        %565 = vperm.xlu0 %564, %v547
        %v566 = vpop.permute.xlu0 %565
        %v569 = vunpack.c.l.s4 839922192
        %v570 = vunpack.c.0.s8 %v569
        %v571 = vlaneseq
        %v572 = vshrl.u32 %v571, 7
        %v573 = vsub.s32 %v570, %v572
        %v574 = vrot.slane %v566, %v573
        %576 = vset.pattern.permute.xlu0 0
        %577 = vperm.xlu0 %576, %v548
        %v578 = vpop.permute.xlu0 %577
        %v581 = vunpack.c.l.s4 839922192
        %v582 = vunpack.c.0.s8 %v581
        %v583 = vlaneseq
        %v584 = vshrl.u32 %v583, 7
        %v585 = vsub.s32 %v582, %v584
        %v586 = vrot.slane %v578, %v585
        %588 = vset.pattern.permute.xlu0 0
        %589 = vperm.xlu0 %588, %v549
        %v590 = vpop.permute.xlu0 %589
        %v593 = vunpack.c.l.s4 839922192
        %v594 = vunpack.c.0.s8 %v593
        %v595 = vlaneseq
        %v596 = vshrl.u32 %v595, 7
        %v597 = vsub.s32 %v594, %v596
        %v598 = vrot.slane %v590, %v597
        %600 = vset.pattern.permute.xlu0 0
        %601 = vperm.xlu0 %600, %v550
        %v602 = vpop.permute.xlu0 %601
        %v605 = vunpack.c.l.s4 839922192
        %v606 = vunpack.c.0.s8 %v605
        %v607 = vlaneseq
        %v608 = vshrl.u32 %v607, 7
        %v609 = vsub.s32 %v606, %v608
        %v610 = vrot.slane %v602, %v609
        %612 = vset.pattern.permute.xlu0 0
        %613 = vperm.xlu0 %612, %v551
        %v614 = vpop.permute.xlu0 %613
        %v617 = vunpack.c.l.s4 839922192
        %v618 = vunpack.c.0.s8 %v617
        %v619 = vlaneseq
        %v620 = vshrl.u32 %v619, 7
        %v621 = vsub.s32 %v618, %v620
        %v622 = vrot.slane %v614, %v621
        %624 = vset.pattern.permute.xlu0 0
        %625 = vperm.xlu0 %624, %v552
        %v626 = vpop.permute.xlu0 %625
        %v629 = vunpack.c.l.s4 839922192
        %v630 = vunpack.c.0.s8 %v629
        %v631 = vlaneseq
        %v632 = vshrl.u32 %v631, 7
        %v633 = vsub.s32 %v630, %v632
        %v634 = vrot.slane %v626, %v633
        %636 = vset.pattern.permute.xlu0 0
        %637 = vperm.xlu0 %636, %v553
        %v638 = vpop.permute.xlu0 %637
        %v641 = vunpack.c.l.s4 839922192
        %v642 = vunpack.c.0.s8 %v641
        %v643 = vlaneseq
        %v644 = vshrl.u32 %v643, 7
        %v645 = vsub.s32 %v642, %v644
        %v646 = vrot.slane %v638, %v645
        %648 = vset.pattern.permute.xlu0 0
        %649 = vperm.xlu0 %648, %v554
        %v650 = vpop.permute.xlu0 %649
        %v653 = vunpack.c.l.s4 839922192
        %v654 = vunpack.c.0.s8 %v653
        %v655 = vlaneseq
        %v656 = vshrl.u32 %v655, 7
        %v657 = vsub.s32 %v654, %v656
        %v658 = vrot.slane %v650, %v657
        %660 = vset.pattern.permute.xlu0 0
        %661 = vperm.xlu0 %660, %v555
        %v662 = vpop.permute.xlu0 %661
        %v665 = vunpack.c.l.s4 839922192
        %v666 = vunpack.c.0.s8 %v665
        %v667 = vlaneseq
        %v668 = vshrl.u32 %v667, 7
        %v669 = vsub.s32 %v666, %v668
        %v670 = vrot.slane %v662, %v669
        %672 = vset.pattern.permute.xlu0 0
        %673 = vperm.xlu0 %672, %v556
        %v674 = vpop.permute.xlu0 %673
        %v677 = vunpack.c.l.s4 839922192
        %v678 = vunpack.c.0.s8 %v677
        %v679 = vlaneseq
        %v680 = vshrl.u32 %v679, 7
        %v681 = vsub.s32 %v678, %v680
        %v682 = vrot.slane %v674, %v681
        %684 = vset.pattern.permute.xlu0 0
        %685 = vperm.xlu0 %684, %v557
        %v686 = vpop.permute.xlu0 %685
        %v689 = vunpack.c.l.s4 839922192
        %v690 = vunpack.c.0.s8 %v689
        %v691 = vlaneseq
        %v692 = vshrl.u32 %v691, 7
        %v693 = vsub.s32 %v690, %v692
        %v694 = vrot.slane %v686, %v693
        %696 = vset.pattern.permute.xlu0 0
        %697 = vperm.xlu0 %696, %v558
        %v698 = vpop.permute.xlu0 %697
        %v701 = vunpack.c.l.s4 839922192
        %v702 = vunpack.c.0.s8 %v701
        %v703 = vlaneseq
        %v704 = vshrl.u32 %v703, 7
        %v705 = vsub.s32 %v702, %v704
        %v706 = vrot.slane %v698, %v705
        %708 = vset.pattern.permute.xlu0 0
        %709 = vperm.xlu0 %708, %v559
        %v710 = vpop.permute.xlu0 %709
        %v713 = vunpack.c.l.s4 839922192
        %v714 = vunpack.c.0.s8 %v713
        %v715 = vlaneseq
        %v716 = vshrl.u32 %v715, 7
        %v717 = vsub.s32 %v714, %v716
        %v718 = vrot.slane %v710, %v717
        %720 = vset.pattern.permute.xlu0 0
        %721 = vperm.xlu0 %720, %v560
        %v722 = vpop.permute.xlu0 %721
        %v725 = vunpack.c.l.s4 839922192
        %v726 = vunpack.c.0.s8 %v725
        %v727 = vlaneseq
        %v728 = vshrl.u32 %v727, 7
        %v729 = vsub.s32 %v726, %v728
        %v730 = vrot.slane %v722, %v729
        %732 = vset.pattern.permute.xlu0 0
        %733 = vperm.xlu0 %732, %v561
        %v734 = vpop.permute.xlu0 %733
        %v737 = vunpack.c.l.s4 839922192
        %v738 = vunpack.c.0.s8 %v737
        %v739 = vlaneseq
        %v740 = vshrl.u32 %v739, 7
        %v741 = vsub.s32 %v738, %v740
        %v742 = vrot.slane %v734, %v741
        %744 = vset.pattern.permute.xlu0 0
        %745 = vperm.xlu0 %744, %v562
        %v746 = vpop.permute.xlu0 %745
        %v749 = vunpack.c.l.s4 839922192
        %v750 = vunpack.c.0.s8 %v749
        %v751 = vlaneseq
        %v752 = vshrl.u32 %v751, 7
        %v753 = vsub.s32 %v750, %v752
        %v754 = vrot.slane %v746, %v753
        %v771 = vunpack.c.l.b16 %v574
        %v772 = vunpack.c.l.b16 %v586
        %v773 = vunpack.c.l.b16 %v598
        %v774 = vunpack.c.l.b16 %v610
        %v775 = vunpack.c.l.b16 %v622
        %v776 = vunpack.c.l.b16 %v634
        %v777 = vunpack.c.l.b16 %v646
        %v778 = vunpack.c.l.b16 %v658
        %v779 = vunpack.c.l.b16 %v670
        %v780 = vunpack.c.l.b16 %v682
        %v781 = vunpack.c.l.b16 %v694
        %v782 = vunpack.c.l.b16 %v706
        %v783 = vunpack.c.l.b16 %v718
        %v784 = vunpack.c.l.b16 %v730
        %v785 = vunpack.c.l.b16 %v742
        %v786 = vunpack.c.l.b16 %v754
        %v787 = vpack.c.b16 %v772, %v771
        %v788 = vpack.c.b16 %v774, %v773
        %v789 = vpack.c.b16 %v776, %v775
        %v790 = vpack.c.b16 %v778, %v777
        %v791 = vpack.c.b16 %v780, %v779
        %v792 = vpack.c.b16 %v782, %v781
        %v793 = vpack.c.b16 %v784, %v783
        %v794 = vpack.c.b16 %v786, %v785
        %v803 = vmul.bf16 %v539, %v787
        %v804 = vmul.bf16 %v540, %v788
        %v805 = vmul.bf16 %v541, %v789
        %v806 = vmul.bf16 %v542, %v790
        %v807 = vmul.bf16 %v543, %v791
        %v808 = vmul.bf16 %v544, %v792
        %v809 = vmul.bf16 %v545, %v793
        %v810 = vmul.bf16 %v546, %v794
        %v811 = vld [vmem:[#allocation2 + $0x8] sm:$0xff]
        %v812 = vld [vmem:[#allocation2 + $0x10] sm:$0xff]
        %v813 = vld [vmem:[#allocation2 + $0x18] sm:$0xff]
        %v814 = vld [vmem:[#allocation2 + $0x20] sm:$0xff]
        %v815 = vld [vmem:[#allocation2 + $0x28] sm:$0xff]
        %v816 = vld [vmem:[#allocation2 + $0x30] sm:$0xff]
        %v817 = vld [vmem:[#allocation2 + $0x38] sm:$0xff]
        %v818 = vld [vmem:[#allocation2 + $0x40] sm:$0xff]
        %v819 = vld [vmem:[#allocation2 + $0x48] sm:$0xff]
        %v820 = vld [vmem:[#allocation2 + $0x50] sm:$0xff]
        %v821 = vld [vmem:[#allocation2 + $0x58] sm:$0xff]
        %v822 = vld [vmem:[#allocation2 + $0x60] sm:$0xff]
        %v823 = vld [vmem:[#allocation2 + $0x68] sm:$0xff]
        %v824 = vld [vmem:[#allocation2 + $0x70] sm:$0xff]
        %v825 = vld [vmem:[#allocation2 + $0x78] sm:$0xff]
        %v826 = vld [vmem:[#allocation2 + $0x80] sm:$0xff]
        %v827 = vpack.c.bf16 %v812, %v811
        %v828 = vpack.c.bf16 %v814, %v813
        %v829 = vpack.c.bf16 %v816, %v815
        %v830 = vpack.c.bf16 %v818, %v817
        %v831 = vpack.c.bf16 %v820, %v819
        %v832 = vpack.c.bf16 %v822, %v821
        %v833 = vpack.c.bf16 %v824, %v823
        %v834 = vpack.c.bf16 %v826, %v825
        %s835 = scalar_lea.vmem %s1, 64
        %v836 = vld [vmem:[%s835] sm:$0xf]
        %v837 = vld [vmem:[%s835 + $0x4] sm:$0xf]
        %v838 = vld [vmem:[%s835 + $0x8] sm:$0xf]
        %v839 = vld [vmem:[%s835 + $0xc] sm:$0xf]
        %v840 = vld [vmem:[%s835 + $0x10] sm:$0xf]
        %v841 = vld [vmem:[%s835 + $0x14] sm:$0xf]
        %v842 = vld [vmem:[%s835 + $0x18] sm:$0xf]
        %v843 = vld [vmem:[%s835 + $0x1c] sm:$0xf]
        %v844 = vld [vmem:[%s835 + $0x20] sm:$0xf]
        %v845 = vld [vmem:[%s835 + $0x24] sm:$0xf]
        %v846 = vld [vmem:[%s835 + $0x28] sm:$0xf]
        %v847 = vld [vmem:[%s835 + $0x2c] sm:$0xf]
        %v848 = vld [vmem:[%s835 + $0x30] sm:$0xf]
        %v849 = vld [vmem:[%s835 + $0x34] sm:$0xf]
        %v850 = vld [vmem:[%s835 + $0x38] sm:$0xf]
        %v851 = vld [vmem:[%s835 + $0x3c] sm:$0xf]
        %853 = vset.pattern.permute.xlu0 0
        %854 = vperm.xlu0 %853, %v836
        %v855 = vpop.permute.xlu0 %854
        %v858 = vunpack.c.l.s4 839922192
        %v859 = vunpack.c.0.s8 %v858
        %v860 = vlaneseq
        %v861 = vshrl.u32 %v860, 7
        %v862 = vsub.s32 %v859, %v861
        %v863 = vrot.slane %v855, %v862
        %865 = vset.pattern.permute.xlu0 0
        %866 = vperm.xlu0 %865, %v837
        %v867 = vpop.permute.xlu0 %866
        %v870 = vunpack.c.l.s4 839922192
        %v871 = vunpack.c.0.s8 %v870
        %v872 = vlaneseq
        %v873 = vshrl.u32 %v872, 7
        %v874 = vsub.s32 %v871, %v873
        %v875 = vrot.slane %v867, %v874
        %877 = vset.pattern.permute.xlu0 0
        %878 = vperm.xlu0 %877, %v838
        %v879 = vpop.permute.xlu0 %878
        %v882 = vunpack.c.l.s4 839922192
        %v883 = vunpack.c.0.s8 %v882
        %v884 = vlaneseq
        %v885 = vshrl.u32 %v884, 7
        %v886 = vsub.s32 %v883, %v885
        %v887 = vrot.slane %v879, %v886
        %889 = vset.pattern.permute.xlu0 0
        %890 = vperm.xlu0 %889, %v839
        %v891 = vpop.permute.xlu0 %890
        %v894 = vunpack.c.l.s4 839922192
        %v895 = vunpack.c.0.s8 %v894
        %v896 = vlaneseq
        %v897 = vshrl.u32 %v896, 7
        %v898 = vsub.s32 %v895, %v897
        %v899 = vrot.slane %v891, %v898
        %901 = vset.pattern.permute.xlu0 0
        %902 = vperm.xlu0 %901, %v840
        %v903 = vpop.permute.xlu0 %902
        %v906 = vunpack.c.l.s4 839922192
        %v907 = vunpack.c.0.s8 %v906
        %v908 = vlaneseq
        %v909 = vshrl.u32 %v908, 7
        %v910 = vsub.s32 %v907, %v909
        %v911 = vrot.slane %v903, %v910
        %913 = vset.pattern.permute.xlu0 0
        %914 = vperm.xlu0 %913, %v841
        %v915 = vpop.permute.xlu0 %914
        %v918 = vunpack.c.l.s4 839922192
        %v919 = vunpack.c.0.s8 %v918
        %v920 = vlaneseq
        %v921 = vshrl.u32 %v920, 7
        %v922 = vsub.s32 %v919, %v921
        %v923 = vrot.slane %v915, %v922
        %925 = vset.pattern.permute.xlu0 0
        %926 = vperm.xlu0 %925, %v842
        %v927 = vpop.permute.xlu0 %926
        %v930 = vunpack.c.l.s4 839922192
        %v931 = vunpack.c.0.s8 %v930
        %v932 = vlaneseq
        %v933 = vshrl.u32 %v932, 7
        %v934 = vsub.s32 %v931, %v933
        %v935 = vrot.slane %v927, %v934
        %937 = vset.pattern.permute.xlu0 0
        %938 = vperm.xlu0 %937, %v843
        %v939 = vpop.permute.xlu0 %938
        %v942 = vunpack.c.l.s4 839922192
        %v943 = vunpack.c.0.s8 %v942
        %v944 = vlaneseq
        %v945 = vshrl.u32 %v944, 7
        %v946 = vsub.s32 %v943, %v945
        %v947 = vrot.slane %v939, %v946
        %949 = vset.pattern.permute.xlu0 0
        %950 = vperm.xlu0 %949, %v844
        %v951 = vpop.permute.xlu0 %950
        %v954 = vunpack.c.l.s4 839922192
        %v955 = vunpack.c.0.s8 %v954
        %v956 = vlaneseq
        %v957 = vshrl.u32 %v956, 7
        %v958 = vsub.s32 %v955, %v957
        %v959 = vrot.slane %v951, %v958
        %961 = vset.pattern.permute.xlu0 0
        %962 = vperm.xlu0 %961, %v845
        %v963 = vpop.permute.xlu0 %962
        %v966 = vunpack.c.l.s4 839922192
        %v967 = vunpack.c.0.s8 %v966
        %v968 = vlaneseq
        %v969 = vshrl.u32 %v968, 7
        %v970 = vsub.s32 %v967, %v969
        %v971 = vrot.slane %v963, %v970
        %973 = vset.pattern.permute.xlu0 0
        %974 = vperm.xlu0 %973, %v846
        %v975 = vpop.permute.xlu0 %974
        %v978 = vunpack.c.l.s4 839922192
        %v979 = vunpack.c.0.s8 %v978
        %v980 = vlaneseq
        %v981 = vshrl.u32 %v980, 7
        %v982 = vsub.s32 %v979, %v981
        %v983 = vrot.slane %v975, %v982
        %985 = vset.pattern.permute.xlu0 0
        %986 = vperm.xlu0 %985, %v847
        %v987 = vpop.permute.xlu0 %986
        %v990 = vunpack.c.l.s4 839922192
        %v991 = vunpack.c.0.s8 %v990
        %v992 = vlaneseq
        %v993 = vshrl.u32 %v992, 7
        %v994 = vsub.s32 %v991, %v993
        %v995 = vrot.slane %v987, %v994
        %997 = vset.pattern.permute.xlu0 0
        %998 = vperm.xlu0 %997, %v848
        %v999 = vpop.permute.xlu0 %998
        %v1002 = vunpack.c.l.s4 839922192
        %v1003 = vunpack.c.0.s8 %v1002
        %v1004 = vlaneseq
        %v1005 = vshrl.u32 %v1004, 7
        %v1006 = vsub.s32 %v1003, %v1005
        %v1007 = vrot.slane %v999, %v1006
        %1009 = vset.pattern.permute.xlu0 0
        %1010 = vperm.xlu0 %1009, %v849
        %v1011 = vpop.permute.xlu0 %1010
        %v1014 = vunpack.c.l.s4 839922192
        %v1015 = vunpack.c.0.s8 %v1014
        %v1016 = vlaneseq
        %v1017 = vshrl.u32 %v1016, 7
        %v1018 = vsub.s32 %v1015, %v1017
        %v1019 = vrot.slane %v1011, %v1018
        %1021 = vset.pattern.permute.xlu0 0
        %1022 = vperm.xlu0 %1021, %v850
        %v1023 = vpop.permute.xlu0 %1022
        %v1026 = vunpack.c.l.s4 839922192
        %v1027 = vunpack.c.0.s8 %v1026
        %v1028 = vlaneseq
        %v1029 = vshrl.u32 %v1028, 7
        %v1030 = vsub.s32 %v1027, %v1029
        %v1031 = vrot.slane %v1023, %v1030
        %1033 = vset.pattern.permute.xlu0 0
        %1034 = vperm.xlu0 %1033, %v851
        %v1035 = vpop.permute.xlu0 %1034
        %v1038 = vunpack.c.l.s4 839922192
        %v1039 = vunpack.c.0.s8 %v1038
        %v1040 = vlaneseq
        %v1041 = vshrl.u32 %v1040, 7
        %v1042 = vsub.s32 %v1039, %v1041
        %v1043 = vrot.slane %v1035, %v1042
        %v1060 = vunpack.c.l.b16 %v863
        %v1061 = vunpack.c.l.b16 %v875
        %v1062 = vunpack.c.l.b16 %v887
        %v1063 = vunpack.c.l.b16 %v899
        %v1064 = vunpack.c.l.b16 %v911
        %v1065 = vunpack.c.l.b16 %v923
        %v1066 = vunpack.c.l.b16 %v935
        %v1067 = vunpack.c.l.b16 %v947
        %v1068 = vunpack.c.l.b16 %v959
        %v1069 = vunpack.c.l.b16 %v971
        %v1070 = vunpack.c.l.b16 %v983
        %v1071 = vunpack.c.l.b16 %v995
        %v1072 = vunpack.c.l.b16 %v1007
        %v1073 = vunpack.c.l.b16 %v1019
        %v1074 = vunpack.c.l.b16 %v1031
        %v1075 = vunpack.c.l.b16 %v1043
        %v1076 = vpack.c.b16 %v1061, %v1060
        %v1077 = vpack.c.b16 %v1063, %v1062
        %v1078 = vpack.c.b16 %v1065, %v1064
        %v1079 = vpack.c.b16 %v1067, %v1066
        %v1080 = vpack.c.b16 %v1069, %v1068
        %v1081 = vpack.c.b16 %v1071, %v1070
        %v1082 = vpack.c.b16 %v1073, %v1072
        %v1083 = vpack.c.b16 %v1075, %v1074
        %v1092 = vmul.bf16 %v827, %v1076
        %v1093 = vmul.bf16 %v828, %v1077
        %v1094 = vmul.bf16 %v829, %v1078
        %v1095 = vmul.bf16 %v830, %v1079
        %v1096 = vmul.bf16 %v831, %v1080
        %v1097 = vmul.bf16 %v832, %v1081
        %v1098 = vmul.bf16 %v833, %v1082
        %v1099 = vmul.bf16 %v834, %v1083
        %v1100 = vld [vmem:[#allocation2 + $0x9] sm:$0xff]
        %v1101 = vld [vmem:[#allocation2 + $0x11] sm:$0xff]
        %v1102 = vld [vmem:[#allocation2 + $0x19] sm:$0xff]
        %v1103 = vld [vmem:[#allocation2 + $0x21] sm:$0xff]
        %v1104 = vld [vmem:[#allocation2 + $0x29] sm:$0xff]
        %v1105 = vld [vmem:[#allocation2 + $0x31] sm:$0xff]
        %v1106 = vld [vmem:[#allocation2 + $0x39] sm:$0xff]
        %v1107 = vld [vmem:[#allocation2 + $0x41] sm:$0xff]
        %v1108 = vld [vmem:[#allocation2 + $0x49] sm:$0xff]
        %v1109 = vld [vmem:[#allocation2 + $0x51] sm:$0xff]
        %v1110 = vld [vmem:[#allocation2 + $0x59] sm:$0xff]
        %v1111 = vld [vmem:[#allocation2 + $0x61] sm:$0xff]
        %v1112 = vld [vmem:[#allocation2 + $0x69] sm:$0xff]
        %v1113 = vld [vmem:[#allocation2 + $0x71] sm:$0xff]
        %v1114 = vld [vmem:[#allocation2 + $0x79] sm:$0xff]
        %v1115 = vld [vmem:[#allocation2 + $0x81] sm:$0xff]
        %v1116 = vpack.c.bf16 %v1101, %v1100
        %v1117 = vpack.c.bf16 %v1103, %v1102
        %v1118 = vpack.c.bf16 %v1105, %v1104
        %v1119 = vpack.c.bf16 %v1107, %v1106
        %v1120 = vpack.c.bf16 %v1109, %v1108
        %v1121 = vpack.c.bf16 %v1111, %v1110
        %v1122 = vpack.c.bf16 %v1113, %v1112
        %v1123 = vpack.c.bf16 %v1115, %v1114
        %s1124 = scalar_lea.vmem %s1, 128
        %v1125 = vld [vmem:[%s1124] sm:$0xf]
        %v1126 = vld [vmem:[%s1124 + $0x4] sm:$0xf]
        %v1127 = vld [vmem:[%s1124 + $0x8] sm:$0xf]
        %v1128 = vld [vmem:[%s1124 + $0xc] sm:$0xf]
        %v1129 = vld [vmem:[%s1124 + $0x10] sm:$0xf]
        %v1130 = vld [vmem:[%s1124 + $0x14] sm:$0xf]
        %v1131 = vld [vmem:[%s1124 + $0x18] sm:$0xf]
        %v1132 = vld [vmem:[%s1124 + $0x1c] sm:$0xf]
        %v1133 = vld [vmem:[%s1124 + $0x20] sm:$0xf]
        %v1134 = vld [vmem:[%s1124 + $0x24] sm:$0xf]
        %v1135 = vld [vmem:[%s1124 + $0x28] sm:$0xf]
        %v1136 = vld [vmem:[%s1124 + $0x2c] sm:$0xf]
        %v1137 = vld [vmem:[%s1124 + $0x30] sm:$0xf]
        %v1138 = vld [vmem:[%s1124 + $0x34] sm:$0xf]
        %v1139 = vld [vmem:[%s1124 + $0x38] sm:$0xf]
        %v1140 = vld [vmem:[%s1124 + $0x3c] sm:$0xf]
        %1142 = vset.pattern.permute.xlu0 0
        %1143 = vperm.xlu0 %1142, %v1125
        %v1144 = vpop.permute.xlu0 %1143
        %v1147 = vunpack.c.l.s4 839922192
        %v1148 = vunpack.c.0.s8 %v1147
        %v1149 = vlaneseq
        %v1150 = vshrl.u32 %v1149, 7
        %v1151 = vsub.s32 %v1148, %v1150
        %v1152 = vrot.slane %v1144, %v1151
        %1154 = vset.pattern.permute.xlu0 0
        %1155 = vperm.xlu0 %1154, %v1126
        %v1156 = vpop.permute.xlu0 %1155
        %v1159 = vunpack.c.l.s4 839922192
        %v1160 = vunpack.c.0.s8 %v1159
        %v1161 = vlaneseq
        %v1162 = vshrl.u32 %v1161, 7
        %v1163 = vsub.s32 %v1160, %v1162
        %v1164 = vrot.slane %v1156, %v1163
        %1166 = vset.pattern.permute.xlu0 0
        %1167 = vperm.xlu0 %1166, %v1127
        %v1168 = vpop.permute.xlu0 %1167
        %v1171 = vunpack.c.l.s4 839922192
        %v1172 = vunpack.c.0.s8 %v1171
        %v1173 = vlaneseq
        %v1174 = vshrl.u32 %v1173, 7
        %v1175 = vsub.s32 %v1172, %v1174
        %v1176 = vrot.slane %v1168, %v1175
        %1178 = vset.pattern.permute.xlu0 0
        %1179 = vperm.xlu0 %1178, %v1128
        %v1180 = vpop.permute.xlu0 %1179
        %v1183 = vunpack.c.l.s4 839922192
        %v1184 = vunpack.c.0.s8 %v1183
        %v1185 = vlaneseq
        %v1186 = vshrl.u32 %v1185, 7
        %v1187 = vsub.s32 %v1184, %v1186
        %v1188 = vrot.slane %v1180, %v1187
        %1190 = vset.pattern.permute.xlu0 0
        %1191 = vperm.xlu0 %1190, %v1129
        %v1192 = vpop.permute.xlu0 %1191
        %v1195 = vunpack.c.l.s4 839922192
        %v1196 = vunpack.c.0.s8 %v1195
        %v1197 = vlaneseq
        %v1198 = vshrl.u32 %v1197, 7
        %v1199 = vsub.s32 %v1196, %v1198
        %v1200 = vrot.slane %v1192, %v1199
        %1202 = vset.pattern.permute.xlu0 0
        %1203 = vperm.xlu0 %1202, %v1130
        %v1204 = vpop.permute.xlu0 %1203
        %v1207 = vunpack.c.l.s4 839922192
        %v1208 = vunpack.c.0.s8 %v1207
        %v1209 = vlaneseq
        %v1210 = vshrl.u32 %v1209, 7
        %v1211 = vsub.s32 %v1208, %v1210
        %v1212 = vrot.slane %v1204, %v1211
        %1214 = vset.pattern.permute.xlu0 0
        %1215 = vperm.xlu0 %1214, %v1131
        %v1216 = vpop.permute.xlu0 %1215
        %v1219 = vunpack.c.l.s4 839922192
        %v1220 = vunpack.c.0.s8 %v1219
        %v1221 = vlaneseq
        %v1222 = vshrl.u32 %v1221, 7
        %v1223 = vsub.s32 %v1220, %v1222
        %v1224 = vrot.slane %v1216, %v1223
        %1226 = vset.pattern.permute.xlu0 0
        %1227 = vperm.xlu0 %1226, %v1132
        %v1228 = vpop.permute.xlu0 %1227
        %v1231 = vunpack.c.l.s4 839922192
        %v1232 = vunpack.c.0.s8 %v1231
        %v1233 = vlaneseq
        %v1234 = vshrl.u32 %v1233, 7
        %v1235 = vsub.s32 %v1232, %v1234
        %v1236 = vrot.slane %v1228, %v1235
        %1238 = vset.pattern.permute.xlu0 0
        %1239 = vperm.xlu0 %1238, %v1133
        %v1240 = vpop.permute.xlu0 %1239
        %v1243 = vunpack.c.l.s4 839922192
        %v1244 = vunpack.c.0.s8 %v1243
        %v1245 = vlaneseq
        %v1246 = vshrl.u32 %v1245, 7
        %v1247 = vsub.s32 %v1244, %v1246
        %v1248 = vrot.slane %v1240, %v1247
        %1250 = vset.pattern.permute.xlu0 0
        %1251 = vperm.xlu0 %1250, %v1134
        %v1252 = vpop.permute.xlu0 %1251
        %v1255 = vunpack.c.l.s4 839922192
        %v1256 = vunpack.c.0.s8 %v1255
        %v1257 = vlaneseq
        %v1258 = vshrl.u32 %v1257, 7
        %v1259 = vsub.s32 %v1256, %v1258
        %v1260 = vrot.slane %v1252, %v1259
        %1262 = vset.pattern.permute.xlu0 0
        %1263 = vperm.xlu0 %1262, %v1135
        %v1264 = vpop.permute.xlu0 %1263
        %v1267 = vunpack.c.l.s4 839922192
        %v1268 = vunpack.c.0.s8 %v1267
        %v1269 = vlaneseq
        %v1270 = vshrl.u32 %v1269, 7
        %v1271 = vsub.s32 %v1268, %v1270
        %v1272 = vrot.slane %v1264, %v1271
        %1274 = vset.pattern.permute.xlu0 0
        %1275 = vperm.xlu0 %1274, %v1136
        %v1276 = vpop.permute.xlu0 %1275
        %v1279 = vunpack.c.l.s4 839922192
        %v1280 = vunpack.c.0.s8 %v1279
        %v1281 = vlaneseq
        %v1282 = vshrl.u32 %v1281, 7
        %v1283 = vsub.s32 %v1280, %v1282
        %v1284 = vrot.slane %v1276, %v1283
        %1286 = vset.pattern.permute.xlu0 0
        %1287 = vperm.xlu0 %1286, %v1137
        %v1288 = vpop.permute.xlu0 %1287
        %v1291 = vunpack.c.l.s4 839922192
        %v1292 = vunpack.c.0.s8 %v1291
        %v1293 = vlaneseq
        %v1294 = vshrl.u32 %v1293, 7
        %v1295 = vsub.s32 %v1292, %v1294
        %v1296 = vrot.slane %v1288, %v1295
        %1298 = vset.pattern.permute.xlu0 0
        %1299 = vperm.xlu0 %1298, %v1138
        %v1300 = vpop.permute.xlu0 %1299
        %v1303 = vunpack.c.l.s4 839922192
        %v1304 = vunpack.c.0.s8 %v1303
        %v1305 = vlaneseq
        %v1306 = vshrl.u32 %v1305, 7
        %v1307 = vsub.s32 %v1304, %v1306
        %v1308 = vrot.slane %v1300, %v1307
        %1310 = vset.pattern.permute.xlu0 0
        %1311 = vperm.xlu0 %1310, %v1139
        %v1312 = vpop.permute.xlu0 %1311
        %v1315 = vunpack.c.l.s4 839922192
        %v1316 = vunpack.c.0.s8 %v1315
        %v1317 = vlaneseq
        %v1318 = vshrl.u32 %v1317, 7
        %v1319 = vsub.s32 %v1316, %v1318
        %v1320 = vrot.slane %v1312, %v1319
        %1322 = vset.pattern.permute.xlu0 0
        %1323 = vperm.xlu0 %1322, %v1140
        %v1324 = vpop.permute.xlu0 %1323
        %v1327 = vunpack.c.l.s4 839922192
        %v1328 = vunpack.c.0.s8 %v1327
        %v1329 = vlaneseq
        %v1330 = vshrl.u32 %v1329, 7
        %v1331 = vsub.s32 %v1328, %v1330
        %v1332 = vrot.slane %v1324, %v1331
        %v1349 = vunpack.c.l.b16 %v1152
        %v1350 = vunpack.c.l.b16 %v1164
        %v1351 = vunpack.c.l.b16 %v1176
        %v1352 = vunpack.c.l.b16 %v1188
        %v1353 = vunpack.c.l.b16 %v1200
        %v1354 = vunpack.c.l.b16 %v1212
        %v1355 = vunpack.c.l.b16 %v1224
        %v1356 = vunpack.c.l.b16 %v1236
        %v1357 = vunpack.c.l.b16 %v1248
        %v1358 = vunpack.c.l.b16 %v1260
        %v1359 = vunpack.c.l.b16 %v1272
        %v1360 = vunpack.c.l.b16 %v1284
        %v1361 = vunpack.c.l.b16 %v1296
        %v1362 = vunpack.c.l.b16 %v1308
        %v1363 = vunpack.c.l.b16 %v1320
        %v1364 = vunpack.c.l.b16 %v1332
        %v1365 = vpack.c.b16 %v1350, %v1349
        %v1366 = vpack.c.b16 %v1352, %v1351
        %v1367 = vpack.c.b16 %v1354, %v1353
        %v1368 = vpack.c.b16 %v1356, %v1355
        %v1369 = vpack.c.b16 %v1358, %v1357
        %v1370 = vpack.c.b16 %v1360, %v1359
        %v1371 = vpack.c.b16 %v1362, %v1361
        %v1372 = vpack.c.b16 %v1364, %v1363
        %v1381 = vmul.bf16 %v1116, %v1365
        %v1382 = vmul.bf16 %v1117, %v1366
        %v1383 = vmul.bf16 %v1118, %v1367
        %v1384 = vmul.bf16 %v1119, %v1368
        %v1385 = vmul.bf16 %v1120, %v1369
        %v1386 = vmul.bf16 %v1121, %v1370
        %v1387 = vmul.bf16 %v1122, %v1371
        %v1388 = vmul.bf16 %v1123, %v1372
        %v1389 = vld [vmem:[#allocation2 + $0xf] sm:$0xff]
        %v1390 = vld [vmem:[#allocation2 + $0x17] sm:$0xff]
        %v1391 = vld [vmem:[#allocation2 + $0x1f] sm:$0xff]
        %v1392 = vld [vmem:[#allocation2 + $0x27] sm:$0xff]
        %v1393 = vld [vmem:[#allocation2 + $0x2f] sm:$0xff]
        %v1394 = vld [vmem:[#allocation2 + $0x37] sm:$0xff]
        %v1395 = vld [vmem:[#allocation2 + $0x3f] sm:$0xff]
        %v1396 = vld [vmem:[#allocation2 + $0x47] sm:$0xff]
        %v1397 = vld [vmem:[#allocation2 + $0x4f] sm:$0xff]
        %v1398 = vld [vmem:[#allocation2 + $0x57] sm:$0xff]
        %v1399 = vld [vmem:[#allocation2 + $0x5f] sm:$0xff]
        %v1400 = vld [vmem:[#allocation2 + $0x67] sm:$0xff]
        %v1401 = vld [vmem:[#allocation2 + $0x6f] sm:$0xff]
        %v1402 = vld [vmem:[#allocation2 + $0x77] sm:$0xff]
        %v1403 = vld [vmem:[#allocation2 + $0x7f] sm:$0xff]
        %v1404 = vld [vmem:[#allocation2 + $0x87] sm:$0xff]
        %v1405 = vpack.c.bf16 %v1390, %v1389
        %v1406 = vpack.c.bf16 %v1392, %v1391
        %v1407 = vpack.c.bf16 %v1394, %v1393
        %v1408 = vpack.c.bf16 %v1396, %v1395
        %v1409 = vpack.c.bf16 %v1398, %v1397
        %v1410 = vpack.c.bf16 %v1400, %v1399
        %v1411 = vpack.c.bf16 %v1402, %v1401
        %v1412 = vpack.c.bf16 %v1404, %v1403
        %s1413 = scalar_lea.vmem %s1, 192
        %v1414 = vld [vmem:[%s1413] sm:$0xf]
        %v1415 = vld [vmem:[%s1413 + $0x4] sm:$0xf]
        %v1416 = vld [vmem:[%s1413 + $0x8] sm:$0xf]
        %v1417 = vld [vmem:[%s1413 + $0xc] sm:$0xf]
        %v1418 = vld [vmem:[%s1413 + $0x10] sm:$0xf]
        %v1419 = vld [vmem:[%s1413 + $0x14] sm:$0xf]
        %v1420 = vld [vmem:[%s1413 + $0x18] sm:$0xf]
        %v1421 = vld [vmem:[%s1413 + $0x1c] sm:$0xf]
        %v1422 = vld [vmem:[%s1413 + $0x20] sm:$0xf]
        %v1423 = vld [vmem:[%s1413 + $0x24] sm:$0xf]
        %v1424 = vld [vmem:[%s1413 + $0x28] sm:$0xf]
        %v1425 = vld [vmem:[%s1413 + $0x2c] sm:$0xf]
        %v1426 = vld [vmem:[%s1413 + $0x30] sm:$0xf]
        %v1427 = vld [vmem:[%s1413 + $0x34] sm:$0xf]
        %v1428 = vld [vmem:[%s1413 + $0x38] sm:$0xf]
        %v1429 = vld [vmem:[%s1413 + $0x3c] sm:$0xf]
        %1431 = vset.pattern.permute.xlu0 0
        %1432 = vperm.xlu0 %1431, %v1414
        %v1433 = vpop.permute.xlu0 %1432
        %v1436 = vunpack.c.l.s4 839922192
        %v1437 = vunpack.c.0.s8 %v1436
        %v1438 = vlaneseq
        %v1439 = vshrl.u32 %v1438, 7
        %v1440 = vsub.s32 %v1437, %v1439
        %v1441 = vrot.slane %v1433, %v1440
        %1443 = vset.pattern.permute.xlu0 0
        %1444 = vperm.xlu0 %1443, %v1415
        %v1445 = vpop.permute.xlu0 %1444
        %v1448 = vunpack.c.l.s4 839922192
        %v1449 = vunpack.c.0.s8 %v1448
        %v1450 = vlaneseq
        %v1451 = vshrl.u32 %v1450, 7
        %v1452 = vsub.s32 %v1449, %v1451
        %v1453 = vrot.slane %v1445, %v1452
        %1455 = vset.pattern.permute.xlu0 0
        %1456 = vperm.xlu0 %1455, %v1416
        %v1457 = vpop.permute.xlu0 %1456
        %v1460 = vunpack.c.l.s4 839922192
        %v1461 = vunpack.c.0.s8 %v1460
        %v1462 = vlaneseq
        %v1463 = vshrl.u32 %v1462, 7
        %v1464 = vsub.s32 %v1461, %v1463
        %v1465 = vrot.slane %v1457, %v1464
        %1467 = vset.pattern.permute.xlu0 0
        %1468 = vperm.xlu0 %1467, %v1417
        %v1469 = vpop.permute.xlu0 %1468
        %v1472 = vunpack.c.l.s4 839922192
        %v1473 = vunpack.c.0.s8 %v1472
        %v1474 = vlaneseq
        %v1475 = vshrl.u32 %v1474, 7
        %v1476 = vsub.s32 %v1473, %v1475
        %v1477 = vrot.slane %v1469, %v1476
        %1479 = vset.pattern.permute.xlu0 0
        %1480 = vperm.xlu0 %1479, %v1418
        %v1481 = vpop.permute.xlu0 %1480
        %v1484 = vunpack.c.l.s4 839922192
        %v1485 = vunpack.c.0.s8 %v1484
        %v1486 = vlaneseq
        %v1487 = vshrl.u32 %v1486, 7
        %v1488 = vsub.s32 %v1485, %v1487
        %v1489 = vrot.slane %v1481, %v1488
        %1491 = vset.pattern.permute.xlu0 0
        %1492 = vperm.xlu0 %1491, %v1419
        %v1493 = vpop.permute.xlu0 %1492
        %v1496 = vunpack.c.l.s4 839922192
        %v1497 = vunpack.c.0.s8 %v1496
        %v1498 = vlaneseq
        %v1499 = vshrl.u32 %v1498, 7
        %v1500 = vsub.s32 %v1497, %v1499
        %v1501 = vrot.slane %v1493, %v1500
        %1503 = vset.pattern.permute.xlu0 0
        %1504 = vperm.xlu0 %1503, %v1420
        %v1505 = vpop.permute.xlu0 %1504
        %v1508 = vunpack.c.l.s4 839922192
        %v1509 = vunpack.c.0.s8 %v1508
        %v1510 = vlaneseq
        %v1511 = vshrl.u32 %v1510, 7
        %v1512 = vsub.s32 %v1509, %v1511
        %v1513 = vrot.slane %v1505, %v1512
        %1515 = vset.pattern.permute.xlu0 0
        %1516 = vperm.xlu0 %1515, %v1421
        %v1517 = vpop.permute.xlu0 %1516
        %v1520 = vunpack.c.l.s4 839922192
        %v1521 = vunpack.c.0.s8 %v1520
        %v1522 = vlaneseq
        %v1523 = vshrl.u32 %v1522, 7
        %v1524 = vsub.s32 %v1521, %v1523
        %v1525 = vrot.slane %v1517, %v1524
        %1527 = vset.pattern.permute.xlu0 0
        %1528 = vperm.xlu0 %1527, %v1422
        %v1529 = vpop.permute.xlu0 %1528
        %v1532 = vunpack.c.l.s4 839922192
        %v1533 = vunpack.c.0.s8 %v1532
        %v1534 = vlaneseq
        %v1535 = vshrl.u32 %v1534, 7
        %v1536 = vsub.s32 %v1533, %v1535
        %v1537 = vrot.slane %v1529, %v1536
        %1539 = vset.pattern.permute.xlu0 0
        %1540 = vperm.xlu0 %1539, %v1423
        %v1541 = vpop.permute.xlu0 %1540
        %v1544 = vunpack.c.l.s4 839922192
        %v1545 = vunpack.c.0.s8 %v1544
        %v1546 = vlaneseq
        %v1547 = vshrl.u32 %v1546, 7
        %v1548 = vsub.s32 %v1545, %v1547
        %v1549 = vrot.slane %v1541, %v1548
        %1551 = vset.pattern.permute.xlu0 0
        %1552 = vperm.xlu0 %1551, %v1424
        %v1553 = vpop.permute.xlu0 %1552
        %v1556 = vunpack.c.l.s4 839922192
        %v1557 = vunpack.c.0.s8 %v1556
        %v1558 = vlaneseq
        %v1559 = vshrl.u32 %v1558, 7
        %v1560 = vsub.s32 %v1557, %v1559
        %v1561 = vrot.slane %v1553, %v1560
        %1563 = vset.pattern.permute.xlu0 0
        %1564 = vperm.xlu0 %1563, %v1425
        %v1565 = vpop.permute.xlu0 %1564
        %v1568 = vunpack.c.l.s4 839922192
        %v1569 = vunpack.c.0.s8 %v1568
        %v1570 = vlaneseq
        %v1571 = vshrl.u32 %v1570, 7
        %v1572 = vsub.s32 %v1569, %v1571
        %v1573 = vrot.slane %v1565, %v1572
        %1575 = vset.pattern.permute.xlu0 0
        %1576 = vperm.xlu0 %1575, %v1426
        %v1577 = vpop.permute.xlu0 %1576
        %v1580 = vunpack.c.l.s4 839922192
        %v1581 = vunpack.c.0.s8 %v1580
        %v1582 = vlaneseq
        %v1583 = vshrl.u32 %v1582, 7
        %v1584 = vsub.s32 %v1581, %v1583
        %v1585 = vrot.slane %v1577, %v1584
        %1587 = vset.pattern.permute.xlu0 0
        %1588 = vperm.xlu0 %1587, %v1427
        %v1589 = vpop.permute.xlu0 %1588
        %v1592 = vunpack.c.l.s4 839922192
        %v1593 = vunpack.c.0.s8 %v1592
        %v1594 = vlaneseq
        %v1595 = vshrl.u32 %v1594, 7
        %v1596 = vsub.s32 %v1593, %v1595
        %v1597 = vrot.slane %v1589, %v1596
        %1599 = vset.pattern.permute.xlu0 0
        %1600 = vperm.xlu0 %1599, %v1428
        %v1601 = vpop.permute.xlu0 %1600
        %v1604 = vunpack.c.l.s4 839922192
        %v1605 = vunpack.c.0.s8 %v1604
        %v1606 = vlaneseq
        %v1607 = vshrl.u32 %v1606, 7
        %v1608 = vsub.s32 %v1605, %v1607
        %v1609 = vrot.slane %v1601, %v1608
        %1611 = vset.pattern.permute.xlu0 0
        %1612 = vperm.xlu0 %1611, %v1429
        %v1613 = vpop.permute.xlu0 %1612
        %v1616 = vunpack.c.l.s4 839922192
        %v1617 = vunpack.c.0.s8 %v1616
        %v1618 = vlaneseq
        %v1619 = vshrl.u32 %v1618, 7
        %v1620 = vsub.s32 %v1617, %v1619
        %v1621 = vrot.slane %v1613, %v1620
        %v1638 = vunpack.c.l.b16 %v1441
        %v1639 = vunpack.c.l.b16 %v1453
        %v1640 = vunpack.c.l.b16 %v1465
        %v1641 = vunpack.c.l.b16 %v1477
        %v1642 = vunpack.c.l.b16 %v1489
        %v1643 = vunpack.c.l.b16 %v1501
        %v1644 = vunpack.c.l.b16 %v1513
        %v1645 = vunpack.c.l.b16 %v1525
        %v1646 = vunpack.c.l.b16 %v1537
        %v1647 = vunpack.c.l.b16 %v1549
        %v1648 = vunpack.c.l.b16 %v1561
        %v1649 = vunpack.c.l.b16 %v1573
        %v1650 = vunpack.c.l.b16 %v1585
        %v1651 = vunpack.c.l.b16 %v1597
        %v1652 = vunpack.c.l.b16 %v1609
        %v1653 = vunpack.c.l.b16 %v1621
        %v1654 = vpack.c.b16 %v1639, %v1638
        %v1655 = vpack.c.b16 %v1641, %v1640
        %v1656 = vpack.c.b16 %v1643, %v1642
        %v1657 = vpack.c.b16 %v1645, %v1644
        %v1658 = vpack.c.b16 %v1647, %v1646
        %v1659 = vpack.c.b16 %v1649, %v1648
        %v1660 = vpack.c.b16 %v1651, %v1650
        %v1661 = vpack.c.b16 %v1653, %v1652
        %v1670 = vmul.bf16 %v1405, %v1654
        %v1671 = vmul.bf16 %v1406, %v1655
        %v1672 = vmul.bf16 %v1407, %v1656
        %v1673 = vmul.bf16 %v1408, %v1657
        %v1674 = vmul.bf16 %v1409, %v1658
        %v1675 = vmul.bf16 %v1410, %v1659
        %v1676 = vmul.bf16 %v1411, %v1660
        %v1677 = vmul.bf16 %v1412, %v1661
        %v1678 = vld [vmem:[#allocation2 + $0x10] sm:$0xff]
        %v1679 = vld [vmem:[#allocation2 + $0x18] sm:$0xff]
        %v1680 = vld [vmem:[#allocation2 + $0x20] sm:$0xff]
        %v1681 = vld [vmem:[#allocation2 + $0x28] sm:$0xff]
        %v1682 = vld [vmem:[#allocation2 + $0x30] sm:$0xff]
        %v1683 = vld [vmem:[#allocation2 + $0x38] sm:$0xff]
        %v1684 = vld [vmem:[#allocation2 + $0x40] sm:$0xff]
        %v1685 = vld [vmem:[#allocation2 + $0x48] sm:$0xff]
        %v1686 = vld [vmem:[#allocation2 + $0x50] sm:$0xff]
        %v1687 = vld [vmem:[#allocation2 + $0x58] sm:$0xff]
        %v1688 = vld [vmem:[#allocation2 + $0x60] sm:$0xff]
        %v1689 = vld [vmem:[#allocation2 + $0x68] sm:$0xff]
        %v1690 = vld [vmem:[#allocation2 + $0x70] sm:$0xff]
        %v1691 = vld [vmem:[#allocation2 + $0x78] sm:$0xff]
        %v1692 = vld [vmem:[#allocation2 + $0x80] sm:$0xff]
        %v1693 = vld [vmem:[#allocation2 + $0x88] sm:$0xff]
        %v1694 = vpack.c.bf16 %v1679, %v1678
        %v1695 = vpack.c.bf16 %v1681, %v1680
        %v1696 = vpack.c.bf16 %v1683, %v1682
        %v1697 = vpack.c.bf16 %v1685, %v1684
        %v1698 = vpack.c.bf16 %v1687, %v1686
        %v1699 = vpack.c.bf16 %v1689, %v1688
        %v1700 = vpack.c.bf16 %v1691, %v1690
        %v1701 = vpack.c.bf16 %v1693, %v1692
        %v1702 = vld [vmem:[#allocation2 + $0x11] sm:$0xff]
        %v1703 = vld [vmem:[#allocation2 + $0x19] sm:$0xff]
        %v1704 = vld [vmem:[#allocation2 + $0x21] sm:$0xff]
        %v1705 = vld [vmem:[#allocation2 + $0x29] sm:$0xff]
        %v1706 = vld [vmem:[#allocation2 + $0x31] sm:$0xff]
        %v1707 = vld [vmem:[#allocation2 + $0x39] sm:$0xff]
        %v1708 = vld [vmem:[#allocation2 + $0x41] sm:$0xff]
        %v1709 = vld [vmem:[#allocation2 + $0x49] sm:$0xff]
        %v1710 = vld [vmem:[#allocation2 + $0x51] sm:$0xff]
        %v1711 = vld [vmem:[#allocation2 + $0x59] sm:$0xff]
        %v1712 = vld [vmem:[#allocation2 + $0x61] sm:$0xff]
        %v1713 = vld [vmem:[#allocation2 + $0x69] sm:$0xff]
        %v1714 = vld [vmem:[#allocation2 + $0x71] sm:$0xff]
        %v1715 = vld [vmem:[#allocation2 + $0x79] sm:$0xff]
        %v1716 = vld [vmem:[#allocation2 + $0x81] sm:$0xff]
        %v1717 = vld [vmem:[#allocation2 + $0x89] sm:$0xff]
        %v1718 = vpack.c.bf16 %v1703, %v1702
        %v1719 = vpack.c.bf16 %v1705, %v1704
        %v1720 = vpack.c.bf16 %v1707, %v1706
        %v1721 = vpack.c.bf16 %v1709, %v1708
        %v1722 = vpack.c.bf16 %v1711, %v1710
        %v1723 = vpack.c.bf16 %v1713, %v1712
        %v1724 = vpack.c.bf16 %v1715, %v1714
        %v1725 = vpack.c.bf16 %v1717, %v1716
        %s1726 = scalar_lea.vmem %s1, 320
        %v1727 = vld [vmem:[%s1726] sm:$0xf]
        %v1728 = vld [vmem:[%s1726 + $0x4] sm:$0xf]
        %v1729 = vld [vmem:[%s1726 + $0x8] sm:$0xf]
        %v1730 = vld [vmem:[%s1726 + $0xc] sm:$0xf]
        %v1731 = vld [vmem:[%s1726 + $0x10] sm:$0xf]
        %v1732 = vld [vmem:[%s1726 + $0x14] sm:$0xf]
        %v1733 = vld [vmem:[%s1726 + $0x18] sm:$0xf]
        %v1734 = vld [vmem:[%s1726 + $0x1c] sm:$0xf]
        %v1735 = vld [vmem:[%s1726 + $0x20] sm:$0xf]
        %v1736 = vld [vmem:[%s1726 + $0x24] sm:$0xf]
        %v1737 = vld [vmem:[%s1726 + $0x28] sm:$0xf]
        %v1738 = vld [vmem:[%s1726 + $0x2c] sm:$0xf]
        %v1739 = vld [vmem:[%s1726 + $0x30] sm:$0xf]
        %v1740 = vld [vmem:[%s1726 + $0x34] sm:$0xf]
        %v1741 = vld [vmem:[%s1726 + $0x38] sm:$0xf]
        %v1742 = vld [vmem:[%s1726 + $0x3c] sm:$0xf]
        %1744 = vset.pattern.permute.xlu0 0
        %1745 = vperm.xlu0 %1744, %v1727
        %v1746 = vpop.permute.xlu0 %1745
        %v1749 = vunpack.c.l.s4 839922192
        %v1750 = vunpack.c.0.s8 %v1749
        %v1751 = vlaneseq
        %v1752 = vshrl.u32 %v1751, 7
        %v1753 = vsub.s32 %v1750, %v1752
        %v1754 = vrot.slane %v1746, %v1753
        %1756 = vset.pattern.permute.xlu0 0
        %1757 = vperm.xlu0 %1756, %v1728
        %v1758 = vpop.permute.xlu0 %1757
        %v1761 = vunpack.c.l.s4 839922192
        %v1762 = vunpack.c.0.s8 %v1761
        %v1763 = vlaneseq
        %v1764 = vshrl.u32 %v1763, 7
        %v1765 = vsub.s32 %v1762, %v1764
        %v1766 = vrot.slane %v1758, %v1765
        %1768 = vset.pattern.permute.xlu0 0
        %1769 = vperm.xlu0 %1768, %v1729
        %v1770 = vpop.permute.xlu0 %1769
        %v1773 = vunpack.c.l.s4 839922192
        %v1774 = vunpack.c.0.s8 %v1773
        %v1775 = vlaneseq
        %v1776 = vshrl.u32 %v1775, 7
        %v1777 = vsub.s32 %v1774, %v1776
        %v1778 = vrot.slane %v1770, %v1777
        %1780 = vset.pattern.permute.xlu0 0
        %1781 = vperm.xlu0 %1780, %v1730
        %v1782 = vpop.permute.xlu0 %1781
        %v1785 = vunpack.c.l.s4 839922192
        %v1786 = vunpack.c.0.s8 %v1785
        %v1787 = vlaneseq
        %v1788 = vshrl.u32 %v1787, 7
        %v1789 = vsub.s32 %v1786, %v1788
        %v1790 = vrot.slane %v1782, %v1789
        %1792 = vset.pattern.permute.xlu0 0
        %1793 = vperm.xlu0 %1792, %v1731
        %v1794 = vpop.permute.xlu0 %1793
        %v1797 = vunpack.c.l.s4 839922192
        %v1798 = vunpack.c.0.s8 %v1797
        %v1799 = vlaneseq
        %v1800 = vshrl.u32 %v1799, 7
        %v1801 = vsub.s32 %v1798, %v1800
        %v1802 = vrot.slane %v1794, %v1801
        %1804 = vset.pattern.permute.xlu0 0
        %1805 = vperm.xlu0 %1804, %v1732
        %v1806 = vpop.permute.xlu0 %1805
        %v1809 = vunpack.c.l.s4 839922192
        %v1810 = vunpack.c.0.s8 %v1809
        %v1811 = vlaneseq
        %v1812 = vshrl.u32 %v1811, 7
        %v1813 = vsub.s32 %v1810, %v1812
        %v1814 = vrot.slane %v1806, %v1813
        %1816 = vset.pattern.permute.xlu0 0
        %1817 = vperm.xlu0 %1816, %v1733
        %v1818 = vpop.permute.xlu0 %1817
        %v1821 = vunpack.c.l.s4 839922192
        %v1822 = vunpack.c.0.s8 %v1821
        %v1823 = vlaneseq
        %v1824 = vshrl.u32 %v1823, 7
        %v1825 = vsub.s32 %v1822, %v1824
        %v1826 = vrot.slane %v1818, %v1825
        %1828 = vset.pattern.permute.xlu0 0
        %1829 = vperm.xlu0 %1828, %v1734
        %v1830 = vpop.permute.xlu0 %1829
        %v1833 = vunpack.c.l.s4 839922192
        %v1834 = vunpack.c.0.s8 %v1833
        %v1835 = vlaneseq
        %v1836 = vshrl.u32 %v1835, 7
        %v1837 = vsub.s32 %v1834, %v1836
        %v1838 = vrot.slane %v1830, %v1837
        %1840 = vset.pattern.permute.xlu0 0
        %1841 = vperm.xlu0 %1840, %v1735
        %v1842 = vpop.permute.xlu0 %1841
        %v1845 = vunpack.c.l.s4 839922192
        %v1846 = vunpack.c.0.s8 %v1845
        %v1847 = vlaneseq
        %v1848 = vshrl.u32 %v1847, 7
        %v1849 = vsub.s32 %v1846, %v1848
        %v1850 = vrot.slane %v1842, %v1849
        %1852 = vset.pattern.permute.xlu0 0
        %1853 = vperm.xlu0 %1852, %v1736
        %v1854 = vpop.permute.xlu0 %1853
        %v1857 = vunpack.c.l.s4 839922192
        %v1858 = vunpack.c.0.s8 %v1857
        %v1859 = vlaneseq
        %v1860 = vshrl.u32 %v1859, 7
        %v1861 = vsub.s32 %v1858, %v1860
        %v1862 = vrot.slane %v1854, %v1861
        %1864 = vset.pattern.permute.xlu0 0
        %1865 = vperm.xlu0 %1864, %v1737
        %v1866 = vpop.permute.xlu0 %1865
        %v1869 = vunpack.c.l.s4 839922192
        %v1870 = vunpack.c.0.s8 %v1869
        %v1871 = vlaneseq
        %v1872 = vshrl.u32 %v1871, 7
        %v1873 = vsub.s32 %v1870, %v1872
        %v1874 = vrot.slane %v1866, %v1873
        %1876 = vset.pattern.permute.xlu0 0
        %1877 = vperm.xlu0 %1876, %v1738
        %v1878 = vpop.permute.xlu0 %1877
        %v1881 = vunpack.c.l.s4 839922192
        %v1882 = vunpack.c.0.s8 %v1881
        %v1883 = vlaneseq
        %v1884 = vshrl.u32 %v1883, 7
        %v1885 = vsub.s32 %v1882, %v1884
        %v1886 = vrot.slane %v1878, %v1885
        %1888 = vset.pattern.permute.xlu0 0
        %1889 = vperm.xlu0 %1888, %v1739
        %v1890 = vpop.permute.xlu0 %1889
        %v1893 = vunpack.c.l.s4 839922192
        %v1894 = vunpack.c.0.s8 %v1893
        %v1895 = vlaneseq
        %v1896 = vshrl.u32 %v1895, 7
        %v1897 = vsub.s32 %v1894, %v1896
        %v1898 = vrot.slane %v1890, %v1897
        %1900 = vset.pattern.permute.xlu0 0
        %1901 = vperm.xlu0 %1900, %v1740
        %v1902 = vpop.permute.xlu0 %1901
        %v1905 = vunpack.c.l.s4 839922192
        %v1906 = vunpack.c.0.s8 %v1905
        %v1907 = vlaneseq
        %v1908 = vshrl.u32 %v1907, 7
        %v1909 = vsub.s32 %v1906, %v1908
        %v1910 = vrot.slane %v1902, %v1909
        %1912 = vset.pattern.permute.xlu0 0
        %1913 = vperm.xlu0 %1912, %v1741
        %v1914 = vpop.permute.xlu0 %1913
        %v1917 = vunpack.c.l.s4 839922192
        %v1918 = vunpack.c.0.s8 %v1917
        %v1919 = vlaneseq
        %v1920 = vshrl.u32 %v1919, 7
        %v1921 = vsub.s32 %v1918, %v1920
        %v1922 = vrot.slane %v1914, %v1921
        %1924 = vset.pattern.permute.xlu0 0
        %1925 = vperm.xlu0 %1924, %v1742
        %v1926 = vpop.permute.xlu0 %1925
        %v1929 = vunpack.c.l.s4 839922192
        %v1930 = vunpack.c.0.s8 %v1929
        %v1931 = vlaneseq
        %v1932 = vshrl.u32 %v1931, 7
        %v1933 = vsub.s32 %v1930, %v1932
        %v1934 = vrot.slane %v1926, %v1933
        %v1951 = vunpack.c.l.b16 %v1754
        %v1952 = vunpack.c.l.b16 %v1766
        %v1953 = vunpack.c.l.b16 %v1778
        %v1954 = vunpack.c.l.b16 %v1790
        %v1955 = vunpack.c.l.b16 %v1802
        %v1956 = vunpack.c.l.b16 %v1814
        %v1957 = vunpack.c.l.b16 %v1826
        %v1958 = vunpack.c.l.b16 %v1838
        %v1959 = vunpack.c.l.b16 %v1850
        %v1960 = vunpack.c.l.b16 %v1862
        %v1961 = vunpack.c.l.b16 %v1874
        %v1962 = vunpack.c.l.b16 %v1886
        %v1963 = vunpack.c.l.b16 %v1898
        %v1964 = vunpack.c.l.b16 %v1910
        %v1965 = vunpack.c.l.b16 %v1922
        %v1966 = vunpack.c.l.b16 %v1934
        %v1967 = vpack.c.b16 %v1952, %v1951
        %v1968 = vpack.c.b16 %v1954, %v1953
        %v1969 = vpack.c.b16 %v1956, %v1955
        %v1970 = vpack.c.b16 %v1958, %v1957
        %v1971 = vpack.c.b16 %v1960, %v1959
        %v1972 = vpack.c.b16 %v1962, %v1961
        %v1973 = vpack.c.b16 %v1964, %v1963
        %v1974 = vpack.c.b16 %v1966, %v1965
        %v1983 = vmul.bf16 %v1718, %v1967
        %v1984 = vmul.bf16 %v1719, %v1968
        %v1985 = vmul.bf16 %v1720, %v1969
        %v1986 = vmul.bf16 %v1721, %v1970
        %v1987 = vmul.bf16 %v1722, %v1971
        %v1988 = vmul.bf16 %v1723, %v1972
        %v1989 = vmul.bf16 %v1724, %v1973
        %v1990 = vmul.bf16 %v1725, %v1974
        %v1991 = vld [vmem:[#allocation2 + $0x17] sm:$0xff]
        %v1992 = vld [vmem:[#allocation2 + $0x1f] sm:$0xff]
        %v1993 = vld [vmem:[#allocation2 + $0x27] sm:$0xff]
        %v1994 = vld [vmem:[#allocation2 + $0x2f] sm:$0xff]
        %v1995 = vld [vmem:[#allocation2 + $0x37] sm:$0xff]
        %v1996 = vld [vmem:[#allocation2 + $0x3f] sm:$0xff]
        %v1997 = vld [vmem:[#allocation2 + $0x47] sm:$0xff]
        %v1998 = vld [vmem:[#allocation2 + $0x4f] sm:$0xff]
        %v1999 = vld [vmem:[#allocation2 + $0x57] sm:$0xff]
        %v2000 = vld [vmem:[#allocation2 + $0x5f] sm:$0xff]
        %v2001 = vld [vmem:[#allocation2 + $0x67] sm:$0xff]
        %v2002 = vld [vmem:[#allocation2 + $0x6f] sm:$0xff]
        %v2003 = vld [vmem:[#allocation2 + $0x77] sm:$0xff]
        %v2004 = vld [vmem:[#allocation2 + $0x7f] sm:$0xff]
        %v2005 = vld [vmem:[#allocation2 + $0x87] sm:$0xff]
        %v2006 = vld [vmem:[#allocation2 + $0x8f] sm:$0xff]
        %v2007 = vpack.c.bf16 %v1992, %v1991
        %v2008 = vpack.c.bf16 %v1994, %v1993
        %v2009 = vpack.c.bf16 %v1996, %v1995
        %v2010 = vpack.c.bf16 %v1998, %v1997
        %v2011 = vpack.c.bf16 %v2000, %v1999
        %v2012 = vpack.c.bf16 %v2002, %v2001
        %v2013 = vpack.c.bf16 %v2004, %v2003
        %v2014 = vpack.c.bf16 %v2006, %v2005
        %s2015 = scalar_lea.vmem %s1, 384
        %v2016 = vld [vmem:[%s2015] sm:$0xf]
        %v2017 = vld [vmem:[%s2015 + $0x4] sm:$0xf]
        %v2018 = vld [vmem:[%s2015 + $0x8] sm:$0xf]
        %v2019 = vld [vmem:[%s2015 + $0xc] sm:$0xf]
        %v2020 = vld [vmem:[%s2015 + $0x10] sm:$0xf]
        %v2021 = vld [vmem:[%s2015 + $0x14] sm:$0xf]
        %v2022 = vld [vmem:[%s2015 + $0x18] sm:$0xf]
        %v2023 = vld [vmem:[%s2015 + $0x1c] sm:$0xf]
        %v2024 = vld [vmem:[%s2015 + $0x20] sm:$0xf]
        %v2025 = vld [vmem:[%s2015 + $0x24] sm:$0xf]
        %v2026 = vld [vmem:[%s2015 + $0x28] sm:$0xf]
        %v2027 = vld [vmem:[%s2015 + $0x2c] sm:$0xf]
        %v2028 = vld [vmem:[%s2015 + $0x30] sm:$0xf]
        %v2029 = vld [vmem:[%s2015 + $0x34] sm:$0xf]
        %v2030 = vld [vmem:[%s2015 + $0x38] sm:$0xf]
        %v2031 = vld [vmem:[%s2015 + $0x3c] sm:$0xf]
        %2033 = vset.pattern.permute.xlu0 0
        %2034 = vperm.xlu0 %2033, %v2016
        %v2035 = vpop.permute.xlu0 %2034
        %v2038 = vunpack.c.l.s4 839922192
        %v2039 = vunpack.c.0.s8 %v2038
        %v2040 = vlaneseq
        %v2041 = vshrl.u32 %v2040, 7
        %v2042 = vsub.s32 %v2039, %v2041
        %v2043 = vrot.slane %v2035, %v2042
        %2045 = vset.pattern.permute.xlu0 0
        %2046 = vperm.xlu0 %2045, %v2017
        %v2047 = vpop.permute.xlu0 %2046
        %v2050 = vunpack.c.l.s4 839922192
        %v2051 = vunpack.c.0.s8 %v2050
        %v2052 = vlaneseq
        %v2053 = vshrl.u32 %v2052, 7
        %v2054 = vsub.s32 %v2051, %v2053
        %v2055 = vrot.slane %v2047, %v2054
        %2057 = vset.pattern.permute.xlu0 0
        %2058 = vperm.xlu0 %2057, %v2018
        %v2059 = vpop.permute.xlu0 %2058
        %v2062 = vunpack.c.l.s4 839922192
        %v2063 = vunpack.c.0.s8 %v2062
        %v2064 = vlaneseq
        %v2065 = vshrl.u32 %v2064, 7
        %v2066 = vsub.s32 %v2063, %v2065
        %v2067 = vrot.slane %v2059, %v2066
        %2069 = vset.pattern.permute.xlu0 0
        %2070 = vperm.xlu0 %2069, %v2019
        %v2071 = vpop.permute.xlu0 %2070
        %v2074 = vunpack.c.l.s4 839922192
        %v2075 = vunpack.c.0.s8 %v2074
        %v2076 = vlaneseq
        %v2077 = vshrl.u32 %v2076, 7
        %v2078 = vsub.s32 %v2075, %v2077
        %v2079 = vrot.slane %v2071, %v2078
        %2081 = vset.pattern.permute.xlu0 0
        %2082 = vperm.xlu0 %2081, %v2020
        %v2083 = vpop.permute.xlu0 %2082
        %v2086 = vunpack.c.l.s4 839922192
        %v2087 = vunpack.c.0.s8 %v2086
        %v2088 = vlaneseq
        %v2089 = vshrl.u32 %v2088, 7
        %v2090 = vsub.s32 %v2087, %v2089
        %v2091 = vrot.slane %v2083, %v2090
        %2093 = vset.pattern.permute.xlu0 0
        %2094 = vperm.xlu0 %2093, %v2021
        %v2095 = vpop.permute.xlu0 %2094
        %v2098 = vunpack.c.l.s4 839922192
        %v2099 = vunpack.c.0.s8 %v2098
        %v2100 = vlaneseq
        %v2101 = vshrl.u32 %v2100, 7
        %v2102 = vsub.s32 %v2099, %v2101
        %v2103 = vrot.slane %v2095, %v2102
        %2105 = vset.pattern.permute.xlu0 0
        %2106 = vperm.xlu0 %2105, %v2022
        %v2107 = vpop.permute.xlu0 %2106
        %v2110 = vunpack.c.l.s4 839922192
        %v2111 = vunpack.c.0.s8 %v2110
        %v2112 = vlaneseq
        %v2113 = vshrl.u32 %v2112, 7
        %v2114 = vsub.s32 %v2111, %v2113
        %v2115 = vrot.slane %v2107, %v2114
        %2117 = vset.pattern.permute.xlu0 0
        %2118 = vperm.xlu0 %2117, %v2023
        %v2119 = vpop.permute.xlu0 %2118
        %v2122 = vunpack.c.l.s4 839922192
        %v2123 = vunpack.c.0.s8 %v2122
        %v2124 = vlaneseq
        %v2125 = vshrl.u32 %v2124, 7
        %v2126 = vsub.s32 %v2123, %v2125
        %v2127 = vrot.slane %v2119, %v2126
        %2129 = vset.pattern.permute.xlu0 0
        %2130 = vperm.xlu0 %2129, %v2024
        %v2131 = vpop.permute.xlu0 %2130
        %v2134 = vunpack.c.l.s4 839922192
        %v2135 = vunpack.c.0.s8 %v2134
        %v2136 = vlaneseq
        %v2137 = vshrl.u32 %v2136, 7
        %v2138 = vsub.s32 %v2135, %v2137
        %v2139 = vrot.slane %v2131, %v2138
        %2141 = vset.pattern.permute.xlu0 0
        %2142 = vperm.xlu0 %2141, %v2025
        %v2143 = vpop.permute.xlu0 %2142
        %v2146 = vunpack.c.l.s4 839922192
        %v2147 = vunpack.c.0.s8 %v2146
        %v2148 = vlaneseq
        %v2149 = vshrl.u32 %v2148, 7
        %v2150 = vsub.s32 %v2147, %v2149
        %v2151 = vrot.slane %v2143, %v2150
        %2153 = vset.pattern.permute.xlu0 0
        %2154 = vperm.xlu0 %2153, %v2026
        %v2155 = vpop.permute.xlu0 %2154
        %v2158 = vunpack.c.l.s4 839922192
        %v2159 = vunpack.c.0.s8 %v2158
        %v2160 = vlaneseq
        %v2161 = vshrl.u32 %v2160, 7
        %v2162 = vsub.s32 %v2159, %v2161
        %v2163 = vrot.slane %v2155, %v2162
        %2165 = vset.pattern.permute.xlu0 0
        %2166 = vperm.xlu0 %2165, %v2027
        %v2167 = vpop.permute.xlu0 %2166
        %v2170 = vunpack.c.l.s4 839922192
        %v2171 = vunpack.c.0.s8 %v2170
        %v2172 = vlaneseq
        %v2173 = vshrl.u32 %v2172, 7
        %v2174 = vsub.s32 %v2171, %v2173
        %v2175 = vrot.slane %v2167, %v2174
        %2177 = vset.pattern.permute.xlu0 0
        %2178 = vperm.xlu0 %2177, %v2028
        %v2179 = vpop.permute.xlu0 %2178
        %v2182 = vunpack.c.l.s4 839922192
        %v2183 = vunpack.c.0.s8 %v2182
        %v2184 = vlaneseq
        %v2185 = vshrl.u32 %v2184, 7
        %v2186 = vsub.s32 %v2183, %v2185
        %v2187 = vrot.slane %v2179, %v2186
        %2189 = vset.pattern.permute.xlu0 0
        %2190 = vperm.xlu0 %2189, %v2029
        %v2191 = vpop.permute.xlu0 %2190
        %v2194 = vunpack.c.l.s4 839922192
        %v2195 = vunpack.c.0.s8 %v2194
        %v2196 = vlaneseq
        %v2197 = vshrl.u32 %v2196, 7
        %v2198 = vsub.s32 %v2195, %v2197
        %v2199 = vrot.slane %v2191, %v2198
        %2201 = vset.pattern.permute.xlu0 0
        %2202 = vperm.xlu0 %2201, %v2030
        %v2203 = vpop.permute.xlu0 %2202
        %v2206 = vunpack.c.l.s4 839922192
        %v2207 = vunpack.c.0.s8 %v2206
        %v2208 = vlaneseq
        %v2209 = vshrl.u32 %v2208, 7
        %v2210 = vsub.s32 %v2207, %v2209
        %v2211 = vrot.slane %v2203, %v2210
        %2213 = vset.pattern.permute.xlu0 0
        %2214 = vperm.xlu0 %2213, %v2031
        %v2215 = vpop.permute.xlu0 %2214
        %v2218 = vunpack.c.l.s4 839922192
        %v2219 = vunpack.c.0.s8 %v2218
        %v2220 = vlaneseq
        %v2221 = vshrl.u32 %v2220, 7
        %v2222 = vsub.s32 %v2219, %v2221
        %v2223 = vrot.slane %v2215, %v2222
        %v2240 = vunpack.c.l.b16 %v2043
        %v2241 = vunpack.c.l.b16 %v2055
        %v2242 = vunpack.c.l.b16 %v2067
        %v2243 = vunpack.c.l.b16 %v2079
        %v2244 = vunpack.c.l.b16 %v2091
        %v2245 = vunpack.c.l.b16 %v2103
        %v2246 = vunpack.c.l.b16 %v2115
        %v2247 = vunpack.c.l.b16 %v2127
        %v2248 = vunpack.c.l.b16 %v2139
        %v2249 = vunpack.c.l.b16 %v2151
        %v2250 = vunpack.c.l.b16 %v2163
        %v2251 = vunpack.c.l.b16 %v2175
        %v2252 = vunpack.c.l.b16 %v2187
        %v2253 = vunpack.c.l.b16 %v2199
        %v2254 = vunpack.c.l.b16 %v2211
        %v2255 = vunpack.c.l.b16 %v2223
        %v2256 = vpack.c.b16 %v2241, %v2240
        %v2257 = vpack.c.b16 %v2243, %v2242
        %v2258 = vpack.c.b16 %v2245, %v2244
        %v2259 = vpack.c.b16 %v2247, %v2246
        %v2260 = vpack.c.b16 %v2249, %v2248
        %v2261 = vpack.c.b16 %v2251, %v2250
        %v2262 = vpack.c.b16 %v2253, %v2252
        %v2263 = vpack.c.b16 %v2255, %v2254
        %v2272 = vmul.bf16 %v2007, %v2256
        %v2273 = vmul.bf16 %v2008, %v2257
        %v2274 = vmul.bf16 %v2009, %v2258
        %v2275 = vmul.bf16 %v2010, %v2259
        %v2276 = vmul.bf16 %v2011, %v2260
        %v2277 = vmul.bf16 %v2012, %v2261
        %v2278 = vmul.bf16 %v2013, %v2262
        %v2279 = vmul.bf16 %v2014, %v2263
        %v2280 = vld [vmem:[#allocation2 + $0x18] sm:$0xff]
        %v2281 = vld [vmem:[#allocation2 + $0x20] sm:$0xff]
        %v2282 = vld [vmem:[#allocation2 + $0x28] sm:$0xff]
        %v2283 = vld [vmem:[#allocation2 + $0x30] sm:$0xff]
        %v2284 = vld [vmem:[#allocation2 + $0x38] sm:$0xff]
        %v2285 = vld [vmem:[#allocation2 + $0x40] sm:$0xff]
        %v2286 = vld [vmem:[#allocation2 + $0x48] sm:$0xff]
        %v2287 = vld [vmem:[#allocation2 + $0x50] sm:$0xff]
        %v2288 = vld [vmem:[#allocation2 + $0x58] sm:$0xff]
        %v2289 = vld [vmem:[#allocation2 + $0x60] sm:$0xff]
        %v2290 = vld [vmem:[#allocation2 + $0x68] sm:$0xff]
        %v2291 = vld [vmem:[#allocation2 + $0x70] sm:$0xff]
        %v2292 = vld [vmem:[#allocation2 + $0x78] sm:$0xff]
        %v2293 = vld [vmem:[#allocation2 + $0x80] sm:$0xff]
        %v2294 = vld [vmem:[#allocation2 + $0x88] sm:$0xff]
        %v2295 = vld [vmem:[#allocation2 + $0x90] sm:$0xff]
        %v2296 = vpack.c.bf16 %v2281, %v2280
        %v2297 = vpack.c.bf16 %v2283, %v2282
        %v2298 = vpack.c.bf16 %v2285, %v2284
        %v2299 = vpack.c.bf16 %v2287, %v2286
        %v2300 = vpack.c.bf16 %v2289, %v2288
        %v2301 = vpack.c.bf16 %v2291, %v2290
        %v2302 = vpack.c.bf16 %v2293, %v2292
        %v2303 = vpack.c.bf16 %v2295, %v2294
        %s2304 = scalar_lea.vmem %s1, 448
        %v2305 = vld [vmem:[%s2304] sm:$0xf]
        %v2306 = vld [vmem:[%s2304 + $0x4] sm:$0xf]
        %v2307 = vld [vmem:[%s2304 + $0x8] sm:$0xf]
        %v2308 = vld [vmem:[%s2304 + $0xc] sm:$0xf]
        %v2309 = vld [vmem:[%s2304 + $0x10] sm:$0xf]
        %v2310 = vld [vmem:[%s2304 + $0x14] sm:$0xf]
        %v2311 = vld [vmem:[%s2304 + $0x18] sm:$0xf]
        %v2312 = vld [vmem:[%s2304 + $0x1c] sm:$0xf]
        %v2313 = vld [vmem:[%s2304 + $0x20] sm:$0xf]
        %v2314 = vld [vmem:[%s2304 + $0x24] sm:$0xf]
        %v2315 = vld [vmem:[%s2304 + $0x28] sm:$0xf]
        %v2316 = vld [vmem:[%s2304 + $0x2c] sm:$0xf]
        %v2317 = vld [vmem:[%s2304 + $0x30] sm:$0xf]
        %v2318 = vld [vmem:[%s2304 + $0x34] sm:$0xf]
        %v2319 = vld [vmem:[%s2304 + $0x38] sm:$0xf]
        %v2320 = vld [vmem:[%s2304 + $0x3c] sm:$0xf]
        %2322 = vset.pattern.permute.xlu0 0
        %2323 = vperm.xlu0 %2322, %v2305
        %v2324 = vpop.permute.xlu0 %2323
        %v2327 = vunpack.c.l.s4 839922192
        %v2328 = vunpack.c.0.s8 %v2327
        %v2329 = vlaneseq
        %v2330 = vshrl.u32 %v2329, 7
        %v2331 = vsub.s32 %v2328, %v2330
        %v2332 = vrot.slane %v2324, %v2331
        %2334 = vset.pattern.permute.xlu0 0
        %2335 = vperm.xlu0 %2334, %v2306
        %v2336 = vpop.permute.xlu0 %2335
        %v2339 = vunpack.c.l.s4 839922192
        %v2340 = vunpack.c.0.s8 %v2339
        %v2341 = vlaneseq
        %v2342 = vshrl.u32 %v2341, 7
        %v2343 = vsub.s32 %v2340, %v2342
        %v2344 = vrot.slane %v2336, %v2343
        %2346 = vset.pattern.permute.xlu0 0
        %2347 = vperm.xlu0 %2346, %v2307
        %v2348 = vpop.permute.xlu0 %2347
        %v2351 = vunpack.c.l.s4 839922192
        %v2352 = vunpack.c.0.s8 %v2351
        %v2353 = vlaneseq
        %v2354 = vshrl.u32 %v2353, 7
        %v2355 = vsub.s32 %v2352, %v2354
        %v2356 = vrot.slane %v2348, %v2355
        %2358 = vset.pattern.permute.xlu0 0
        %2359 = vperm.xlu0 %2358, %v2308
        %v2360 = vpop.permute.xlu0 %2359
        %v2363 = vunpack.c.l.s4 839922192
        %v2364 = vunpack.c.0.s8 %v2363
        %v2365 = vlaneseq
        %v2366 = vshrl.u32 %v2365, 7
        %v2367 = vsub.s32 %v2364, %v2366
        %v2368 = vrot.slane %v2360, %v2367
        %2370 = vset.pattern.permute.xlu0 0
        %2371 = vperm.xlu0 %2370, %v2309
        %v2372 = vpop.permute.xlu0 %2371
        %v2375 = vunpack.c.l.s4 839922192
        %v2376 = vunpack.c.0.s8 %v2375
        %v2377 = vlaneseq
        %v2378 = vshrl.u32 %v2377, 7
        %v2379 = vsub.s32 %v2376, %v2378
        %v2380 = vrot.slane %v2372, %v2379
        %2382 = vset.pattern.permute.xlu0 0
        %2383 = vperm.xlu0 %2382, %v2310
        %v2384 = vpop.permute.xlu0 %2383
        %v2387 = vunpack.c.l.s4 839922192
        %v2388 = vunpack.c.0.s8 %v2387
        %v2389 = vlaneseq
        %v2390 = vshrl.u32 %v2389, 7
        %v2391 = vsub.s32 %v2388, %v2390
        %v2392 = vrot.slane %v2384, %v2391
        %2394 = vset.pattern.permute.xlu0 0
        %2395 = vperm.xlu0 %2394, %v2311
        %v2396 = vpop.permute.xlu0 %2395
        %v2399 = vunpack.c.l.s4 839922192
        %v2400 = vunpack.c.0.s8 %v2399
        %v2401 = vlaneseq
        %v2402 = vshrl.u32 %v2401, 7
        %v2403 = vsub.s32 %v2400, %v2402
        %v2404 = vrot.slane %v2396, %v2403
        %2406 = vset.pattern.permute.xlu0 0
        %2407 = vperm.xlu0 %2406, %v2312
        %v2408 = vpop.permute.xlu0 %2407
        %v2411 = vunpack.c.l.s4 839922192
        %v2412 = vunpack.c.0.s8 %v2411
        %v2413 = vlaneseq
        %v2414 = vshrl.u32 %v2413, 7
        %v2415 = vsub.s32 %v2412, %v2414
        %v2416 = vrot.slane %v2408, %v2415
        %2418 = vset.pattern.permute.xlu0 0
        %2419 = vperm.xlu0 %2418, %v2313
        %v2420 = vpop.permute.xlu0 %2419
        %v2423 = vunpack.c.l.s4 839922192
        %v2424 = vunpack.c.0.s8 %v2423
        %v2425 = vlaneseq
        %v2426 = vshrl.u32 %v2425, 7
        %v2427 = vsub.s32 %v2424, %v2426
        %v2428 = vrot.slane %v2420, %v2427
        %2430 = vset.pattern.permute.xlu0 0
        %2431 = vperm.xlu0 %2430, %v2314
        %v2432 = vpop.permute.xlu0 %2431
        %v2435 = vunpack.c.l.s4 839922192
        %v2436 = vunpack.c.0.s8 %v2435
        %v2437 = vlaneseq
        %v2438 = vshrl.u32 %v2437, 7
        %v2439 = vsub.s32 %v2436, %v2438
        %v2440 = vrot.slane %v2432, %v2439
        %2442 = vset.pattern.permute.xlu0 0
        %2443 = vperm.xlu0 %2442, %v2315
        %v2444 = vpop.permute.xlu0 %2443
        %v2447 = vunpack.c.l.s4 839922192
        %v2448 = vunpack.c.0.s8 %v2447
        %v2449 = vlaneseq
        %v2450 = vshrl.u32 %v2449, 7
        %v2451 = vsub.s32 %v2448, %v2450
        %v2452 = vrot.slane %v2444, %v2451
        %2454 = vset.pattern.permute.xlu0 0
        %2455 = vperm.xlu0 %2454, %v2316
        %v2456 = vpop.permute.xlu0 %2455
        %v2459 = vunpack.c.l.s4 839922192
        %v2460 = vunpack.c.0.s8 %v2459
        %v2461 = vlaneseq
        %v2462 = vshrl.u32 %v2461, 7
        %v2463 = vsub.s32 %v2460, %v2462
        %v2464 = vrot.slane %v2456, %v2463
        %2466 = vset.pattern.permute.xlu0 0
        %2467 = vperm.xlu0 %2466, %v2317
        %v2468 = vpop.permute.xlu0 %2467
        %v2471 = vunpack.c.l.s4 839922192
        %v2472 = vunpack.c.0.s8 %v2471
        %v2473 = vlaneseq
        %v2474 = vshrl.u32 %v2473, 7
        %v2475 = vsub.s32 %v2472, %v2474
        %v2476 = vrot.slane %v2468, %v2475
        %2478 = vset.pattern.permute.xlu0 0
        %2479 = vperm.xlu0 %2478, %v2318
        %v2480 = vpop.permute.xlu0 %2479
        %v2483 = vunpack.c.l.s4 839922192
        %v2484 = vunpack.c.0.s8 %v2483
        %v2485 = vlaneseq
        %v2486 = vshrl.u32 %v2485, 7
        %v2487 = vsub.s32 %v2484, %v2486
        %v2488 = vrot.slane %v2480, %v2487
        %2490 = vset.pattern.permute.xlu0 0
        %2491 = vperm.xlu0 %2490, %v2319
        %v2492 = vpop.permute.xlu0 %2491
        %v2495 = vunpack.c.l.s4 839922192
        %v2496 = vunpack.c.0.s8 %v2495
        %v2497 = vlaneseq
        %v2498 = vshrl.u32 %v2497, 7
        %v2499 = vsub.s32 %v2496, %v2498
        %v2500 = vrot.slane %v2492, %v2499
        %2502 = vset.pattern.permute.xlu0 0
        %2503 = vperm.xlu0 %2502, %v2320
        %v2504 = vpop.permute.xlu0 %2503
        %v2507 = vunpack.c.l.s4 839922192
        %v2508 = vunpack.c.0.s8 %v2507
        %v2509 = vlaneseq
        %v2510 = vshrl.u32 %v2509, 7
        %v2511 = vsub.s32 %v2508, %v2510
        %v2512 = vrot.slane %v2504, %v2511
        %v2529 = vunpack.c.l.b16 %v2332
        %v2530 = vunpack.c.l.b16 %v2344
        %v2531 = vunpack.c.l.b16 %v2356
        %v2532 = vunpack.c.l.b16 %v2368
        %v2533 = vunpack.c.l.b16 %v2380
        %v2534 = vunpack.c.l.b16 %v2392
        %v2535 = vunpack.c.l.b16 %v2404
        %v2536 = vunpack.c.l.b16 %v2416
        %v2537 = vunpack.c.l.b16 %v2428
        %v2538 = vunpack.c.l.b16 %v2440
        %v2539 = vunpack.c.l.b16 %v2452
        %v2540 = vunpack.c.l.b16 %v2464
        %v2541 = vunpack.c.l.b16 %v2476
        %v2542 = vunpack.c.l.b16 %v2488
        %v2543 = vunpack.c.l.b16 %v2500
        %v2544 = vunpack.c.l.b16 %v2512
        %v2545 = vpack.c.b16 %v2530, %v2529
        %v2546 = vpack.c.b16 %v2532, %v2531
        %v2547 = vpack.c.b16 %v2534, %v2533
        %v2548 = vpack.c.b16 %v2536, %v2535
        %v2549 = vpack.c.b16 %v2538, %v2537
        %v2550 = vpack.c.b16 %v2540, %v2539
        %v2551 = vpack.c.b16 %v2542, %v2541
        %v2552 = vpack.c.b16 %v2544, %v2543
        %v2561 = vmul.bf16 %v2296, %v2545
        %v2562 = vmul.bf16 %v2297, %v2546
        %v2563 = vmul.bf16 %v2298, %v2547
        %v2564 = vmul.bf16 %v2299, %v2548
        %v2565 = vmul.bf16 %v2300, %v2549
        %v2566 = vmul.bf16 %v2301, %v2550
        %v2567 = vmul.bf16 %v2302, %v2551
        %v2568 = vmul.bf16 %v2303, %v2552
        %v2569 = vld [vmem:[#allocation2 + $0x19] sm:$0xff]
        %v2570 = vld [vmem:[#allocation2 + $0x21] sm:$0xff]
        %v2571 = vld [vmem:[#allocation2 + $0x29] sm:$0xff]
        %v2572 = vld [vmem:[#allocation2 + $0x31] sm:$0xff]
        %v2573 = vld [vmem:[#allocation2 + $0x39] sm:$0xff]
        %v2574 = vld [vmem:[#allocation2 + $0x41] sm:$0xff]
        %v2575 = vld [vmem:[#allocation2 + $0x49] sm:$0xff]
        %v2576 = vld [vmem:[#allocation2 + $0x51] sm:$0xff]
        %v2577 = vld [vmem:[#allocation2 + $0x59] sm:$0xff]
        %v2578 = vld [vmem:[#allocation2 + $0x61] sm:$0xff]
        %v2579 = vld [vmem:[#allocation2 + $0x69] sm:$0xff]
        %v2580 = vld [vmem:[#allocation2 + $0x71] sm:$0xff]
        %v2581 = vld [vmem:[#allocation2 + $0x79] sm:$0xff]
        %v2582 = vld [vmem:[#allocation2 + $0x81] sm:$0xff]
        %v2583 = vld [vmem:[#allocation2 + $0x89] sm:$0xff]
        %v2584 = vld [vmem:[#allocation2 + $0x91] sm:$0xff]
        %v2585 = vpack.c.bf16 %v2570, %v2569
        %v2586 = vpack.c.bf16 %v2572, %v2571
        %v2587 = vpack.c.bf16 %v2574, %v2573
        %v2588 = vpack.c.bf16 %v2576, %v2575
        %v2589 = vpack.c.bf16 %v2578, %v2577
        %v2590 = vpack.c.bf16 %v2580, %v2579
        %v2591 = vpack.c.bf16 %v2582, %v2581
        %v2592 = vpack.c.bf16 %v2584, %v2583
        %s2593 = scalar_lea.vmem %s1, 512
        %v2594 = vld [vmem:[%s2593] sm:$0xf]
        %v2595 = vld [vmem:[%s2593 + $0x4] sm:$0xf]
        %v2596 = vld [vmem:[%s2593 + $0x8] sm:$0xf]
        %v2597 = vld [vmem:[%s2593 + $0xc] sm:$0xf]
        %v2598 = vld [vmem:[%s2593 + $0x10] sm:$0xf]
        %v2599 = vld [vmem:[%s2593 + $0x14] sm:$0xf]
        %v2600 = vld [vmem:[%s2593 + $0x18] sm:$0xf]
        %v2601 = vld [vmem:[%s2593 + $0x1c] sm:$0xf]
        %v2602 = vld [vmem:[%s2593 + $0x20] sm:$0xf]
        %v2603 = vld [vmem:[%s2593 + $0x24] sm:$0xf]
        %v2604 = vld [vmem:[%s2593 + $0x28] sm:$0xf]
        %v2605 = vld [vmem:[%s2593 + $0x2c] sm:$0xf]
        %v2606 = vld [vmem:[%s2593 + $0x30] sm:$0xf]
        %v2607 = vld [vmem:[%s2593 + $0x34] sm:$0xf]
        %v2608 = vld [vmem:[%s2593 + $0x38] sm:$0xf]
        %v2609 = vld [vmem:[%s2593 + $0x3c] sm:$0xf]
        %2611 = vset.pattern.permute.xlu0 0
        %2612 = vperm.xlu0 %2611, %v2594
        %v2613 = vpop.permute.xlu0 %2612
        %v2616 = vunpack.c.l.s4 839922192
        %v2617 = vunpack.c.0.s8 %v2616
        %v2618 = vlaneseq
        %v2619 = vshrl.u32 %v2618, 7
        %v2620 = vsub.s32 %v2617, %v2619
        %v2621 = vrot.slane %v2613, %v2620
        %2623 = vset.pattern.permute.xlu0 0
        %2624 = vperm.xlu0 %2623, %v2595
        %v2625 = vpop.permute.xlu0 %2624
        %v2628 = vunpack.c.l.s4 839922192
        %v2629 = vunpack.c.0.s8 %v2628
        %v2630 = vlaneseq
        %v2631 = vshrl.u32 %v2630, 7
        %v2632 = vsub.s32 %v2629, %v2631
        %v2633 = vrot.slane %v2625, %v2632
        %2635 = vset.pattern.permute.xlu0 0
        %2636 = vperm.xlu0 %2635, %v2596
        %v2637 = vpop.permute.xlu0 %2636
        %v2640 = vunpack.c.l.s4 839922192
        %v2641 = vunpack.c.0.s8 %v2640
        %v2642 = vlaneseq
        %v2643 = vshrl.u32 %v2642, 7
        %v2644 = vsub.s32 %v2641, %v2643
        %v2645 = vrot.slane %v2637, %v2644
        %2647 = vset.pattern.permute.xlu0 0
        %2648 = vperm.xlu0 %2647, %v2597
        %v2649 = vpop.permute.xlu0 %2648
        %v2652 = vunpack.c.l.s4 839922192
        %v2653 = vunpack.c.0.s8 %v2652
        %v2654 = vlaneseq
        %v2655 = vshrl.u32 %v2654, 7
        %v2656 = vsub.s32 %v2653, %v2655
        %v2657 = vrot.slane %v2649, %v2656
        %2659 = vset.pattern.permute.xlu0 0
        %2660 = vperm.xlu0 %2659, %v2598
        %v2661 = vpop.permute.xlu0 %2660
        %v2664 = vunpack.c.l.s4 839922192
        %v2665 = vunpack.c.0.s8 %v2664
        %v2666 = vlaneseq
        %v2667 = vshrl.u32 %v2666, 7
        %v2668 = vsub.s32 %v2665, %v2667
        %v2669 = vrot.slane %v2661, %v2668
        %2671 = vset.pattern.permute.xlu0 0
        %2672 = vperm.xlu0 %2671, %v2599
        %v2673 = vpop.permute.xlu0 %2672
        %v2676 = vunpack.c.l.s4 839922192
        %v2677 = vunpack.c.0.s8 %v2676
        %v2678 = vlaneseq
        %v2679 = vshrl.u32 %v2678, 7
        %v2680 = vsub.s32 %v2677, %v2679
        %v2681 = vrot.slane %v2673, %v2680
        %2683 = vset.pattern.permute.xlu0 0
        %2684 = vperm.xlu0 %2683, %v2600
        %v2685 = vpop.permute.xlu0 %2684
        %v2688 = vunpack.c.l.s4 839922192
        %v2689 = vunpack.c.0.s8 %v2688
        %v2690 = vlaneseq
        %v2691 = vshrl.u32 %v2690, 7
        %v2692 = vsub.s32 %v2689, %v2691
        %v2693 = vrot.slane %v2685, %v2692
        %2695 = vset.pattern.permute.xlu0 0
        %2696 = vperm.xlu0 %2695, %v2601
        %v2697 = vpop.permute.xlu0 %2696
        %v2700 = vunpack.c.l.s4 839922192
        %v2701 = vunpack.c.0.s8 %v2700
        %v2702 = vlaneseq
        %v2703 = vshrl.u32 %v2702, 7
        %v2704 = vsub.s32 %v2701, %v2703
        %v2705 = vrot.slane %v2697, %v2704
        %2707 = vset.pattern.permute.xlu0 0
        %2708 = vperm.xlu0 %2707, %v2602
        %v2709 = vpop.permute.xlu0 %2708
        %v2712 = vunpack.c.l.s4 839922192
        %v2713 = vunpack.c.0.s8 %v2712
        %v2714 = vlaneseq
        %v2715 = vshrl.u32 %v2714, 7
        %v2716 = vsub.s32 %v2713, %v2715
        %v2717 = vrot.slane %v2709, %v2716
        %2719 = vset.pattern.permute.xlu0 0
        %2720 = vperm.xlu0 %2719, %v2603
        %v2721 = vpop.permute.xlu0 %2720
        %v2724 = vunpack.c.l.s4 839922192
        %v2725 = vunpack.c.0.s8 %v2724
        %v2726 = vlaneseq
        %v2727 = vshrl.u32 %v2726, 7
        %v2728 = vsub.s32 %v2725, %v2727
        %v2729 = vrot.slane %v2721, %v2728
        %2731 = vset.pattern.permute.xlu0 0
        %2732 = vperm.xlu0 %2731, %v2604
        %v2733 = vpop.permute.xlu0 %2732
        %v2736 = vunpack.c.l.s4 839922192
        %v2737 = vunpack.c.0.s8 %v2736
        %v2738 = vlaneseq
        %v2739 = vshrl.u32 %v2738, 7
        %v2740 = vsub.s32 %v2737, %v2739
        %v2741 = vrot.slane %v2733, %v2740
        %2743 = vset.pattern.permute.xlu0 0
        %2744 = vperm.xlu0 %2743, %v2605
        %v2745 = vpop.permute.xlu0 %2744
        %v2748 = vunpack.c.l.s4 839922192
        %v2749 = vunpack.c.0.s8 %v2748
        %v2750 = vlaneseq
        %v2751 = vshrl.u32 %v2750, 7
        %v2752 = vsub.s32 %v2749, %v2751
        %v2753 = vrot.slane %v2745, %v2752
        %2755 = vset.pattern.permute.xlu0 0
        %2756 = vperm.xlu0 %2755, %v2606
        %v2757 = vpop.permute.xlu0 %2756
        %v2760 = vunpack.c.l.s4 839922192
        %v2761 = vunpack.c.0.s8 %v2760
        %v2762 = vlaneseq
        %v2763 = vshrl.u32 %v2762, 7
        %v2764 = vsub.s32 %v2761, %v2763
        %v2765 = vrot.slane %v2757, %v2764
        %2767 = vset.pattern.permute.xlu0 0
        %2768 = vperm.xlu0 %2767, %v2607
        %v2769 = vpop.permute.xlu0 %2768
        %v2772 = vunpack.c.l.s4 839922192
        %v2773 = vunpack.c.0.s8 %v2772
        %v2774 = vlaneseq
        %v2775 = vshrl.u32 %v2774, 7
        %v2776 = vsub.s32 %v2773, %v2775
        %v2777 = vrot.slane %v2769, %v2776
        %2779 = vset.pattern.permute.xlu0 0
        %2780 = vperm.xlu0 %2779, %v2608
        %v2781 = vpop.permute.xlu0 %2780
        %v2784 = vunpack.c.l.s4 839922192
        %v2785 = vunpack.c.0.s8 %v2784
        %v2786 = vlaneseq
        %v2787 = vshrl.u32 %v2786, 7
        %v2788 = vsub.s32 %v2785, %v2787
        %v2789 = vrot.slane %v2781, %v2788
        %2791 = vset.pattern.permute.xlu0 0
        %2792 = vperm.xlu0 %2791, %v2609
        %v2793 = vpop.permute.xlu0 %2792
        %v2796 = vunpack.c.l.s4 839922192
        %v2797 = vunpack.c.0.s8 %v2796
        %v2798 = vlaneseq
        %v2799 = vshrl.u32 %v2798, 7
        %v2800 = vsub.s32 %v2797, %v2799
        %v2801 = vrot.slane %v2793, %v2800
        %v2818 = vunpack.c.l.b16 %v2621
        %v2819 = vunpack.c.l.b16 %v2633
        %v2820 = vunpack.c.l.b16 %v2645
        %v2821 = vunpack.c.l.b16 %v2657
        %v2822 = vunpack.c.l.b16 %v2669
        %v2823 = vunpack.c.l.b16 %v2681
        %v2824 = vunpack.c.l.b16 %v2693
        %v2825 = vunpack.c.l.b16 %v2705
        %v2826 = vunpack.c.l.b16 %v2717
        %v2827 = vunpack.c.l.b16 %v2729
        %v2828 = vunpack.c.l.b16 %v2741
        %v2829 = vunpack.c.l.b16 %v2753
        %v2830 = vunpack.c.l.b16 %v2765
        %v2831 = vunpack.c.l.b16 %v2777
        %v2832 = vunpack.c.l.b16 %v2789
        %v2833 = vunpack.c.l.b16 %v2801
        %v2834 = vpack.c.b16 %v2819, %v2818
        %v2835 = vpack.c.b16 %v2821, %v2820
        %v2836 = vpack.c.b16 %v2823, %v2822
        %v2837 = vpack.c.b16 %v2825, %v2824
        %v2838 = vpack.c.b16 %v2827, %v2826
        %v2839 = vpack.c.b16 %v2829, %v2828
        %v2840 = vpack.c.b16 %v2831, %v2830
        %v2841 = vpack.c.b16 %v2833, %v2832
        %v2850 = vmul.bf16 %v2585, %v2834
        %v2851 = vmul.bf16 %v2586, %v2835
        %v2852 = vmul.bf16 %v2587, %v2836
        %v2853 = vmul.bf16 %v2588, %v2837
        %v2854 = vmul.bf16 %v2589, %v2838
        %v2855 = vmul.bf16 %v2590, %v2839
        %v2856 = vmul.bf16 %v2591, %v2840
        %v2857 = vmul.bf16 %v2592, %v2841
        %2866 = vrot.lane.b32.xlu0 %v1092, 32
        %v2867 = vpop.permute.xlu0 %2866
        %2868 = vrot.lane.b32.xlu0 %v1093, 32
        %v2869 = vpop.permute.xlu0 %2868
        %2870 = vrot.lane.b32.xlu0 %v1094, 32
        %v2871 = vpop.permute.xlu0 %2870
        %2872 = vrot.lane.b32.xlu0 %v1095, 32
        %v2873 = vpop.permute.xlu0 %2872
        %2874 = vrot.lane.b32.xlu0 %v1096, 32
        %v2875 = vpop.permute.xlu0 %2874
        %2876 = vrot.lane.b32.xlu0 %v1097, 32
        %v2877 = vpop.permute.xlu0 %2876
        %2878 = vrot.lane.b32.xlu0 %v1098, 32
        %v2879 = vpop.permute.xlu0 %2878
        %2880 = vrot.lane.b32.xlu0 %v1099, 32
        %v2881 = vpop.permute.xlu0 %2880
        %2890 = vrot.lane.b32.xlu0 %v1381, 64
        %v2891 = vpop.permute.xlu0 %2890
        %2892 = vrot.lane.b32.xlu0 %v1382, 64
        %v2893 = vpop.permute.xlu0 %2892
        %2894 = vrot.lane.b32.xlu0 %v1383, 64
        %v2895 = vpop.permute.xlu0 %2894
        %2896 = vrot.lane.b32.xlu0 %v1384, 64
        %v2897 = vpop.permute.xlu0 %2896
        %2898 = vrot.lane.b32.xlu0 %v1385, 64
        %v2899 = vpop.permute.xlu0 %2898
        %2900 = vrot.lane.b32.xlu0 %v1386, 64
        %v2901 = vpop.permute.xlu0 %2900
        %2902 = vrot.lane.b32.xlu0 %v1387, 64
        %v2903 = vpop.permute.xlu0 %2902
        %2904 = vrot.lane.b32.xlu0 %v1388, 64
        %v2905 = vpop.permute.xlu0 %2904
        %2914 = vrot.lane.b32.xlu0 %v1670, 96
        %v2915 = vpop.permute.xlu0 %2914
        %2916 = vrot.lane.b32.xlu0 %v1671, 96
        %v2917 = vpop.permute.xlu0 %2916
        %2918 = vrot.lane.b32.xlu0 %v1672, 96
        %v2919 = vpop.permute.xlu0 %2918
        %2920 = vrot.lane.b32.xlu0 %v1673, 96
        %v2921 = vpop.permute.xlu0 %2920
        %2922 = vrot.lane.b32.xlu0 %v1674, 96
        %v2923 = vpop.permute.xlu0 %2922
        %2924 = vrot.lane.b32.xlu0 %v1675, 96
        %v2925 = vpop.permute.xlu0 %2924
        %2926 = vrot.lane.b32.xlu0 %v1676, 96
        %v2927 = vpop.permute.xlu0 %2926
        %2928 = vrot.lane.b32.xlu0 %v1677, 96
        %v2929 = vpop.permute.xlu0 %2928
        %2938 = vrot.lane.b32.xlu0 %v1983, 32
        %v2939 = vpop.permute.xlu0 %2938
        %2940 = vrot.lane.b32.xlu0 %v1984, 32
        %v2941 = vpop.permute.xlu0 %2940
        %2942 = vrot.lane.b32.xlu0 %v1985, 32
        %v2943 = vpop.permute.xlu0 %2942
        %2944 = vrot.lane.b32.xlu0 %v1986, 32
        %v2945 = vpop.permute.xlu0 %2944
        %2946 = vrot.lane.b32.xlu0 %v1987, 32
        %v2947 = vpop.permute.xlu0 %2946
        %2948 = vrot.lane.b32.xlu0 %v1988, 32
        %v2949 = vpop.permute.xlu0 %2948
        %2950 = vrot.lane.b32.xlu0 %v1989, 32
        %v2951 = vpop.permute.xlu0 %2950
        %2952 = vrot.lane.b32.xlu0 %v1990, 32
        %v2953 = vpop.permute.xlu0 %2952
        %2962 = vrot.lane.b32.xlu0 %v2272, 64
        %v2963 = vpop.permute.xlu0 %2962
        %2964 = vrot.lane.b32.xlu0 %v2273, 64
        %v2965 = vpop.permute.xlu0 %2964
        %2966 = vrot.lane.b32.xlu0 %v2274, 64
        %v2967 = vpop.permute.xlu0 %2966
        %2968 = vrot.lane.b32.xlu0 %v2275, 64
        %v2969 = vpop.permute.xlu0 %2968
        %2970 = vrot.lane.b32.xlu0 %v2276, 64
        %v2971 = vpop.permute.xlu0 %2970
        %2972 = vrot.lane.b32.xlu0 %v2277, 64
        %v2973 = vpop.permute.xlu0 %2972
        %2974 = vrot.lane.b32.xlu0 %v2278, 64
        %v2975 = vpop.permute.xlu0 %2974
        %2976 = vrot.lane.b32.xlu0 %v2279, 64
        %v2977 = vpop.permute.xlu0 %2976
        %2986 = vrot.lane.b32.xlu0 %v2561, 96
        %v2987 = vpop.permute.xlu0 %2986
        %2988 = vrot.lane.b32.xlu0 %v2562, 96
        %v2989 = vpop.permute.xlu0 %2988
        %2990 = vrot.lane.b32.xlu0 %v2563, 96
        %v2991 = vpop.permute.xlu0 %2990
        %2992 = vrot.lane.b32.xlu0 %v2564, 96
        %v2993 = vpop.permute.xlu0 %2992
        %2994 = vrot.lane.b32.xlu0 %v2565, 96
        %v2995 = vpop.permute.xlu0 %2994
        %2996 = vrot.lane.b32.xlu0 %v2566, 96
        %v2997 = vpop.permute.xlu0 %2996
        %2998 = vrot.lane.b32.xlu0 %v2567, 96
        %v2999 = vpop.permute.xlu0 %2998
        %3000 = vrot.lane.b32.xlu0 %v2568, 96
        %v3001 = vpop.permute.xlu0 %3000
        %v3004 = vsel %vm470, %v803, %v2867
        %v3007 = vsel %vm470, %v804, %v2869
        %v3010 = vsel %vm470, %v805, %v2871
        %v3013 = vsel %vm470, %v806, %v2873
        %v3016 = vsel %vm470, %v807, %v2875
        %v3019 = vsel %vm470, %v808, %v2877
        %v3022 = vsel %vm470, %v809, %v2879
        %v3025 = vsel %vm470, %v810, %v2881
        %vm3026 = vcmask 523264
        %v3028 = vsel %vm3026, %v3004, %v2891
        %v3030 = vsel %vm3026, %v3007, %v2893
        %v3032 = vsel %vm3026, %v3010, %v2895
        %v3034 = vsel %vm3026, %v3013, %v2897
        %v3036 = vsel %vm3026, %v3016, %v2899
        %v3038 = vsel %vm3026, %v3019, %v2901
        %v3040 = vsel %vm3026, %v3022, %v2903
        %v3042 = vsel %vm3026, %v3025, %v2905
        %vm3043 = vcmask 785408
        %v3045 = vsel %vm3043, %v3028, %v2915
        %v3048 = vsel %vm3043, %v3030, %v2917
        %v3051 = vsel %vm3043, %v3032, %v2919
        %v3054 = vsel %vm3043, %v3034, %v2921
        %v3057 = vsel %vm3043, %v3036, %v2923
        %v3060 = vsel %vm3043, %v3038, %v2925
        %v3063 = vsel %vm3043, %v3040, %v2927
        %v3066 = vsel %vm3043, %v3042, %v2929
        %v3070 = vsel %vm470, %v1694, %v2939
        %v3073 = vsel %vm470, %v1695, %v2941
        %v3076 = vsel %vm470, %v1696, %v2943
        %v3079 = vsel %vm470, %v1697, %v2945
        %v3082 = vsel %vm470, %v1698, %v2947
        %v3085 = vsel %vm470, %v1699, %v2949
        %v3088 = vsel %vm470, %v1700, %v2951
        %v3091 = vsel %vm470, %v1701, %v2953
        %v3093 = vsel %vm3026, %v3070, %v2963
        %v3095 = vsel %vm3026, %v3073, %v2965
        %v3097 = vsel %vm3026, %v3076, %v2967
        %v3099 = vsel %vm3026, %v3079, %v2969
        %v3101 = vsel %vm3026, %v3082, %v2971
        %v3103 = vsel %vm3026, %v3085, %v2973
        %v3105 = vsel %vm3026, %v3088, %v2975
        %v3107 = vsel %vm3026, %v3091, %v2977
        %v3109 = vsel %vm3043, %v3093, %v2987
        %v3112 = vsel %vm3043, %v3095, %v2989
        %v3115 = vsel %vm3043, %v3097, %v2991
        %v3118 = vsel %vm3043, %v3099, %v2993
        %v3121 = vsel %vm3043, %v3101, %v2995
        %v3124 = vsel %vm3043, %v3103, %v2997
        %v3127 = vsel %vm3043, %v3105, %v2999
        %v3130 = vsel %vm3043, %v3107, %v3001
        %v3132 = vld [vmem:[%s4] sm:$0xf]
        %v3133 = vld [vmem:[%s4 + $0x4] sm:$0xf]
        %v3134 = vld [vmem:[%s4 + $0x8] sm:$0xf]
        %v3135 = vld [vmem:[%s4 + $0xc] sm:$0xf]
        %v3136 = vld [vmem:[%s4 + $0x10] sm:$0xf]
        %v3137 = vld [vmem:[%s4 + $0x14] sm:$0xf]
        %v3138 = vld [vmem:[%s4 + $0x18] sm:$0xf]
        %v3139 = vld [vmem:[%s4 + $0x1c] sm:$0xf]
        %v3140 = vld [vmem:[%s4 + $0x20] sm:$0xf]
        %v3141 = vld [vmem:[%s4 + $0x24] sm:$0xf]
        %v3142 = vld [vmem:[%s4 + $0x28] sm:$0xf]
        %v3143 = vld [vmem:[%s4 + $0x2c] sm:$0xf]
        %v3144 = vld [vmem:[%s4 + $0x30] sm:$0xf]
        %v3145 = vld [vmem:[%s4 + $0x34] sm:$0xf]
        %v3146 = vld [vmem:[%s4 + $0x38] sm:$0xf]
        %v3147 = vld [vmem:[%s4 + $0x3c] sm:$0xf]
        %v3148 = vld [vmem:[%s4 + $0x40] sm:$0xf]
        %v3149 = vld [vmem:[%s4 + $0x44] sm:$0xf]
        %v3150 = vld [vmem:[%s4 + $0x48] sm:$0xf]
        %v3151 = vld [vmem:[%s4 + $0x4c] sm:$0xf]
        %v3152 = vld [vmem:[%s4 + $0x50] sm:$0xf]
        %v3153 = vld [vmem:[%s4 + $0x54] sm:$0xf]
        %v3154 = vld [vmem:[%s4 + $0x58] sm:$0xf]
        %v3155 = vld [vmem:[%s4 + $0x5c] sm:$0xf]
        %v3156 = vld [vmem:[%s4 + $0x60] sm:$0xf]
        %v3157 = vld [vmem:[%s4 + $0x64] sm:$0xf]
        %v3158 = vld [vmem:[%s4 + $0x68] sm:$0xf]
        %v3159 = vld [vmem:[%s4 + $0x6c] sm:$0xf]
        %v3160 = vld [vmem:[%s4 + $0x70] sm:$0xf]
        %v3161 = vld [vmem:[%s4 + $0x74] sm:$0xf]
        %v3162 = vld [vmem:[%s4 + $0x78] sm:$0xf]
        %v3163 = vld [vmem:[%s4 + $0x7c] sm:$0xf]
        %v3164 = vld [vmem:[%s4 + $0x80] sm:$0xf]
        %v3165 = vld [vmem:[%s4 + $0x84] sm:$0xf]
        %v3166 = vld [vmem:[%s4 + $0x88] sm:$0xf]
        %v3167 = vld [vmem:[%s4 + $0x8c] sm:$0xf]
        %v3204 = vunpack.c.l.b16 %v3132
        %v3205 = vunpack.c.l.b16 %v3133
        %v3206 = vunpack.c.l.b16 %v3134
        %v3207 = vunpack.c.l.b16 %v3135
        %v3208 = vunpack.c.l.b16 %v3136
        %v3209 = vunpack.c.l.b16 %v3137
        %v3210 = vunpack.c.l.b16 %v3138
        %v3211 = vunpack.c.l.b16 %v3139
        %v3212 = vunpack.c.l.b16 %v3140
        %v3213 = vunpack.c.l.b16 %v3141
        %v3214 = vunpack.c.l.b16 %v3142
        %v3215 = vunpack.c.l.b16 %v3143
        %v3216 = vunpack.c.l.b16 %v3144
        %v3217 = vunpack.c.l.b16 %v3145
        %v3218 = vunpack.c.l.b16 %v3146
        %v3219 = vunpack.c.l.b16 %v3147
        %v3220 = vunpack.c.l.b16 %v3148
        %v3221 = vunpack.c.l.b16 %v3149
        %v3222 = vunpack.c.l.b16 %v3150
        %v3223 = vunpack.c.l.b16 %v3151
        %v3224 = vunpack.c.l.b16 %v3152
        %v3225 = vunpack.c.l.b16 %v3153
        %v3226 = vunpack.c.l.b16 %v3154
        %v3227 = vunpack.c.l.b16 %v3155
        %v3228 = vunpack.c.l.b16 %v3156
        %v3229 = vunpack.c.l.b16 %v3157
        %v3230 = vunpack.c.l.b16 %v3158
        %v3231 = vunpack.c.l.b16 %v3159
        %v3232 = vunpack.c.l.b16 %v3160
        %v3233 = vunpack.c.l.b16 %v3161
        %v3234 = vunpack.c.l.b16 %v3162
        %v3235 = vunpack.c.l.b16 %v3163
        %v3236 = vunpack.c.l.b16 %v3164
        %v3237 = vunpack.c.l.b16 %v3165
        %v3238 = vunpack.c.l.b16 %v3166
        %v3239 = vunpack.c.l.b16 %v3167
        %v3240 = vpack.c.b16 %v3205, %v3204
        %v3241 = vpack.c.b16 %v3207, %v3206
        %v3242 = vpack.c.b16 %v3209, %v3208
        %v3243 = vpack.c.b16 %v3211, %v3210
        %v3244 = vpack.c.b16 %v3213, %v3212
        %v3245 = vpack.c.b16 %v3215, %v3214
        %v3246 = vpack.c.b16 %v3217, %v3216
        %v3247 = vpack.c.b16 %v3219, %v3218
        %v3248 = vpack.c.b16 %v3221, %v3220
        %v3249 = vpack.c.b16 %v3223, %v3222
        %v3250 = vpack.c.b16 %v3225, %v3224
        %v3251 = vpack.c.b16 %v3227, %v3226
        %v3252 = vpack.c.b16 %v3229, %v3228
        %v3253 = vpack.c.b16 %v3231, %v3230
        %v3254 = vpack.c.b16 %v3233, %v3232
        %v3255 = vpack.c.b16 %v3235, %v3234
        %v3256 = vpack.c.b16 %v3237, %v3236
        %v3257 = vpack.c.b16 %v3239, %v3238
        %v3277 = vsel %vm470, %v2850, 0
        %v3280 = vsel %vm470, %v2851, 0
        %v3283 = vsel %vm470, %v2852, 0
        %v3286 = vsel %vm470, %v2853, 0
        %v3289 = vsel %vm470, %v2854, 0
        %v3292 = vsel %vm470, %v2855, 0
        %v3295 = vsel %vm470, %v2856, 0
        %v3298 = vsel %vm470, %v2857, 0
        %3300 = vmatprep.subr.bf16.mxu0 0
        %3301 = vmatpush1.bf16.msra.mxu0 %v3240
        %3302 = vmatprep.subr.bf16.mxu0 0
        %3303 = vmatpush1.bf16.msra.mxu0 %v3241
        %3304 = vmatprep.subr.bf16.mxu0 0
        %3305 = vmatpush1.bf16.msra.mxu0 %v3242
        %3306 = vmatprep.subr.bf16.mxu0 0
        %3307 = vmatpush1.bf16.msra.mxu0 %v3243
        %3308 = vmatprep.subr.bf16.mxu0 0
        %3309 = vmatpush1.bf16.msra.mxu0 %v3244
        %3310 = vmatprep.subr.bf16.mxu0 0
        %3311 = vmatpush1.bf16.msra.mxu0 %v3245
        %3312 = vmatprep.subr.bf16.mxu0 0
        %3313 = vmatpush1.bf16.msra.mxu0 %v3246
        %3314 = vmatprep.subr.bf16.mxu0 0
        %3315 = vmatpush1.bf16.msra.mxu0 %v3247
        %3316 = vmatprep.subr.bf16.mxu0 0
        %3317 = vmatpush1.bf16.msra.mxu0 %v3248
        %3318 = vmatprep.subr.bf16.mxu0 0
        %3319 = vmatpush1.bf16.msra.mxu0 %v3249
        %3320 = vmatprep.subr.bf16.mxu0 0
        %3321 = vmatpush1.bf16.msra.mxu0 %v3250
        %3322 = vmatprep.subr.bf16.mxu0 0
        %3323 = vmatpush1.bf16.msra.mxu0 %v3251
        %3324 = vmatprep.subr.bf16.mxu0 0
        %3325 = vmatpush1.bf16.msra.mxu0 %v3252
        %3326 = vmatprep.subr.bf16.mxu0 0
        %3327 = vmatpush1.bf16.msra.mxu0 %v3253
        %3328 = vmatprep.subr.bf16.mxu0 0
        %3329 = vmatpush1.bf16.msra.mxu0 %v3254
        %3330 = vmatprep.subr.bf16.mxu0 0
        %3331 = vmatpush1.bf16.msra.mxu0 %v3255
        %3332 = vmatprep.mubr.bf16.mxu0 %v3109
        %3333 = vmatmul.mubr.bf16.gmra.mrb[0].mxu0 %v3045
        %v3334 = vpop.f32.mrb[0].mxu0
        %v3335 = vadd.f32 0.0, %v3334
        %v3336 = vpop.f32.mrb[0].mxu0
        %v3337 = vpop.f32.mrb[0].mxu0
        %v3338 = vadd.f32 0.0, %v3337
        %v3339 = vpop.f32.mrb[0].mxu0
        %3340 = vmatprep.mubr.bf16.mxu0 %v3112
        %3341 = vmatmul.mubr.bf16.gmra.mrb[0].mxu0 %v3048
        %v3342 = vpop.f32.mrb[0].mxu0
        %v3343 = vadd.f32 0.0, %v3342
        %v3344 = vpop.f32.mrb[0].mxu0
        %v3345 = vpop.f32.mrb[0].mxu0
        %v3346 = vadd.f32 0.0, %v3345
        %v3347 = vpop.f32.mrb[0].mxu0
        %3348 = vmatprep.mubr.bf16.mxu0 %v3115
        %3349 = vmatmul.mubr.bf16.gmra.mrb[0].mxu0 %v3051
        %v3350 = vpop.f32.mrb[0].mxu0
        %v3351 = vadd.f32 0.0, %v3350
        %v3352 = vpop.f32.mrb[0].mxu0
        %v3353 = vpop.f32.mrb[0].mxu0
        %v3354 = vadd.f32 0.0, %v3353
        %v3355 = vpop.f32.mrb[0].mxu0
        %3356 = vmatprep.mubr.bf16.mxu0 %v3118
        %3357 = vmatmul.mubr.bf16.gmra.mrb[0].mxu0 %v3054
        %v3358 = vpop.f32.mrb[0].mxu0
        %v3359 = vadd.f32 0.0, %v3358
        %v3360 = vpop.f32.mrb[0].mxu0
        %v3361 = vpop.f32.mrb[0].mxu0
        %v3362 = vadd.f32 0.0, %v3361
        %v3363 = vpop.f32.mrb[0].mxu0
        %3364 = vmatprep.mubr.bf16.mxu0 %v3121
        %3365 = vmatmul.mubr.bf16.gmra.mrb[0].mxu0 %v3057
        %v3366 = vpop.f32.mrb[0].mxu0
        %v3367 = vadd.f32 0.0, %v3366
        %v3368 = vpop.f32.mrb[0].mxu0
        %v3369 = vpop.f32.mrb[0].mxu0
        %v3370 = vadd.f32 0.0, %v3369
        %v3371 = vpop.f32.mrb[0].mxu0
        %3372 = vmatprep.mubr.bf16.mxu0 %v3124
        %3373 = vmatmul.mubr.bf16.gmra.mrb[0].mxu0 %v3060
        %v3374 = vpop.f32.mrb[0].mxu0
        %v3375 = vadd.f32 0.0, %v3374
        %v3376 = vpop.f32.mrb[0].mxu0
        %v3377 = vpop.f32.mrb[0].mxu0
        %v3378 = vadd.f32 0.0, %v3377
        %v3379 = vpop.f32.mrb[0].mxu0
        %3380 = vmatprep.mubr.bf16.mxu0 %v3127
        %3381 = vmatmul.mubr.bf16.gmra.mrb[0].mxu0 %v3063
        %v3382 = vpop.f32.mrb[0].mxu0
        %v3383 = vadd.f32 0.0, %v3382
        %v3384 = vpop.f32.mrb[0].mxu0
        %v3385 = vpop.f32.mrb[0].mxu0
        %v3386 = vadd.f32 0.0, %v3385
        %v3387 = vpop.f32.mrb[0].mxu0
        %3388 = vmatprep.mubr.bf16.mxu0 %v3130
        %3389 = vmatmul.mubr.bf16.gmra.mrb[0].mxu0 %v3066
        %v3390 = vpop.f32.mrb[0].mxu0
        %v3391 = vadd.f32 0.0, %v3390
        %v3392 = vpop.f32.mrb[0].mxu0
        %v3393 = vpop.f32.mrb[0].mxu0
        %v3394 = vadd.f32 0.0, %v3393
        %v3395 = vpop.f32.mrb[0].mxu0
        %3396 = vdwg.mxu0
        %3397 = vmatprep.subr.bf16.mxu0 0
        %3398 = vmatpush1.bf16.msra.mxu0 %v3256
        %3399 = vmatprep.subr.bf16.mxu0 0
        %3400 = vmatpush1.bf16.msra.mxu0 %v3257
        %3401 = vmatprep.subr.bf16.mxu0 0
        %3402 = vmatpush1.bf16.msra.mxu0 0
        %3403 = vmatprep.subr.bf16.mxu0 0
        %3404 = vmatpush1.bf16.msra.mxu0 0
        %3405 = vmatprep.subr.bf16.mxu0 0
        %3406 = vmatpush1.bf16.msra.mxu0 0
        %3407 = vmatprep.subr.bf16.mxu0 0
        %3408 = vmatpush1.bf16.msra.mxu0 0
        %3409 = vmatprep.subr.bf16.mxu0 0
        %3410 = vmatpush1.bf16.msra.mxu0 0
        %3411 = vmatprep.subr.bf16.mxu0 0
        %3412 = vmatpush1.bf16.msra.mxu0 0
        %3413 = vmatprep.subr.bf16.mxu0 0
        %3414 = vmatpush1.bf16.msra.mxu0 0
        %3415 = vmatprep.subr.bf16.mxu0 0
        %3416 = vmatpush1.bf16.msra.mxu0 0
        %3417 = vmatprep.subr.bf16.mxu0 0
        %3418 = vmatpush1.bf16.msra.mxu0 0
        %3419 = vmatprep.subr.bf16.mxu0 0
        %3420 = vmatpush1.bf16.msra.mxu0 0
        %3421 = vmatprep.subr.bf16.mxu0 0
        %3422 = vmatpush1.bf16.msra.mxu0 0
        %3423 = vmatprep.subr.bf16.mxu0 0
        %3424 = vmatpush1.bf16.msra.mxu0 0
        %3425 = vmatprep.subr.bf16.mxu0 0
        %3426 = vmatpush1.bf16.msra.mxu0 0
        %3427 = vmatprep.subr.bf16.mxu0 0
        %3428 = vmatpush1.bf16.msra.mxu0 0
        %3429 = vmatprep.mubr.bf16.mxu0 0
        %3430 = vmatmul.mubr.bf16.gmra.mrb[0].mxu0 %v3277
        %v3431 = vpop.f32.mrb[0].mxu0
        %v3432 = vadd.f32 %v3335, %v3431
        %v3433 = vpop.f32.mrb[0].mxu0
        %v3434 = vpop.f32.mrb[0].mxu0
        %v3435 = vadd.f32 %v3338, %v3434
        %v3436 = vpop.f32.mrb[0].mxu0
        %3437 = vmatprep.mubr.bf16.mxu0 0
        %3438 = vmatmul.mubr.bf16.gmra.mrb[0].mxu0 %v3280
        %v3439 = vpop.f32.mrb[0].mxu0
        %v3440 = vadd.f32 %v3343, %v3439
        %v3441 = vpop.f32.mrb[0].mxu0
        %v3442 = vpop.f32.mrb[0].mxu0
        %v3443 = vadd.f32 %v3346, %v3442
        %v3444 = vpop.f32.mrb[0].mxu0
        %3445 = vmatprep.mubr.bf16.mxu0 0
        %3446 = vmatmul.mubr.bf16.gmra.mrb[0].mxu0 %v3283
        %v3447 = vpop.f32.mrb[0].mxu0
        %v3448 = vadd.f32 %v3351, %v3447
        %v3449 = vpop.f32.mrb[0].mxu0
        %v3450 = vpop.f32.mrb[0].mxu0
        %v3451 = vadd.f32 %v3354, %v3450
        %v3452 = vpop.f32.mrb[0].mxu0
        %3453 = vmatprep.mubr.bf16.mxu0 0
        %3454 = vmatmul.mubr.bf16.gmra.mrb[0].mxu0 %v3286
        %v3455 = vpop.f32.mrb[0].mxu0
        %v3456 = vadd.f32 %v3359, %v3455
        %v3457 = vpop.f32.mrb[0].mxu0
        %v3458 = vpop.f32.mrb[0].mxu0
        %v3459 = vadd.f32 %v3362, %v3458
        %v3460 = vpop.f32.mrb[0].mxu0
        %3461 = vmatprep.mubr.bf16.mxu0 0
        %3462 = vmatmul.mubr.bf16.gmra.mrb[0].mxu0 %v3289
        %v3463 = vpop.f32.mrb[0].mxu0
        %v3464 = vadd.f32 %v3367, %v3463
        %v3465 = vpop.f32.mrb[0].mxu0
        %v3466 = vpop.f32.mrb[0].mxu0
        %v3467 = vadd.f32 %v3370, %v3466
        %v3468 = vpop.f32.mrb[0].mxu0
        %3469 = vmatprep.mubr.bf16.mxu0 0
        %3470 = vmatmul.mubr.bf16.gmra.mrb[0].mxu0 %v3292
        %v3471 = vpop.f32.mrb[0].mxu0
        %v3472 = vadd.f32 %v3375, %v3471
        %v3473 = vpop.f32.mrb[0].mxu0
        %v3474 = vpop.f32.mrb[0].mxu0
        %v3475 = vadd.f32 %v3378, %v3474
        %v3476 = vpop.f32.mrb[0].mxu0
        %3477 = vmatprep.mubr.bf16.mxu0 0
        %3478 = vmatmul.mubr.bf16.gmra.mrb[0].mxu0 %v3295
        %v3479 = vpop.f32.mrb[0].mxu0
        %v3480 = vadd.f32 %v3383, %v3479
        %v3481 = vpop.f32.mrb[0].mxu0
        %v3482 = vpop.f32.mrb[0].mxu0
        %v3483 = vadd.f32 %v3386, %v3482
        %v3484 = vpop.f32.mrb[0].mxu0
        %3485 = vmatprep.mubr.bf16.mxu0 0
        %3486 = vmatmul.mubr.bf16.gmra.mrb[0].mxu0 %v3298
        %v3487 = vpop.f32.mrb[0].mxu0
        %v3488 = vadd.f32 %v3391, %v3487
        %v3489 = vpop.f32.mrb[0].mxu0
        %v3490 = vpop.f32.mrb[0].mxu0
        %v3491 = vadd.f32 %v3394, %v3490
        %v3492 = vpop.f32.mrb[0].mxu0
        %3493 = vdwg.mxu0
        %v3494 = vld [vmem:[%s5] sm:$0x1]
        %v3496 = vlaneseq
        %v3497 = vshrl.u32 %v3496, 7
        %v3498 = vsub.s32 0, %v3497
        %v3499 = vrot.slane %v3494, %v3498
        %v3501 = vmul.f32 %v3432, %v3499
        %v3502 = vmul.f32 %v3435, %v3499
        %v3503 = vmul.f32 %v3440, %v3499
        %v3504 = vmul.f32 %v3443, %v3499
        %v3505 = vmul.f32 %v3448, %v3499
        %v3506 = vmul.f32 %v3451, %v3499
        %v3507 = vmul.f32 %v3456, %v3499
        %v3508 = vmul.f32 %v3459, %v3499
        %v3509 = vmul.f32 %v3464, %v3499
        %v3510 = vmul.f32 %v3467, %v3499
        %v3511 = vmul.f32 %v3472, %v3499
        %v3512 = vmul.f32 %v3475, %v3499
        %v3513 = vmul.f32 %v3480, %v3499
        %v3514 = vmul.f32 %v3483, %v3499
        %v3515 = vmul.f32 %v3488, %v3499
        %v3516 = vmul.f32 %v3491, %v3499
        %v3517 = vld [vmem:[%s6] sm:$0x1]
        %v3519 = vlaneseq
        %v3520 = vshrl.u32 %v3519, 7
        %v3521 = vsub.s32 0, %v3520
        %v3522 = vrot.slane %v3517, %v3521
        %v3524 = vadd.f32 %v3501, %v3522
        %v3525 = vadd.f32 %v3502, %v3522
        %v3526 = vadd.f32 %v3503, %v3522
        %v3527 = vadd.f32 %v3504, %v3522
        %v3528 = vadd.f32 %v3505, %v3522
        %v3529 = vadd.f32 %v3506, %v3522
        %v3530 = vadd.f32 %v3507, %v3522
        %v3531 = vadd.f32 %v3508, %v3522
        %v3532 = vadd.f32 %v3509, %v3522
        %v3533 = vadd.f32 %v3510, %v3522
        %v3534 = vadd.f32 %v3511, %v3522
        %v3535 = vadd.f32 %v3512, %v3522
        %v3536 = vadd.f32 %v3513, %v3522
        %v3537 = vadd.f32 %v3514, %v3522
        %v3538 = vadd.f32 %v3515, %v3522
        %v3539 = vadd.f32 %v3516, %v3522
        %v3540 = vmax.f32 %v3524, 0.0
        %v3541 = vmax.f32 %v3525, 0.0
        %v3542 = vmax.f32 %v3526, 0.0
        %v3543 = vmax.f32 %v3527, 0.0
        %v3544 = vmax.f32 %v3528, 0.0
        %v3545 = vmax.f32 %v3529, 0.0
        %v3546 = vmax.f32 %v3530, 0.0
        %v3547 = vmax.f32 %v3531, 0.0
        %v3548 = vmax.f32 %v3532, 0.0
        %v3549 = vmax.f32 %v3533, 0.0
        %v3550 = vmax.f32 %v3534, 0.0
        %v3551 = vmax.f32 %v3535, 0.0
        %v3552 = vmax.f32 %v3536, 0.0
        %v3553 = vmax.f32 %v3537, 0.0
        %v3554 = vmax.f32 %v3538, 0.0
        %v3555 = vmax.f32 %v3539, 0.0
        %3556 = vst.msk [vmem:[#allocation3] sm:$0xff] %vm470, 0.0
        %3557 = vst.msk [vmem:[#allocation3 + $0x8] sm:$0xff] %vm470, 0.0
        %3558 = vst.msk [vmem:[#allocation3 + $0x90] sm:$0xff] %vm470, 0.0
        %3559 = vst.msk [vmem:[#allocation3 + $0x98] sm:$0xff] %vm470, 0.0
        %3560 = vst.msk [vmem:[#allocation3 + $0x10] sm:$0xff] %vm470, %v3540
        %3561 = vst.msk [vmem:[#allocation3 + $0x18] sm:$0xff] %vm470, %v3541
        %3562 = vst.msk [vmem:[#allocation3 + $0x20] sm:$0xff] %vm470, %v3542
        %3563 = vst.msk [vmem:[#allocation3 + $0x28] sm:$0xff] %vm470, %v3543
        %3564 = vst.msk [vmem:[#allocation3 + $0x30] sm:$0xff] %vm470, %v3544
        %3565 = vst.msk [vmem:[#allocation3 + $0x38] sm:$0xff] %vm470, %v3545
        %3566 = vst.msk [vmem:[#allocation3 + $0x40] sm:$0xff] %vm470, %v3546
        %3567 = vst.msk [vmem:[#allocation3 + $0x48] sm:$0xff] %vm470, %v3547
        %3568 = vst.msk [vmem:[#allocation3 + $0x50] sm:$0xff] %vm470, %v3548
        %3569 = vst.msk [vmem:[#allocation3 + $0x58] sm:$0xff] %vm470, %v3549
        %3570 = vst.msk [vmem:[#allocation3 + $0x60] sm:$0xff] %vm470, %v3550
        %3571 = vst.msk [vmem:[#allocation3 + $0x68] sm:$0xff] %vm470, %v3551
        %3572 = vst.msk [vmem:[#allocation3 + $0x70] sm:$0xff] %vm470, %v3552
        %3573 = vst.msk [vmem:[#allocation3 + $0x78] sm:$0xff] %vm470, %v3553
        %3574 = vst.msk [vmem:[#allocation3 + $0x80] sm:$0xff] %vm470, %v3554
        %3575 = vst.msk [vmem:[#allocation3 + $0x88] sm:$0xff] %vm470, %v3555
        %v3576 = vld [vmem:[#allocation3 + $0x7] sm:$0xff]
        %v3577 = vld [vmem:[#allocation3 + $0xf] sm:$0xff]
        %v3578 = vld [vmem:[#allocation3 + $0x17] sm:$0xff]
        %v3579 = vld [vmem:[#allocation3 + $0x1f] sm:$0xff]
        %v3580 = vld [vmem:[#allocation3 + $0x27] sm:$0xff]
        %v3581 = vld [vmem:[#allocation3 + $0x2f] sm:$0xff]
        %v3582 = vld [vmem:[#allocation3 + $0x37] sm:$0xff]
        %v3583 = vld [vmem:[#allocation3 + $0x3f] sm:$0xff]
        %v3584 = vld [vmem:[#allocation3 + $0x47] sm:$0xff]
        %v3585 = vld [vmem:[#allocation3 + $0x4f] sm:$0xff]
        %v3586 = vld [vmem:[#allocation3 + $0x57] sm:$0xff]
        %v3587 = vld [vmem:[#allocation3 + $0x5f] sm:$0xff]
        %v3588 = vld [vmem:[#allocation3 + $0x67] sm:$0xff]
        %v3589 = vld [vmem:[#allocation3 + $0x6f] sm:$0xff]
        %v3590 = vld [vmem:[#allocation3 + $0x77] sm:$0xff]
        %v3591 = vld [vmem:[#allocation3 + $0x7f] sm:$0xff]
        %v3592 = vpack.c.bf16 %v3577, %v3576
        %v3593 = vpack.c.bf16 %v3579, %v3578
        %v3594 = vpack.c.bf16 %v3581, %v3580
        %v3595 = vpack.c.bf16 %v3583, %v3582
        %v3596 = vpack.c.bf16 %v3585, %v3584
        %v3597 = vpack.c.bf16 %v3587, %v3586
        %v3598 = vpack.c.bf16 %v3589, %v3588
        %v3599 = vpack.c.bf16 %v3591, %v3590
        %v3600 = vld [vmem:[%s1] sm:$0xf]
        %v3601 = vld [vmem:[%s1 + $0x4] sm:$0xf]
        %v3602 = vld [vmem:[%s1 + $0x8] sm:$0xf]
        %v3603 = vld [vmem:[%s1 + $0xc] sm:$0xf]
        %v3604 = vld [vmem:[%s1 + $0x10] sm:$0xf]
        %v3605 = vld [vmem:[%s1 + $0x14] sm:$0xf]
        %v3606 = vld [vmem:[%s1 + $0x18] sm:$0xf]
        %v3607 = vld [vmem:[%s1 + $0x1c] sm:$0xf]
        %v3608 = vld [vmem:[%s1 + $0x20] sm:$0xf]
        %v3609 = vld [vmem:[%s1 + $0x24] sm:$0xf]
        %v3610 = vld [vmem:[%s1 + $0x28] sm:$0xf]
        %v3611 = vld [vmem:[%s1 + $0x2c] sm:$0xf]
        %v3612 = vld [vmem:[%s1 + $0x30] sm:$0xf]
        %v3613 = vld [vmem:[%s1 + $0x34] sm:$0xf]
        %v3614 = vld [vmem:[%s1 + $0x38] sm:$0xf]
        %v3615 = vld [vmem:[%s1 + $0x3c] sm:$0xf]
        %3617 = vset.pattern.permute.xlu0 0
        %3618 = vperm.xlu0 %3617, %v3600
        %v3619 = vpop.permute.xlu0 %3618
        %v3622 = vunpack.c.l.s4 839922192
        %v3623 = vunpack.c.0.s8 %v3622
        %v3624 = vlaneseq
        %v3625 = vshrl.u32 %v3624, 7
        %v3626 = vsub.s32 %v3623, %v3625
        %v3627 = vrot.slane %v3619, %v3626
        %3629 = vset.pattern.permute.xlu0 0
        %3630 = vperm.xlu0 %3629, %v3601
        %v3631 = vpop.permute.xlu0 %3630
        %v3634 = vunpack.c.l.s4 839922192
        %v3635 = vunpack.c.0.s8 %v3634
        %v3636 = vlaneseq
        %v3637 = vshrl.u32 %v3636, 7
        %v3638 = vsub.s32 %v3635, %v3637
        %v3639 = vrot.slane %v3631, %v3638
        %3641 = vset.pattern.permute.xlu0 0
        %3642 = vperm.xlu0 %3641, %v3602
        %v3643 = vpop.permute.xlu0 %3642
        %v3646 = vunpack.c.l.s4 839922192
        %v3647 = vunpack.c.0.s8 %v3646
        %v3648 = vlaneseq
        %v3649 = vshrl.u32 %v3648, 7
        %v3650 = vsub.s32 %v3647, %v3649
        %v3651 = vrot.slane %v3643, %v3650
        %3653 = vset.pattern.permute.xlu0 0
        %3654 = vperm.xlu0 %3653, %v3603
        %v3655 = vpop.permute.xlu0 %3654
        %v3658 = vunpack.c.l.s4 839922192
        %v3659 = vunpack.c.0.s8 %v3658
        %v3660 = vlaneseq
        %v3661 = vshrl.u32 %v3660, 7
        %v3662 = vsub.s32 %v3659, %v3661
        %v3663 = vrot.slane %v3655, %v3662
        %3665 = vset.pattern.permute.xlu0 0
        %3666 = vperm.xlu0 %3665, %v3604
        %v3667 = vpop.permute.xlu0 %3666
        %v3670 = vunpack.c.l.s4 839922192
        %v3671 = vunpack.c.0.s8 %v3670
        %v3672 = vlaneseq
        %v3673 = vshrl.u32 %v3672, 7
        %v3674 = vsub.s32 %v3671, %v3673
        %v3675 = vrot.slane %v3667, %v3674
        %3677 = vset.pattern.permute.xlu0 0
        %3678 = vperm.xlu0 %3677, %v3605
        %v3679 = vpop.permute.xlu0 %3678
        %v3682 = vunpack.c.l.s4 839922192
        %v3683 = vunpack.c.0.s8 %v3682
        %v3684 = vlaneseq
        %v3685 = vshrl.u32 %v3684, 7
        %v3686 = vsub.s32 %v3683, %v3685
        %v3687 = vrot.slane %v3679, %v3686
        %3689 = vset.pattern.permute.xlu0 0
        %3690 = vperm.xlu0 %3689, %v3606
        %v3691 = vpop.permute.xlu0 %3690
        %v3694 = vunpack.c.l.s4 839922192
        %v3695 = vunpack.c.0.s8 %v3694
        %v3696 = vlaneseq
        %v3697 = vshrl.u32 %v3696, 7
        %v3698 = vsub.s32 %v3695, %v3697
        %v3699 = vrot.slane %v3691, %v3698
        %3701 = vset.pattern.permute.xlu0 0
        %3702 = vperm.xlu0 %3701, %v3607
        %v3703 = vpop.permute.xlu0 %3702
        %v3706 = vunpack.c.l.s4 839922192
        %v3707 = vunpack.c.0.s8 %v3706
        %v3708 = vlaneseq
        %v3709 = vshrl.u32 %v3708, 7
        %v3710 = vsub.s32 %v3707, %v3709
        %v3711 = vrot.slane %v3703, %v3710
        %3713 = vset.pattern.permute.xlu0 0
        %3714 = vperm.xlu0 %3713, %v3608
        %v3715 = vpop.permute.xlu0 %3714
        %v3718 = vunpack.c.l.s4 839922192
        %v3719 = vunpack.c.0.s8 %v3718
        %v3720 = vlaneseq
        %v3721 = vshrl.u32 %v3720, 7
        %v3722 = vsub.s32 %v3719, %v3721
        %v3723 = vrot.slane %v3715, %v3722
        %3725 = vset.pattern.permute.xlu0 0
        %3726 = vperm.xlu0 %3725, %v3609
        %v3727 = vpop.permute.xlu0 %3726
        %v3730 = vunpack.c.l.s4 839922192
        %v3731 = vunpack.c.0.s8 %v3730
        %v3732 = vlaneseq
        %v3733 = vshrl.u32 %v3732, 7
        %v3734 = vsub.s32 %v3731, %v3733
        %v3735 = vrot.slane %v3727, %v3734
        %3737 = vset.pattern.permute.xlu0 0
        %3738 = vperm.xlu0 %3737, %v3610
        %v3739 = vpop.permute.xlu0 %3738
        %v3742 = vunpack.c.l.s4 839922192
        %v3743 = vunpack.c.0.s8 %v3742
        %v3744 = vlaneseq
        %v3745 = vshrl.u32 %v3744, 7
        %v3746 = vsub.s32 %v3743, %v3745
        %v3747 = vrot.slane %v3739, %v3746
        %3749 = vset.pattern.permute.xlu0 0
        %3750 = vperm.xlu0 %3749, %v3611
        %v3751 = vpop.permute.xlu0 %3750
        %v3754 = vunpack.c.l.s4 839922192
        %v3755 = vunpack.c.0.s8 %v3754
        %v3756 = vlaneseq
        %v3757 = vshrl.u32 %v3756, 7
        %v3758 = vsub.s32 %v3755, %v3757
        %v3759 = vrot.slane %v3751, %v3758
        %3761 = vset.pattern.permute.xlu0 0
        %3762 = vperm.xlu0 %3761, %v3612
        %v3763 = vpop.permute.xlu0 %3762
        %v3766 = vunpack.c.l.s4 839922192
        %v3767 = vunpack.c.0.s8 %v3766
        %v3768 = vlaneseq
        %v3769 = vshrl.u32 %v3768, 7
        %v3770 = vsub.s32 %v3767, %v3769
        %v3771 = vrot.slane %v3763, %v3770
        %3773 = vset.pattern.permute.xlu0 0
        %3774 = vperm.xlu0 %3773, %v3613
        %v3775 = vpop.permute.xlu0 %3774
        %v3778 = vunpack.c.l.s4 839922192
        %v3779 = vunpack.c.0.s8 %v3778
        %v3780 = vlaneseq
        %v3781 = vshrl.u32 %v3780, 7
        %v3782 = vsub.s32 %v3779, %v3781
        %v3783 = vrot.slane %v3775, %v3782
        %3785 = vset.pattern.permute.xlu0 0
        %3786 = vperm.xlu0 %3785, %v3614
        %v3787 = vpop.permute.xlu0 %3786
        %v3790 = vunpack.c.l.s4 839922192
        %v3791 = vunpack.c.0.s8 %v3790
        %v3792 = vlaneseq
        %v3793 = vshrl.u32 %v3792, 7
        %v3794 = vsub.s32 %v3791, %v3793
        %v3795 = vrot.slane %v3787, %v3794
        %3797 = vset.pattern.permute.xlu0 0
        %3798 = vperm.xlu0 %3797, %v3615
        %v3799 = vpop.permute.xlu0 %3798
        %v3802 = vunpack.c.l.s4 839922192
        %v3803 = vunpack.c.0.s8 %v3802
        %v3804 = vlaneseq
        %v3805 = vshrl.u32 %v3804, 7
        %v3806 = vsub.s32 %v3803, %v3805
        %v3807 = vrot.slane %v3799, %v3806
        %v3824 = vunpack.c.l.b16 %v3627
        %v3825 = vunpack.c.l.b16 %v3639
        %v3826 = vunpack.c.l.b16 %v3651
        %v3827 = vunpack.c.l.b16 %v3663
        %v3828 = vunpack.c.l.b16 %v3675
        %v3829 = vunpack.c.l.b16 %v3687
        %v3830 = vunpack.c.l.b16 %v3699
        %v3831 = vunpack.c.l.b16 %v3711
        %v3832 = vunpack.c.l.b16 %v3723
        %v3833 = vunpack.c.l.b16 %v3735
        %v3834 = vunpack.c.l.b16 %v3747
        %v3835 = vunpack.c.l.b16 %v3759
        %v3836 = vunpack.c.l.b16 %v3771
        %v3837 = vunpack.c.l.b16 %v3783
        %v3838 = vunpack.c.l.b16 %v3795
        %v3839 = vunpack.c.l.b16 %v3807
        %v3840 = vpack.c.b16 %v3825, %v3824
        %v3841 = vpack.c.b16 %v3827, %v3826
        %v3842 = vpack.c.b16 %v3829, %v3828
        %v3843 = vpack.c.b16 %v3831, %v3830
        %v3844 = vpack.c.b16 %v3833, %v3832
        %v3845 = vpack.c.b16 %v3835, %v3834
        %v3846 = vpack.c.b16 %v3837, %v3836
        %v3847 = vpack.c.b16 %v3839, %v3838
        %v3856 = vmul.bf16 %v3592, %v3840
        %v3857 = vmul.bf16 %v3593, %v3841
        %v3858 = vmul.bf16 %v3594, %v3842
        %v3859 = vmul.bf16 %v3595, %v3843
        %v3860 = vmul.bf16 %v3596, %v3844
        %v3861 = vmul.bf16 %v3597, %v3845
        %v3862 = vmul.bf16 %v3598, %v3846
        %v3863 = vmul.bf16 %v3599, %v3847
        %v3864 = vld [vmem:[#allocation3 + $0x8] sm:$0xff]
        %v3865 = vld [vmem:[#allocation3 + $0x10] sm:$0xff]
        %v3866 = vld [vmem:[#allocation3 + $0x18] sm:$0xff]
        %v3867 = vld [vmem:[#allocation3 + $0x20] sm:$0xff]
        %v3868 = vld [vmem:[#allocation3 + $0x28] sm:$0xff]
        %v3869 = vld [vmem:[#allocation3 + $0x30] sm:$0xff]
        %v3870 = vld [vmem:[#allocation3 + $0x38] sm:$0xff]
        %v3871 = vld [vmem:[#allocation3 + $0x40] sm:$0xff]
        %v3872 = vld [vmem:[#allocation3 + $0x48] sm:$0xff]
        %v3873 = vld [vmem:[#allocation3 + $0x50] sm:$0xff]
        %v3874 = vld [vmem:[#allocation3 + $0x58] sm:$0xff]
        %v3875 = vld [vmem:[#allocation3 + $0x60] sm:$0xff]
        %v3876 = vld [vmem:[#allocation3 + $0x68] sm:$0xff]
        %v3877 = vld [vmem:[#allocation3 + $0x70] sm:$0xff]
        %v3878 = vld [vmem:[#allocation3 + $0x78] sm:$0xff]
        %v3879 = vld [vmem:[#allocation3 + $0x80] sm:$0xff]
        %v3880 = vpack.c.bf16 %v3865, %v3864
        %v3881 = vpack.c.bf16 %v3867, %v3866
        %v3882 = vpack.c.bf16 %v3869, %v3868
        %v3883 = vpack.c.bf16 %v3871, %v3870
        %v3884 = vpack.c.bf16 %v3873, %v3872
        %v3885 = vpack.c.bf16 %v3875, %v3874
        %v3886 = vpack.c.bf16 %v3877, %v3876
        %v3887 = vpack.c.bf16 %v3879, %v3878
        %v3888 = vld [vmem:[%s835] sm:$0xf]
        %v3889 = vld [vmem:[%s835 + $0x4] sm:$0xf]
        %v3890 = vld [vmem:[%s835 + $0x8] sm:$0xf]
        %v3891 = vld [vmem:[%s835 + $0xc] sm:$0xf]
        %v3892 = vld [vmem:[%s835 + $0x10] sm:$0xf]
        %v3893 = vld [vmem:[%s835 + $0x14] sm:$0xf]
        %v3894 = vld [vmem:[%s835 + $0x18] sm:$0xf]
        %v3895 = vld [vmem:[%s835 + $0x1c] sm:$0xf]
        %v3896 = vld [vmem:[%s835 + $0x20] sm:$0xf]
        %v3897 = vld [vmem:[%s835 + $0x24] sm:$0xf]
        %v3898 = vld [vmem:[%s835 + $0x28] sm:$0xf]
        %v3899 = vld [vmem:[%s835 + $0x2c] sm:$0xf]
        %v3900 = vld [vmem:[%s835 + $0x30] sm:$0xf]
        %v3901 = vld [vmem:[%s835 + $0x34] sm:$0xf]
        %v3902 = vld [vmem:[%s835 + $0x38] sm:$0xf]
        %v3903 = vld [vmem:[%s835 + $0x3c] sm:$0xf]
        %3905 = vset.pattern.permute.xlu0 0
        %3906 = vperm.xlu0 %3905, %v3888
        %v3907 = vpop.permute.xlu0 %3906
        %v3910 = vunpack.c.l.s4 839922192
        %v3911 = vunpack.c.0.s8 %v3910
        %v3912 = vlaneseq
        %v3913 = vshrl.u32 %v3912, 7
        %v3914 = vsub.s32 %v3911, %v3913
        %v3915 = vrot.slane %v3907, %v3914
        %3917 = vset.pattern.permute.xlu0 0
        %3918 = vperm.xlu0 %3917, %v3889
        %v3919 = vpop.permute.xlu0 %3918
        %v3922 = vunpack.c.l.s4 839922192
        %v3923 = vunpack.c.0.s8 %v3922
        %v3924 = vlaneseq
        %v3925 = vshrl.u32 %v3924, 7
        %v3926 = vsub.s32 %v3923, %v3925
        %v3927 = vrot.slane %v3919, %v3926
        %3929 = vset.pattern.permute.xlu0 0
        %3930 = vperm.xlu0 %3929, %v3890
        %v3931 = vpop.permute.xlu0 %3930
        %v3934 = vunpack.c.l.s4 839922192
        %v3935 = vunpack.c.0.s8 %v3934
        %v3936 = vlaneseq
        %v3937 = vshrl.u32 %v3936, 7
        %v3938 = vsub.s32 %v3935, %v3937
        %v3939 = vrot.slane %v3931, %v3938
        %3941 = vset.pattern.permute.xlu0 0
        %3942 = vperm.xlu0 %3941, %v3891
        %v3943 = vpop.permute.xlu0 %3942
        %v3946 = vunpack.c.l.s4 839922192
        %v3947 = vunpack.c.0.s8 %v3946
        %v3948 = vlaneseq
        %v3949 = vshrl.u32 %v3948, 7
        %v3950 = vsub.s32 %v3947, %v3949
        %v3951 = vrot.slane %v3943, %v3950
        %3953 = vset.pattern.permute.xlu0 0
        %3954 = vperm.xlu0 %3953, %v3892
        %v3955 = vpop.permute.xlu0 %3954
        %v3958 = vunpack.c.l.s4 839922192
        %v3959 = vunpack.c.0.s8 %v3958
        %v3960 = vlaneseq
        %v3961 = vshrl.u32 %v3960, 7
        %v3962 = vsub.s32 %v3959, %v3961
        %v3963 = vrot.slane %v3955, %v3962
        %3965 = vset.pattern.permute.xlu0 0
        %3966 = vperm.xlu0 %3965, %v3893
        %v3967 = vpop.permute.xlu0 %3966
        %v3970 = vunpack.c.l.s4 839922192
        %v3971 = vunpack.c.0.s8 %v3970
        %v3972 = vlaneseq
        %v3973 = vshrl.u32 %v3972, 7
        %v3974 = vsub.s32 %v3971, %v3973
        %v3975 = vrot.slane %v3967, %v3974
        %3977 = vset.pattern.permute.xlu0 0
        %3978 = vperm.xlu0 %3977, %v3894
        %v3979 = vpop.permute.xlu0 %3978
        %v3982 = vunpack.c.l.s4 839922192
        %v3983 = vunpack.c.0.s8 %v3982
        %v3984 = vlaneseq
        %v3985 = vshrl.u32 %v3984, 7
        %v3986 = vsub.s32 %v3983, %v3985
        %v3987 = vrot.slane %v3979, %v3986
        %3989 = vset.pattern.permute.xlu0 0
        %3990 = vperm.xlu0 %3989, %v3895
        %v3991 = vpop.permute.xlu0 %3990
        %v3994 = vunpack.c.l.s4 839922192
        %v3995 = vunpack.c.0.s8 %v3994
        %v3996 = vlaneseq
        %v3997 = vshrl.u32 %v3996, 7
        %v3998 = vsub.s32 %v3995, %v3997
        %v3999 = vrot.slane %v3991, %v3998
        %4001 = vset.pattern.permute.xlu0 0
        %4002 = vperm.xlu0 %4001, %v3896
        %v4003 = vpop.permute.xlu0 %4002
        %v4006 = vunpack.c.l.s4 839922192
        %v4007 = vunpack.c.0.s8 %v4006
        %v4008 = vlaneseq
        %v4009 = vshrl.u32 %v4008, 7
        %v4010 = vsub.s32 %v4007, %v4009
        %v4011 = vrot.slane %v4003, %v4010
        %4013 = vset.pattern.permute.xlu0 0
        %4014 = vperm.xlu0 %4013, %v3897
        %v4015 = vpop.permute.xlu0 %4014
        %v4018 = vunpack.c.l.s4 839922192
        %v4019 = vunpack.c.0.s8 %v4018
        %v4020 = vlaneseq
        %v4021 = vshrl.u32 %v4020, 7
        %v4022 = vsub.s32 %v4019, %v4021
        %v4023 = vrot.slane %v4015, %v4022
        %4025 = vset.pattern.permute.xlu0 0
        %4026 = vperm.xlu0 %4025, %v3898
        %v4027 = vpop.permute.xlu0 %4026
        %v4030 = vunpack.c.l.s4 839922192
        %v4031 = vunpack.c.0.s8 %v4030
        %v4032 = vlaneseq
        %v4033 = vshrl.u32 %v4032, 7
        %v4034 = vsub.s32 %v4031, %v4033
        %v4035 = vrot.slane %v4027, %v4034
        %4037 = vset.pattern.permute.xlu0 0
        %4038 = vperm.xlu0 %4037, %v3899
        %v4039 = vpop.permute.xlu0 %4038
        %v4042 = vunpack.c.l.s4 839922192
        %v4043 = vunpack.c.0.s8 %v4042
        %v4044 = vlaneseq
        %v4045 = vshrl.u32 %v4044, 7
        %v4046 = vsub.s32 %v4043, %v4045
        %v4047 = vrot.slane %v4039, %v4046
        %4049 = vset.pattern.permute.xlu0 0
        %4050 = vperm.xlu0 %4049, %v3900
        %v4051 = vpop.permute.xlu0 %4050
        %v4054 = vunpack.c.l.s4 839922192
        %v4055 = vunpack.c.0.s8 %v4054
        %v4056 = vlaneseq
        %v4057 = vshrl.u32 %v4056, 7
        %v4058 = vsub.s32 %v4055, %v4057
        %v4059 = vrot.slane %v4051, %v4058
        %4061 = vset.pattern.permute.xlu0 0
        %4062 = vperm.xlu0 %4061, %v3901
        %v4063 = vpop.permute.xlu0 %4062
        %v4066 = vunpack.c.l.s4 839922192
        %v4067 = vunpack.c.0.s8 %v4066
        %v4068 = vlaneseq
        %v4069 = vshrl.u32 %v4068, 7
        %v4070 = vsub.s32 %v4067, %v4069
        %v4071 = vrot.slane %v4063, %v4070
        %4073 = vset.pattern.permute.xlu0 0
        %4074 = vperm.xlu0 %4073, %v3902
        %v4075 = vpop.permute.xlu0 %4074
        %v4078 = vunpack.c.l.s4 839922192
        %v4079 = vunpack.c.0.s8 %v4078
        %v4080 = vlaneseq
        %v4081 = vshrl.u32 %v4080, 7
        %v4082 = vsub.s32 %v4079, %v4081
        %v4083 = vrot.slane %v4075, %v4082
        %4085 = vset.pattern.permute.xlu0 0
        %4086 = vperm.xlu0 %4085, %v3903
        %v4087 = vpop.permute.xlu0 %4086
        %v4090 = vunpack.c.l.s4 839922192
        %v4091 = vunpack.c.0.s8 %v4090
        %v4092 = vlaneseq
        %v4093 = vshrl.u32 %v4092, 7
        %v4094 = vsub.s32 %v4091, %v4093
        %v4095 = vrot.slane %v4087, %v4094
        %v4112 = vunpack.c.l.b16 %v3915
        %v4113 = vunpack.c.l.b16 %v3927
        %v4114 = vunpack.c.l.b16 %v3939
        %v4115 = vunpack.c.l.b16 %v3951
        %v4116 = vunpack.c.l.b16 %v3963
        %v4117 = vunpack.c.l.b16 %v3975
        %v4118 = vunpack.c.l.b16 %v3987
        %v4119 = vunpack.c.l.b16 %v3999
        %v4120 = vunpack.c.l.b16 %v4011
        %v4121 = vunpack.c.l.b16 %v4023
        %v4122 = vunpack.c.l.b16 %v4035
        %v4123 = vunpack.c.l.b16 %v4047
        %v4124 = vunpack.c.l.b16 %v4059
        %v4125 = vunpack.c.l.b16 %v4071
        %v4126 = vunpack.c.l.b16 %v4083
        %v4127 = vunpack.c.l.b16 %v4095
        %v4128 = vpack.c.b16 %v4113, %v4112
        %v4129 = vpack.c.b16 %v4115, %v4114
        %v4130 = vpack.c.b16 %v4117, %v4116
        %v4131 = vpack.c.b16 %v4119, %v4118
        %v4132 = vpack.c.b16 %v4121, %v4120
        %v4133 = vpack.c.b16 %v4123, %v4122
        %v4134 = vpack.c.b16 %v4125, %v4124
        %v4135 = vpack.c.b16 %v4127, %v4126
        %v4144 = vmul.bf16 %v3880, %v4128
        %v4145 = vmul.bf16 %v3881, %v4129
        %v4146 = vmul.bf16 %v3882, %v4130
        %v4147 = vmul.bf16 %v3883, %v4131
        %v4148 = vmul.bf16 %v3884, %v4132
        %v4149 = vmul.bf16 %v3885, %v4133
        %v4150 = vmul.bf16 %v3886, %v4134
        %v4151 = vmul.bf16 %v3887, %v4135
        %v4152 = vld [vmem:[#allocation3 + $0x9] sm:$0xff]
        %v4153 = vld [vmem:[#allocation3 + $0x11] sm:$0xff]
        %v4154 = vld [vmem:[#allocation3 + $0x19] sm:$0xff]
        %v4155 = vld [vmem:[#allocation3 + $0x21] sm:$0xff]
        %v4156 = vld [vmem:[#allocation3 + $0x29] sm:$0xff]
        %v4157 = vld [vmem:[#allocation3 + $0x31] sm:$0xff]
        %v4158 = vld [vmem:[#allocation3 + $0x39] sm:$0xff]
        %v4159 = vld [vmem:[#allocation3 + $0x41] sm:$0xff]
        %v4160 = vld [vmem:[#allocation3 + $0x49] sm:$0xff]
        %v4161 = vld [vmem:[#allocation3 + $0x51] sm:$0xff]
        %v4162 = vld [vmem:[#allocation3 + $0x59] sm:$0xff]
        %v4163 = vld [vmem:[#allocation3 + $0x61] sm:$0xff]
        %v4164 = vld [vmem:[#allocation3 + $0x69] sm:$0xff]
        %v4165 = vld [vmem:[#allocation3 + $0x71] sm:$0xff]
        %v4166 = vld [vmem:[#allocation3 + $0x79] sm:$0xff]
        %v4167 = vld [vmem:[#allocation3 + $0x81] sm:$0xff]
        %v4168 = vpack.c.bf16 %v4153, %v4152
        %v4169 = vpack.c.bf16 %v4155, %v4154
        %v4170 = vpack.c.bf16 %v4157, %v4156
        %v4171 = vpack.c.bf16 %v4159, %v4158
        %v4172 = vpack.c.bf16 %v4161, %v4160
        %v4173 = vpack.c.bf16 %v4163, %v4162
        %v4174 = vpack.c.bf16 %v4165, %v4164
        %v4175 = vpack.c.bf16 %v4167, %v4166
        %v4176 = vld [vmem:[%s1124] sm:$0xf]
        %v4177 = vld [vmem:[%s1124 + $0x4] sm:$0xf]
        %v4178 = vld [vmem:[%s1124 + $0x8] sm:$0xf]
        %v4179 = vld [vmem:[%s1124 + $0xc] sm:$0xf]
        %v4180 = vld [vmem:[%s1124 + $0x10] sm:$0xf]
        %v4181 = vld [vmem:[%s1124 + $0x14] sm:$0xf]
        %v4182 = vld [vmem:[%s1124 + $0x18] sm:$0xf]
        %v4183 = vld [vmem:[%s1124 + $0x1c] sm:$0xf]
        %v4184 = vld [vmem:[%s1124 + $0x20] sm:$0xf]
        %v4185 = vld [vmem:[%s1124 + $0x24] sm:$0xf]
        %v4186 = vld [vmem:[%s1124 + $0x28] sm:$0xf]
        %v4187 = vld [vmem:[%s1124 + $0x2c] sm:$0xf]
        %v4188 = vld [vmem:[%s1124 + $0x30] sm:$0xf]
        %v4189 = vld [vmem:[%s1124 + $0x34] sm:$0xf]
        %v4190 = vld [vmem:[%s1124 + $0x38] sm:$0xf]
        %v4191 = vld [vmem:[%s1124 + $0x3c] sm:$0xf]
        %4193 = vset.pattern.permute.xlu0 0
        %4194 = vperm.xlu0 %4193, %v4176
        %v4195 = vpop.permute.xlu0 %4194
        %v4198 = vunpack.c.l.s4 839922192
        %v4199 = vunpack.c.0.s8 %v4198
        %v4200 = vlaneseq
        %v4201 = vshrl.u32 %v4200, 7
        %v4202 = vsub.s32 %v4199, %v4201
        %v4203 = vrot.slane %v4195, %v4202
        %4205 = vset.pattern.permute.xlu0 0
        %4206 = vperm.xlu0 %4205, %v4177
        %v4207 = vpop.permute.xlu0 %4206
        %v4210 = vunpack.c.l.s4 839922192
        %v4211 = vunpack.c.0.s8 %v4210
        %v4212 = vlaneseq
        %v4213 = vshrl.u32 %v4212, 7
        %v4214 = vsub.s32 %v4211, %v4213
        %v4215 = vrot.slane %v4207, %v4214
        %4217 = vset.pattern.permute.xlu0 0
        %4218 = vperm.xlu0 %4217, %v4178
        %v4219 = vpop.permute.xlu0 %4218
        %v4222 = vunpack.c.l.s4 839922192
        %v4223 = vunpack.c.0.s8 %v4222
        %v4224 = vlaneseq
        %v4225 = vshrl.u32 %v4224, 7
        %v4226 = vsub.s32 %v4223, %v4225
        %v4227 = vrot.slane %v4219, %v4226
        %4229 = vset.pattern.permute.xlu0 0
        %4230 = vperm.xlu0 %4229, %v4179
        %v4231 = vpop.permute.xlu0 %4230
        %v4234 = vunpack.c.l.s4 839922192
        %v4235 = vunpack.c.0.s8 %v4234
        %v4236 = vlaneseq
        %v4237 = vshrl.u32 %v4236, 7
        %v4238 = vsub.s32 %v4235, %v4237
        %v4239 = vrot.slane %v4231, %v4238
        %4241 = vset.pattern.permute.xlu0 0
        %4242 = vperm.xlu0 %4241, %v4180
        %v4243 = vpop.permute.xlu0 %4242
        %v4246 = vunpack.c.l.s4 839922192
        %v4247 = vunpack.c.0.s8 %v4246
        %v4248 = vlaneseq
        %v4249 = vshrl.u32 %v4248, 7
        %v4250 = vsub.s32 %v4247, %v4249
        %v4251 = vrot.slane %v4243, %v4250
        %4253 = vset.pattern.permute.xlu0 0
        %4254 = vperm.xlu0 %4253, %v4181
        %v4255 = vpop.permute.xlu0 %4254
        %v4258 = vunpack.c.l.s4 839922192
        %v4259 = vunpack.c.0.s8 %v4258
        %v4260 = vlaneseq
        %v4261 = vshrl.u32 %v4260, 7
        %v4262 = vsub.s32 %v4259, %v4261
        %v4263 = vrot.slane %v4255, %v4262
        %4265 = vset.pattern.permute.xlu0 0
        %4266 = vperm.xlu0 %4265, %v4182
        %v4267 = vpop.permute.xlu0 %4266
        %v4270 = vunpack.c.l.s4 839922192
        %v4271 = vunpack.c.0.s8 %v4270
        %v4272 = vlaneseq
        %v4273 = vshrl.u32 %v4272, 7
        %v4274 = vsub.s32 %v4271, %v4273
        %v4275 = vrot.slane %v4267, %v4274
        %4277 = vset.pattern.permute.xlu0 0
        %4278 = vperm.xlu0 %4277, %v4183
        %v4279 = vpop.permute.xlu0 %4278
        %v4282 = vunpack.c.l.s4 839922192
        %v4283 = vunpack.c.0.s8 %v4282
        %v4284 = vlaneseq
        %v4285 = vshrl.u32 %v4284, 7
        %v4286 = vsub.s32 %v4283, %v4285
        %v4287 = vrot.slane %v4279, %v4286
        %4289 = vset.pattern.permute.xlu0 0
        %4290 = vperm.xlu0 %4289, %v4184
        %v4291 = vpop.permute.xlu0 %4290
        %v4294 = vunpack.c.l.s4 839922192
        %v4295 = vunpack.c.0.s8 %v4294
        %v4296 = vlaneseq
        %v4297 = vshrl.u32 %v4296, 7
        %v4298 = vsub.s32 %v4295, %v4297
        %v4299 = vrot.slane %v4291, %v4298
        %4301 = vset.pattern.permute.xlu0 0
        %4302 = vperm.xlu0 %4301, %v4185
        %v4303 = vpop.permute.xlu0 %4302
        %v4306 = vunpack.c.l.s4 839922192
        %v4307 = vunpack.c.0.s8 %v4306
        %v4308 = vlaneseq
        %v4309 = vshrl.u32 %v4308, 7
        %v4310 = vsub.s32 %v4307, %v4309
        %v4311 = vrot.slane %v4303, %v4310
        %4313 = vset.pattern.permute.xlu0 0
        %4314 = vperm.xlu0 %4313, %v4186
        %v4315 = vpop.permute.xlu0 %4314
        %v4318 = vunpack.c.l.s4 839922192
        %v4319 = vunpack.c.0.s8 %v4318
        %v4320 = vlaneseq
        %v4321 = vshrl.u32 %v4320, 7
        %v4322 = vsub.s32 %v4319, %v4321
        %v4323 = vrot.slane %v4315, %v4322
        %4325 = vset.pattern.permute.xlu0 0
        %4326 = vperm.xlu0 %4325, %v4187
        %v4327 = vpop.permute.xlu0 %4326
        %v4330 = vunpack.c.l.s4 839922192
        %v4331 = vunpack.c.0.s8 %v4330
        %v4332 = vlaneseq
        %v4333 = vshrl.u32 %v4332, 7
        %v4334 = vsub.s32 %v4331, %v4333
        %v4335 = vrot.slane %v4327, %v4334
        %4337 = vset.pattern.permute.xlu0 0
        %4338 = vperm.xlu0 %4337, %v4188
        %v4339 = vpop.permute.xlu0 %4338
        %v4342 = vunpack.c.l.s4 839922192
        %v4343 = vunpack.c.0.s8 %v4342
        %v4344 = vlaneseq
        %v4345 = vshrl.u32 %v4344, 7
        %v4346 = vsub.s32 %v4343, %v4345
        %v4347 = vrot.slane %v4339, %v4346
        %4349 = vset.pattern.permute.xlu0 0
        %4350 = vperm.xlu0 %4349, %v4189
        %v4351 = vpop.permute.xlu0 %4350
        %v4354 = vunpack.c.l.s4 839922192
        %v4355 = vunpack.c.0.s8 %v4354
        %v4356 = vlaneseq
        %v4357 = vshrl.u32 %v4356, 7
        %v4358 = vsub.s32 %v4355, %v4357
        %v4359 = vrot.slane %v4351, %v4358
        %4361 = vset.pattern.permute.xlu0 0
        %4362 = vperm.xlu0 %4361, %v4190
        %v4363 = vpop.permute.xlu0 %4362
        %v4366 = vunpack.c.l.s4 839922192
        %v4367 = vunpack.c.0.s8 %v4366
        %v4368 = vlaneseq
        %v4369 = vshrl.u32 %v4368, 7
        %v4370 = vsub.s32 %v4367, %v4369
        %v4371 = vrot.slane %v4363, %v4370
        %4373 = vset.pattern.permute.xlu0 0
        %4374 = vperm.xlu0 %4373, %v4191
        %v4375 = vpop.permute.xlu0 %4374
        %v4378 = vunpack.c.l.s4 839922192
        %v4379 = vunpack.c.0.s8 %v4378
        %v4380 = vlaneseq
        %v4381 = vshrl.u32 %v4380, 7
        %v4382 = vsub.s32 %v4379, %v4381
        %v4383 = vrot.slane %v4375, %v4382
        %v4400 = vunpack.c.l.b16 %v4203
        %v4401 = vunpack.c.l.b16 %v4215
        %v4402 = vunpack.c.l.b16 %v4227
        %v4403 = vunpack.c.l.b16 %v4239
        %v4404 = vunpack.c.l.b16 %v4251
        %v4405 = vunpack.c.l.b16 %v4263
        %v4406 = vunpack.c.l.b16 %v4275
        %v4407 = vunpack.c.l.b16 %v4287
        %v4408 = vunpack.c.l.b16 %v4299
        %v4409 = vunpack.c.l.b16 %v4311
        %v4410 = vunpack.c.l.b16 %v4323
        %v4411 = vunpack.c.l.b16 %v4335
        %v4412 = vunpack.c.l.b16 %v4347
        %v4413 = vunpack.c.l.b16 %v4359
        %v4414 = vunpack.c.l.b16 %v4371
        %v4415 = vunpack.c.l.b16 %v4383
        %v4416 = vpack.c.b16 %v4401, %v4400
        %v4417 = vpack.c.b16 %v4403, %v4402
        %v4418 = vpack.c.b16 %v4405, %v4404
        %v4419 = vpack.c.b16 %v4407, %v4406
        %v4420 = vpack.c.b16 %v4409, %v4408
        %v4421 = vpack.c.b16 %v4411, %v4410
        %v4422 = vpack.c.b16 %v4413, %v4412
        %v4423 = vpack.c.b16 %v4415, %v4414
        %v4432 = vmul.bf16 %v4168, %v4416
        %v4433 = vmul.bf16 %v4169, %v4417
        %v4434 = vmul.bf16 %v4170, %v4418
        %v4435 = vmul.bf16 %v4171, %v4419
        %v4436 = vmul.bf16 %v4172, %v4420
        %v4437 = vmul.bf16 %v4173, %v4421
        %v4438 = vmul.bf16 %v4174, %v4422
        %v4439 = vmul.bf16 %v4175, %v4423
        %v4440 = vld [vmem:[#allocation3 + $0xf] sm:$0xff]
        %v4441 = vld [vmem:[#allocation3 + $0x17] sm:$0xff]
        %v4442 = vld [vmem:[#allocation3 + $0x1f] sm:$0xff]
        %v4443 = vld [vmem:[#allocation3 + $0x27] sm:$0xff]
        %v4444 = vld [vmem:[#allocation3 + $0x2f] sm:$0xff]
        %v4445 = vld [vmem:[#allocation3 + $0x37] sm:$0xff]
        %v4446 = vld [vmem:[#allocation3 + $0x3f] sm:$0xff]
        %v4447 = vld [vmem:[#allocation3 + $0x47] sm:$0xff]
        %v4448 = vld [vmem:[#allocation3 + $0x4f] sm:$0xff]
        %v4449 = vld [vmem:[#allocation3 + $0x57] sm:$0xff]
        %v4450 = vld [vmem:[#allocation3 + $0x5f] sm:$0xff]
        %v4451 = vld [vmem:[#allocation3 + $0x67] sm:$0xff]
        %v4452 = vld [vmem:[#allocation3 + $0x6f] sm:$0xff]
        %v4453 = vld [vmem:[#allocation3 + $0x77] sm:$0xff]
        %v4454 = vld [vmem:[#allocation3 + $0x7f] sm:$0xff]
        %v4455 = vld [vmem:[#allocation3 + $0x87] sm:$0xff]
        %v4456 = vpack.c.bf16 %v4441, %v4440
        %v4457 = vpack.c.bf16 %v4443, %v4442
        %v4458 = vpack.c.bf16 %v4445, %v4444
        %v4459 = vpack.c.bf16 %v4447, %v4446
        %v4460 = vpack.c.bf16 %v4449, %v4448
        %v4461 = vpack.c.bf16 %v4451, %v4450
        %v4462 = vpack.c.bf16 %v4453, %v4452
        %v4463 = vpack.c.bf16 %v4455, %v4454
        %v4464 = vld [vmem:[%s1413] sm:$0xf]
        %v4465 = vld [vmem:[%s1413 + $0x4] sm:$0xf]
        %v4466 = vld [vmem:[%s1413 + $0x8] sm:$0xf]
        %v4467 = vld [vmem:[%s1413 + $0xc] sm:$0xf]
        %v4468 = vld [vmem:[%s1413 + $0x10] sm:$0xf]
        %v4469 = vld [vmem:[%s1413 + $0x14] sm:$0xf]
        %v4470 = vld [vmem:[%s1413 + $0x18] sm:$0xf]
        %v4471 = vld [vmem:[%s1413 + $0x1c] sm:$0xf]
        %v4472 = vld [vmem:[%s1413 + $0x20] sm:$0xf]
        %v4473 = vld [vmem:[%s1413 + $0x24] sm:$0xf]
        %v4474 = vld [vmem:[%s1413 + $0x28] sm:$0xf]
        %v4475 = vld [vmem:[%s1413 + $0x2c] sm:$0xf]
        %v4476 = vld [vmem:[%s1413 + $0x30] sm:$0xf]
        %v4477 = vld [vmem:[%s1413 + $0x34] sm:$0xf]
        %v4478 = vld [vmem:[%s1413 + $0x38] sm:$0xf]
        %v4479 = vld [vmem:[%s1413 + $0x3c] sm:$0xf]
        %4481 = vset.pattern.permute.xlu0 0
        %4482 = vperm.xlu0 %4481, %v4464
        %v4483 = vpop.permute.xlu0 %4482
        %v4486 = vunpack.c.l.s4 839922192
        %v4487 = vunpack.c.0.s8 %v4486
        %v4488 = vlaneseq
        %v4489 = vshrl.u32 %v4488, 7
        %v4490 = vsub.s32 %v4487, %v4489
        %v4491 = vrot.slane %v4483, %v4490
        %4493 = vset.pattern.permute.xlu0 0
        %4494 = vperm.xlu0 %4493, %v4465
        %v4495 = vpop.permute.xlu0 %4494
        %v4498 = vunpack.c.l.s4 839922192
        %v4499 = vunpack.c.0.s8 %v4498
        %v4500 = vlaneseq
        %v4501 = vshrl.u32 %v4500, 7
        %v4502 = vsub.s32 %v4499, %v4501
        %v4503 = vrot.slane %v4495, %v4502
        %4505 = vset.pattern.permute.xlu0 0
        %4506 = vperm.xlu0 %4505, %v4466
        %v4507 = vpop.permute.xlu0 %4506
        %v4510 = vunpack.c.l.s4 839922192
        %v4511 = vunpack.c.0.s8 %v4510
        %v4512 = vlaneseq
        %v4513 = vshrl.u32 %v4512, 7
        %v4514 = vsub.s32 %v4511, %v4513
        %v4515 = vrot.slane %v4507, %v4514
        %4517 = vset.pattern.permute.xlu0 0
        %4518 = vperm.xlu0 %4517, %v4467
        %v4519 = vpop.permute.xlu0 %4518
        %v4522 = vunpack.c.l.s4 839922192
        %v4523 = vunpack.c.0.s8 %v4522
        %v4524 = vlaneseq
        %v4525 = vshrl.u32 %v4524, 7
        %v4526 = vsub.s32 %v4523, %v4525
        %v4527 = vrot.slane %v4519, %v4526
        %4529 = vset.pattern.permute.xlu0 0
        %4530 = vperm.xlu0 %4529, %v4468
        %v4531 = vpop.permute.xlu0 %4530
        %v4534 = vunpack.c.l.s4 839922192
        %v4535 = vunpack.c.0.s8 %v4534
        %v4536 = vlaneseq
        %v4537 = vshrl.u32 %v4536, 7
        %v4538 = vsub.s32 %v4535, %v4537
        %v4539 = vrot.slane %v4531, %v4538
        %4541 = vset.pattern.permute.xlu0 0
        %4542 = vperm.xlu0 %4541, %v4469
        %v4543 = vpop.permute.xlu0 %4542
        %v4546 = vunpack.c.l.s4 839922192
        %v4547 = vunpack.c.0.s8 %v4546
        %v4548 = vlaneseq
        %v4549 = vshrl.u32 %v4548, 7
        %v4550 = vsub.s32 %v4547, %v4549
        %v4551 = vrot.slane %v4543, %v4550
        %4553 = vset.pattern.permute.xlu0 0
        %4554 = vperm.xlu0 %4553, %v4470
        %v4555 = vpop.permute.xlu0 %4554
        %v4558 = vunpack.c.l.s4 839922192
        %v4559 = vunpack.c.0.s8 %v4558
        %v4560 = vlaneseq
        %v4561 = vshrl.u32 %v4560, 7
        %v4562 = vsub.s32 %v4559, %v4561
        %v4563 = vrot.slane %v4555, %v4562
        %4565 = vset.pattern.permute.xlu0 0
        %4566 = vperm.xlu0 %4565, %v4471
        %v4567 = vpop.permute.xlu0 %4566
        %v4570 = vunpack.c.l.s4 839922192
        %v4571 = vunpack.c.0.s8 %v4570
        %v4572 = vlaneseq
        %v4573 = vshrl.u32 %v4572, 7
        %v4574 = vsub.s32 %v4571, %v4573
        %v4575 = vrot.slane %v4567, %v4574
        %4577 = vset.pattern.permute.xlu0 0
        %4578 = vperm.xlu0 %4577, %v4472
        %v4579 = vpop.permute.xlu0 %4578
        %v4582 = vunpack.c.l.s4 839922192
        %v4583 = vunpack.c.0.s8 %v4582
        %v4584 = vlaneseq
        %v4585 = vshrl.u32 %v4584, 7
        %v4586 = vsub.s32 %v4583, %v4585
        %v4587 = vrot.slane %v4579, %v4586
        %4589 = vset.pattern.permute.xlu0 0
        %4590 = vperm.xlu0 %4589, %v4473
        %v4591 = vpop.permute.xlu0 %4590
        %v4594 = vunpack.c.l.s4 839922192
        %v4595 = vunpack.c.0.s8 %v4594
        %v4596 = vlaneseq
        %v4597 = vshrl.u32 %v4596, 7
        %v4598 = vsub.s32 %v4595, %v4597
        %v4599 = vrot.slane %v4591, %v4598
        %4601 = vset.pattern.permute.xlu0 0
        %4602 = vperm.xlu0 %4601, %v4474
        %v4603 = vpop.permute.xlu0 %4602
        %v4606 = vunpack.c.l.s4 839922192
        %v4607 = vunpack.c.0.s8 %v4606
        %v4608 = vlaneseq
        %v4609 = vshrl.u32 %v4608, 7
        %v4610 = vsub.s32 %v4607, %v4609
        %v4611 = vrot.slane %v4603, %v4610
        %4613 = vset.pattern.permute.xlu0 0
        %4614 = vperm.xlu0 %4613, %v4475
        %v4615 = vpop.permute.xlu0 %4614
        %v4618 = vunpack.c.l.s4 839922192
        %v4619 = vunpack.c.0.s8 %v4618
        %v4620 = vlaneseq
        %v4621 = vshrl.u32 %v4620, 7
        %v4622 = vsub.s32 %v4619, %v4621
        %v4623 = vrot.slane %v4615, %v4622
        %4625 = vset.pattern.permute.xlu0 0
        %4626 = vperm.xlu0 %4625, %v4476
        %v4627 = vpop.permute.xlu0 %4626
        %v4630 = vunpack.c.l.s4 839922192
        %v4631 = vunpack.c.0.s8 %v4630
        %v4632 = vlaneseq
        %v4633 = vshrl.u32 %v4632, 7
        %v4634 = vsub.s32 %v4631, %v4633
        %v4635 = vrot.slane %v4627, %v4634
        %4637 = vset.pattern.permute.xlu0 0
        %4638 = vperm.xlu0 %4637, %v4477
        %v4639 = vpop.permute.xlu0 %4638
        %v4642 = vunpack.c.l.s4 839922192
        %v4643 = vunpack.c.0.s8 %v4642
        %v4644 = vlaneseq
        %v4645 = vshrl.u32 %v4644, 7
        %v4646 = vsub.s32 %v4643, %v4645
        %v4647 = vrot.slane %v4639, %v4646
        %4649 = vset.pattern.permute.xlu0 0
        %4650 = vperm.xlu0 %4649, %v4478
        %v4651 = vpop.permute.xlu0 %4650
        %v4654 = vunpack.c.l.s4 839922192
        %v4655 = vunpack.c.0.s8 %v4654
        %v4656 = vlaneseq
        %v4657 = vshrl.u32 %v4656, 7
        %v4658 = vsub.s32 %v4655, %v4657
        %v4659 = vrot.slane %v4651, %v4658
        %4661 = vset.pattern.permute.xlu0 0
        %4662 = vperm.xlu0 %4661, %v4479
        %v4663 = vpop.permute.xlu0 %4662
        %v4666 = vunpack.c.l.s4 839922192
        %v4667 = vunpack.c.0.s8 %v4666
        %v4668 = vlaneseq
        %v4669 = vshrl.u32 %v4668, 7
        %v4670 = vsub.s32 %v4667, %v4669
        %v4671 = vrot.slane %v4663, %v4670
        %v4688 = vunpack.c.l.b16 %v4491
        %v4689 = vunpack.c.l.b16 %v4503
        %v4690 = vunpack.c.l.b16 %v4515
        %v4691 = vunpack.c.l.b16 %v4527
        %v4692 = vunpack.c.l.b16 %v4539
        %v4693 = vunpack.c.l.b16 %v4551
        %v4694 = vunpack.c.l.b16 %v4563
        %v4695 = vunpack.c.l.b16 %v4575
        %v4696 = vunpack.c.l.b16 %v4587
        %v4697 = vunpack.c.l.b16 %v4599
        %v4698 = vunpack.c.l.b16 %v4611
        %v4699 = vunpack.c.l.b16 %v4623
        %v4700 = vunpack.c.l.b16 %v4635
        %v4701 = vunpack.c.l.b16 %v4647
        %v4702 = vunpack.c.l.b16 %v4659
        %v4703 = vunpack.c.l.b16 %v4671
        %v4704 = vpack.c.b16 %v4689, %v4688
        %v4705 = vpack.c.b16 %v4691, %v4690
        %v4706 = vpack.c.b16 %v4693, %v4692
        %v4707 = vpack.c.b16 %v4695, %v4694
        %v4708 = vpack.c.b16 %v4697, %v4696
        %v4709 = vpack.c.b16 %v4699, %v4698
        %v4710 = vpack.c.b16 %v4701, %v4700
        %v4711 = vpack.c.b16 %v4703, %v4702
        %v4720 = vmul.bf16 %v4456, %v4704
        %v4721 = vmul.bf16 %v4457, %v4705
        %v4722 = vmul.bf16 %v4458, %v4706
        %v4723 = vmul.bf16 %v4459, %v4707
        %v4724 = vmul.bf16 %v4460, %v4708
        %v4725 = vmul.bf16 %v4461, %v4709
        %v4726 = vmul.bf16 %v4462, %v4710
        %v4727 = vmul.bf16 %v4463, %v4711
        %v4728 = vld [vmem:[#allocation3 + $0x10] sm:$0xff]
        %v4729 = vld [vmem:[#allocation3 + $0x18] sm:$0xff]
        %v4730 = vld [vmem:[#allocation3 + $0x20] sm:$0xff]
        %v4731 = vld [vmem:[#allocation3 + $0x28] sm:$0xff]
        %v4732 = vld [vmem:[#allocation3 + $0x30] sm:$0xff]
        %v4733 = vld [vmem:[#allocation3 + $0x38] sm:$0xff]
        %v4734 = vld [vmem:[#allocation3 + $0x40] sm:$0xff]
        %v4735 = vld [vmem:[#allocation3 + $0x48] sm:$0xff]
        %v4736 = vld [vmem:[#allocation3 + $0x50] sm:$0xff]
        %v4737 = vld [vmem:[#allocation3 + $0x58] sm:$0xff]
        %v4738 = vld [vmem:[#allocation3 + $0x60] sm:$0xff]
        %v4739 = vld [vmem:[#allocation3 + $0x68] sm:$0xff]
        %v4740 = vld [vmem:[#allocation3 + $0x70] sm:$0xff]
        %v4741 = vld [vmem:[#allocation3 + $0x78] sm:$0xff]
        %v4742 = vld [vmem:[#allocation3 + $0x80] sm:$0xff]
        %v4743 = vld [vmem:[#allocation3 + $0x88] sm:$0xff]
        %v4744 = vpack.c.bf16 %v4729, %v4728
        %v4745 = vpack.c.bf16 %v4731, %v4730
        %v4746 = vpack.c.bf16 %v4733, %v4732
        %v4747 = vpack.c.bf16 %v4735, %v4734
        %v4748 = vpack.c.bf16 %v4737, %v4736
        %v4749 = vpack.c.bf16 %v4739, %v4738
        %v4750 = vpack.c.bf16 %v4741, %v4740
        %v4751 = vpack.c.bf16 %v4743, %v4742
        %v4752 = vld [vmem:[#allocation3 + $0x11] sm:$0xff]
        %v4753 = vld [vmem:[#allocation3 + $0x19] sm:$0xff]
        %v4754 = vld [vmem:[#allocation3 + $0x21] sm:$0xff]
        %v4755 = vld [vmem:[#allocation3 + $0x29] sm:$0xff]
        %v4756 = vld [vmem:[#allocation3 + $0x31] sm:$0xff]
        %v4757 = vld [vmem:[#allocation3 + $0x39] sm:$0xff]
        %v4758 = vld [vmem:[#allocation3 + $0x41] sm:$0xff]
        %v4759 = vld [vmem:[#allocation3 + $0x49] sm:$0xff]
        %v4760 = vld [vmem:[#allocation3 + $0x51] sm:$0xff]
        %v4761 = vld [vmem:[#allocation3 + $0x59] sm:$0xff]
        %v4762 = vld [vmem:[#allocation3 + $0x61] sm:$0xff]
        %v4763 = vld [vmem:[#allocation3 + $0x69] sm:$0xff]
        %v4764 = vld [vmem:[#allocation3 + $0x71] sm:$0xff]
        %v4765 = vld [vmem:[#allocation3 + $0x79] sm:$0xff]
        %v4766 = vld [vmem:[#allocation3 + $0x81] sm:$0xff]
        %v4767 = vld [vmem:[#allocation3 + $0x89] sm:$0xff]
        %v4768 = vpack.c.bf16 %v4753, %v4752
        %v4769 = vpack.c.bf16 %v4755, %v4754
        %v4770 = vpack.c.bf16 %v4757, %v4756
        %v4771 = vpack.c.bf16 %v4759, %v4758
        %v4772 = vpack.c.bf16 %v4761, %v4760
        %v4773 = vpack.c.bf16 %v4763, %v4762
        %v4774 = vpack.c.bf16 %v4765, %v4764
        %v4775 = vpack.c.bf16 %v4767, %v4766
        %v4776 = vld [vmem:[%s1726] sm:$0xf]
        %v4777 = vld [vmem:[%s1726 + $0x4] sm:$0xf]
        %v4778 = vld [vmem:[%s1726 + $0x8] sm:$0xf]
        %v4779 = vld [vmem:[%s1726 + $0xc] sm:$0xf]
        %v4780 = vld [vmem:[%s1726 + $0x10] sm:$0xf]
        %v4781 = vld [vmem:[%s1726 + $0x14] sm:$0xf]
        %v4782 = vld [vmem:[%s1726 + $0x18] sm:$0xf]
        %v4783 = vld [vmem:[%s1726 + $0x1c] sm:$0xf]
        %v4784 = vld [vmem:[%s1726 + $0x20] sm:$0xf]
        %v4785 = vld [vmem:[%s1726 + $0x24] sm:$0xf]
        %v4786 = vld [vmem:[%s1726 + $0x28] sm:$0xf]
        %v4787 = vld [vmem:[%s1726 + $0x2c] sm:$0xf]
        %v4788 = vld [vmem:[%s1726 + $0x30] sm:$0xf]
        %v4789 = vld [vmem:[%s1726 + $0x34] sm:$0xf]
        %v4790 = vld [vmem:[%s1726 + $0x38] sm:$0xf]
        %v4791 = vld [vmem:[%s1726 + $0x3c] sm:$0xf]
        %4793 = vset.pattern.permute.xlu0 0
        %4794 = vperm.xlu0 %4793, %v4776
        %v4795 = vpop.permute.xlu0 %4794
        %v4798 = vunpack.c.l.s4 839922192
        %v4799 = vunpack.c.0.s8 %v4798
        %v4800 = vlaneseq
        %v4801 = vshrl.u32 %v4800, 7
        %v4802 = vsub.s32 %v4799, %v4801
        %v4803 = vrot.slane %v4795, %v4802
        %4805 = vset.pattern.permute.xlu0 0
        %4806 = vperm.xlu0 %4805, %v4777
        %v4807 = vpop.permute.xlu0 %4806
        %v4810 = vunpack.c.l.s4 839922192
        %v4811 = vunpack.c.0.s8 %v4810
        %v4812 = vlaneseq
        %v4813 = vshrl.u32 %v4812, 7
        %v4814 = vsub.s32 %v4811, %v4813
        %v4815 = vrot.slane %v4807, %v4814
        %4817 = vset.pattern.permute.xlu0 0
        %4818 = vperm.xlu0 %4817, %v4778
        %v4819 = vpop.permute.xlu0 %4818
        %v4822 = vunpack.c.l.s4 839922192
        %v4823 = vunpack.c.0.s8 %v4822
        %v4824 = vlaneseq
        %v4825 = vshrl.u32 %v4824, 7
        %v4826 = vsub.s32 %v4823, %v4825
        %v4827 = vrot.slane %v4819, %v4826
        %4829 = vset.pattern.permute.xlu0 0
        %4830 = vperm.xlu0 %4829, %v4779
        %v4831 = vpop.permute.xlu0 %4830
        %v4834 = vunpack.c.l.s4 839922192
        %v4835 = vunpack.c.0.s8 %v4834
        %v4836 = vlaneseq
        %v4837 = vshrl.u32 %v4836, 7
        %v4838 = vsub.s32 %v4835, %v4837
        %v4839 = vrot.slane %v4831, %v4838
        %4841 = vset.pattern.permute.xlu0 0
        %4842 = vperm.xlu0 %4841, %v4780
        %v4843 = vpop.permute.xlu0 %4842
        %v4846 = vunpack.c.l.s4 839922192
        %v4847 = vunpack.c.0.s8 %v4846
        %v4848 = vlaneseq
        %v4849 = vshrl.u32 %v4848, 7
        %v4850 = vsub.s32 %v4847, %v4849
        %v4851 = vrot.slane %v4843, %v4850
        %4853 = vset.pattern.permute.xlu0 0
        %4854 = vperm.xlu0 %4853, %v4781
        %v4855 = vpop.permute.xlu0 %4854
        %v4858 = vunpack.c.l.s4 839922192
        %v4859 = vunpack.c.0.s8 %v4858
        %v4860 = vlaneseq
        %v4861 = vshrl.u32 %v4860, 7
        %v4862 = vsub.s32 %v4859, %v4861
        %v4863 = vrot.slane %v4855, %v4862
        %4865 = vset.pattern.permute.xlu0 0
        %4866 = vperm.xlu0 %4865, %v4782
        %v4867 = vpop.permute.xlu0 %4866
        %v4870 = vunpack.c.l.s4 839922192
        %v4871 = vunpack.c.0.s8 %v4870
        %v4872 = vlaneseq
        %v4873 = vshrl.u32 %v4872, 7
        %v4874 = vsub.s32 %v4871, %v4873
        %v4875 = vrot.slane %v4867, %v4874
        %4877 = vset.pattern.permute.xlu0 0
        %4878 = vperm.xlu0 %4877, %v4783
        %v4879 = vpop.permute.xlu0 %4878
        %v4882 = vunpack.c.l.s4 839922192
        %v4883 = vunpack.c.0.s8 %v4882
        %v4884 = vlaneseq
        %v4885 = vshrl.u32 %v4884, 7
        %v4886 = vsub.s32 %v4883, %v4885
        %v4887 = vrot.slane %v4879, %v4886
        %4889 = vset.pattern.permute.xlu0 0
        %4890 = vperm.xlu0 %4889, %v4784
        %v4891 = vpop.permute.xlu0 %4890
        %v4894 = vunpack.c.l.s4 839922192
        %v4895 = vunpack.c.0.s8 %v4894
        %v4896 = vlaneseq
        %v4897 = vshrl.u32 %v4896, 7
        %v4898 = vsub.s32 %v4895, %v4897
        %v4899 = vrot.slane %v4891, %v4898
        %4901 = vset.pattern.permute.xlu0 0
        %4902 = vperm.xlu0 %4901, %v4785
        %v4903 = vpop.permute.xlu0 %4902
        %v4906 = vunpack.c.l.s4 839922192
        %v4907 = vunpack.c.0.s8 %v4906
        %v4908 = vlaneseq
        %v4909 = vshrl.u32 %v4908, 7
        %v4910 = vsub.s32 %v4907, %v4909
        %v4911 = vrot.slane %v4903, %v4910
        %4913 = vset.pattern.permute.xlu0 0
        %4914 = vperm.xlu0 %4913, %v4786
        %v4915 = vpop.permute.xlu0 %4914
        %v4918 = vunpack.c.l.s4 839922192
        %v4919 = vunpack.c.0.s8 %v4918
        %v4920 = vlaneseq
        %v4921 = vshrl.u32 %v4920, 7
        %v4922 = vsub.s32 %v4919, %v4921
        %v4923 = vrot.slane %v4915, %v4922
        %4925 = vset.pattern.permute.xlu0 0
        %4926 = vperm.xlu0 %4925, %v4787
        %v4927 = vpop.permute.xlu0 %4926
        %v4930 = vunpack.c.l.s4 839922192
        %v4931 = vunpack.c.0.s8 %v4930
        %v4932 = vlaneseq
        %v4933 = vshrl.u32 %v4932, 7
        %v4934 = vsub.s32 %v4931, %v4933
        %v4935 = vrot.slane %v4927, %v4934
        %4937 = vset.pattern.permute.xlu0 0
        %4938 = vperm.xlu0 %4937, %v4788
        %v4939 = vpop.permute.xlu0 %4938
        %v4942 = vunpack.c.l.s4 839922192
        %v4943 = vunpack.c.0.s8 %v4942
        %v4944 = vlaneseq
        %v4945 = vshrl.u32 %v4944, 7
        %v4946 = vsub.s32 %v4943, %v4945
        %v4947 = vrot.slane %v4939, %v4946
        %4949 = vset.pattern.permute.xlu0 0
        %4950 = vperm.xlu0 %4949, %v4789
        %v4951 = vpop.permute.xlu0 %4950
        %v4954 = vunpack.c.l.s4 839922192
        %v4955 = vunpack.c.0.s8 %v4954
        %v4956 = vlaneseq
        %v4957 = vshrl.u32 %v4956, 7
        %v4958 = vsub.s32 %v4955, %v4957
        %v4959 = vrot.slane %v4951, %v4958
        %4961 = vset.pattern.permute.xlu0 0
        %4962 = vperm.xlu0 %4961, %v4790
        %v4963 = vpop.permute.xlu0 %4962
        %v4966 = vunpack.c.l.s4 839922192
        %v4967 = vunpack.c.0.s8 %v4966
        %v4968 = vlaneseq
        %v4969 = vshrl.u32 %v4968, 7
        %v4970 = vsub.s32 %v4967, %v4969
        %v4971 = vrot.slane %v4963, %v4970
        %4973 = vset.pattern.permute.xlu0 0
        %4974 = vperm.xlu0 %4973, %v4791
        %v4975 = vpop.permute.xlu0 %4974
        %v4978 = vunpack.c.l.s4 839922192
        %v4979 = vunpack.c.0.s8 %v4978
        %v4980 = vlaneseq
        %v4981 = vshrl.u32 %v4980, 7
        %v4982 = vsub.s32 %v4979, %v4981
        %v4983 = vrot.slane %v4975, %v4982
        %v5000 = vunpack.c.l.b16 %v4803
        %v5001 = vunpack.c.l.b16 %v4815
        %v5002 = vunpack.c.l.b16 %v4827
        %v5003 = vunpack.c.l.b16 %v4839
        %v5004 = vunpack.c.l.b16 %v4851
        %v5005 = vunpack.c.l.b16 %v4863
        %v5006 = vunpack.c.l.b16 %v4875
        %v5007 = vunpack.c.l.b16 %v4887
        %v5008 = vunpack.c.l.b16 %v4899
        %v5009 = vunpack.c.l.b16 %v4911
        %v5010 = vunpack.c.l.b16 %v4923
        %v5011 = vunpack.c.l.b16 %v4935
        %v5012 = vunpack.c.l.b16 %v4947
        %v5013 = vunpack.c.l.b16 %v4959
        %v5014 = vunpack.c.l.b16 %v4971
        %v5015 = vunpack.c.l.b16 %v4983
        %v5016 = vpack.c.b16 %v5001, %v5000
        %v5017 = vpack.c.b16 %v5003, %v5002
        %v5018 = vpack.c.b16 %v5005, %v5004
        %v5019 = vpack.c.b16 %v5007, %v5006
        %v5020 = vpack.c.b16 %v5009, %v5008
        %v5021 = vpack.c.b16 %v5011, %v5010
        %v5022 = vpack.c.b16 %v5013, %v5012
        %v5023 = vpack.c.b16 %v5015, %v5014
        %v5032 = vmul.bf16 %v4768, %v5016
        %v5033 = vmul.bf16 %v4769, %v5017
        %v5034 = vmul.bf16 %v4770, %v5018
        %v5035 = vmul.bf16 %v4771, %v5019
        %v5036 = vmul.bf16 %v4772, %v5020
        %v5037 = vmul.bf16 %v4773, %v5021
        %v5038 = vmul.bf16 %v4774, %v5022
        %v5039 = vmul.bf16 %v4775, %v5023
        %v5040 = vld [vmem:[#allocation3 + $0x17] sm:$0xff]
        %v5041 = vld [vmem:[#allocation3 + $0x1f] sm:$0xff]
        %v5042 = vld [vmem:[#allocation3 + $0x27] sm:$0xff]
        %v5043 = vld [vmem:[#allocation3 + $0x2f] sm:$0xff]
        %v5044 = vld [vmem:[#allocation3 + $0x37] sm:$0xff]
        %v5045 = vld [vmem:[#allocation3 + $0x3f] sm:$0xff]
        %v5046 = vld [vmem:[#allocation3 + $0x47] sm:$0xff]
        %v5047 = vld [vmem:[#allocation3 + $0x4f] sm:$0xff]
        %v5048 = vld [vmem:[#allocation3 + $0x57] sm:$0xff]
        %v5049 = vld [vmem:[#allocation3 + $0x5f] sm:$0xff]
        %v5050 = vld [vmem:[#allocation3 + $0x67] sm:$0xff]
        %v5051 = vld [vmem:[#allocation3 + $0x6f] sm:$0xff]
        %v5052 = vld [vmem:[#allocation3 + $0x77] sm:$0xff]
        %v5053 = vld [vmem:[#allocation3 + $0x7f] sm:$0xff]
        %v5054 = vld [vmem:[#allocation3 + $0x87] sm:$0xff]
        %v5055 = vld [vmem:[#allocation3 + $0x8f] sm:$0xff]
        %v5056 = vpack.c.bf16 %v5041, %v5040
        %v5057 = vpack.c.bf16 %v5043, %v5042
        %v5058 = vpack.c.bf16 %v5045, %v5044
        %v5059 = vpack.c.bf16 %v5047, %v5046
        %v5060 = vpack.c.bf16 %v5049, %v5048
        %v5061 = vpack.c.bf16 %v5051, %v5050
        %v5062 = vpack.c.bf16 %v5053, %v5052
        %v5063 = vpack.c.bf16 %v5055, %v5054
        %v5064 = vld [vmem:[%s2015] sm:$0xf]
        %v5065 = vld [vmem:[%s2015 + $0x4] sm:$0xf]
        %v5066 = vld [vmem:[%s2015 + $0x8] sm:$0xf]
        %v5067 = vld [vmem:[%s2015 + $0xc] sm:$0xf]
        %v5068 = vld [vmem:[%s2015 + $0x10] sm:$0xf]
        %v5069 = vld [vmem:[%s2015 + $0x14] sm:$0xf]
        %v5070 = vld [vmem:[%s2015 + $0x18] sm:$0xf]
        %v5071 = vld [vmem:[%s2015 + $0x1c] sm:$0xf]
        %v5072 = vld [vmem:[%s2015 + $0x20] sm:$0xf]
        %v5073 = vld [vmem:[%s2015 + $0x24] sm:$0xf]
        %v5074 = vld [vmem:[%s2015 + $0x28] sm:$0xf]
        %v5075 = vld [vmem:[%s2015 + $0x2c] sm:$0xf]
        %v5076 = vld [vmem:[%s2015 + $0x30] sm:$0xf]
        %v5077 = vld [vmem:[%s2015 + $0x34] sm:$0xf]
        %v5078 = vld [vmem:[%s2015 + $0x38] sm:$0xf]
        %v5079 = vld [vmem:[%s2015 + $0x3c] sm:$0xf]
        %5081 = vset.pattern.permute.xlu0 0
        %5082 = vperm.xlu0 %5081, %v5064
        %v5083 = vpop.permute.xlu0 %5082
        %v5086 = vunpack.c.l.s4 839922192
        %v5087 = vunpack.c.0.s8 %v5086
        %v5088 = vlaneseq
        %v5089 = vshrl.u32 %v5088, 7
        %v5090 = vsub.s32 %v5087, %v5089
        %v5091 = vrot.slane %v5083, %v5090
        %5093 = vset.pattern.permute.xlu0 0
        %5094 = vperm.xlu0 %5093, %v5065
        %v5095 = vpop.permute.xlu0 %5094
        %v5098 = vunpack.c.l.s4 839922192
        %v5099 = vunpack.c.0.s8 %v5098
        %v5100 = vlaneseq
        %v5101 = vshrl.u32 %v5100, 7
        %v5102 = vsub.s32 %v5099, %v5101
        %v5103 = vrot.slane %v5095, %v5102
        %5105 = vset.pattern.permute.xlu0 0
        %5106 = vperm.xlu0 %5105, %v5066
        %v5107 = vpop.permute.xlu0 %5106
        %v5110 = vunpack.c.l.s4 839922192
        %v5111 = vunpack.c.0.s8 %v5110
        %v5112 = vlaneseq
        %v5113 = vshrl.u32 %v5112, 7
        %v5114 = vsub.s32 %v5111, %v5113
        %v5115 = vrot.slane %v5107, %v5114
        %5117 = vset.pattern.permute.xlu0 0
        %5118 = vperm.xlu0 %5117, %v5067
        %v5119 = vpop.permute.xlu0 %5118
        %v5122 = vunpack.c.l.s4 839922192
        %v5123 = vunpack.c.0.s8 %v5122
        %v5124 = vlaneseq
        %v5125 = vshrl.u32 %v5124, 7
        %v5126 = vsub.s32 %v5123, %v5125
        %v5127 = vrot.slane %v5119, %v5126
        %5129 = vset.pattern.permute.xlu0 0
        %5130 = vperm.xlu0 %5129, %v5068
        %v5131 = vpop.permute.xlu0 %5130
        %v5134 = vunpack.c.l.s4 839922192
        %v5135 = vunpack.c.0.s8 %v5134
        %v5136 = vlaneseq
        %v5137 = vshrl.u32 %v5136, 7
        %v5138 = vsub.s32 %v5135, %v5137
        %v5139 = vrot.slane %v5131, %v5138
        %5141 = vset.pattern.permute.xlu0 0
        %5142 = vperm.xlu0 %5141, %v5069
        %v5143 = vpop.permute.xlu0 %5142
        %v5146 = vunpack.c.l.s4 839922192
        %v5147 = vunpack.c.0.s8 %v5146
        %v5148 = vlaneseq
        %v5149 = vshrl.u32 %v5148, 7
        %v5150 = vsub.s32 %v5147, %v5149
        %v5151 = vrot.slane %v5143, %v5150
        %5153 = vset.pattern.permute.xlu0 0
        %5154 = vperm.xlu0 %5153, %v5070
        %v5155 = vpop.permute.xlu0 %5154
        %v5158 = vunpack.c.l.s4 839922192
        %v5159 = vunpack.c.0.s8 %v5158
        %v5160 = vlaneseq
        %v5161 = vshrl.u32 %v5160, 7
        %v5162 = vsub.s32 %v5159, %v5161
        %v5163 = vrot.slane %v5155, %v5162
        %5165 = vset.pattern.permute.xlu0 0
        %5166 = vperm.xlu0 %5165, %v5071
        %v5167 = vpop.permute.xlu0 %5166
        %v5170 = vunpack.c.l.s4 839922192
        %v5171 = vunpack.c.0.s8 %v5170
        %v5172 = vlaneseq
        %v5173 = vshrl.u32 %v5172, 7
        %v5174 = vsub.s32 %v5171, %v5173
        %v5175 = vrot.slane %v5167, %v5174
        %5177 = vset.pattern.permute.xlu0 0
        %5178 = vperm.xlu0 %5177, %v5072
        %v5179 = vpop.permute.xlu0 %5178
        %v5182 = vunpack.c.l.s4 839922192
        %v5183 = vunpack.c.0.s8 %v5182
        %v5184 = vlaneseq
        %v5185 = vshrl.u32 %v5184, 7
        %v5186 = vsub.s32 %v5183, %v5185
        %v5187 = vrot.slane %v5179, %v5186
        %5189 = vset.pattern.permute.xlu0 0
        %5190 = vperm.xlu0 %5189, %v5073
        %v5191 = vpop.permute.xlu0 %5190
        %v5194 = vunpack.c.l.s4 839922192
        %v5195 = vunpack.c.0.s8 %v5194
        %v5196 = vlaneseq
        %v5197 = vshrl.u32 %v5196, 7
        %v5198 = vsub.s32 %v5195, %v5197
        %v5199 = vrot.slane %v5191, %v5198
        %5201 = vset.pattern.permute.xlu0 0
        %5202 = vperm.xlu0 %5201, %v5074
        %v5203 = vpop.permute.xlu0 %5202
        %v5206 = vunpack.c.l.s4 839922192
        %v5207 = vunpack.c.0.s8 %v5206
        %v5208 = vlaneseq
        %v5209 = vshrl.u32 %v5208, 7
        %v5210 = vsub.s32 %v5207, %v5209
        %v5211 = vrot.slane %v5203, %v5210
        %5213 = vset.pattern.permute.xlu0 0
        %5214 = vperm.xlu0 %5213, %v5075
        %v5215 = vpop.permute.xlu0 %5214
        %v5218 = vunpack.c.l.s4 839922192
        %v5219 = vunpack.c.0.s8 %v5218
        %v5220 = vlaneseq
        %v5221 = vshrl.u32 %v5220, 7
        %v5222 = vsub.s32 %v5219, %v5221
        %v5223 = vrot.slane %v5215, %v5222
        %5225 = vset.pattern.permute.xlu0 0
        %5226 = vperm.xlu0 %5225, %v5076
        %v5227 = vpop.permute.xlu0 %5226
        %v5230 = vunpack.c.l.s4 839922192
        %v5231 = vunpack.c.0.s8 %v5230
        %v5232 = vlaneseq
        %v5233 = vshrl.u32 %v5232, 7
        %v5234 = vsub.s32 %v5231, %v5233
        %v5235 = vrot.slane %v5227, %v5234
        %5237 = vset.pattern.permute.xlu0 0
        %5238 = vperm.xlu0 %5237, %v5077
        %v5239 = vpop.permute.xlu0 %5238
        %v5242 = vunpack.c.l.s4 839922192
        %v5243 = vunpack.c.0.s8 %v5242
        %v5244 = vlaneseq
        %v5245 = vshrl.u32 %v5244, 7
        %v5246 = vsub.s32 %v5243, %v5245
        %v5247 = vrot.slane %v5239, %v5246
        %5249 = vset.pattern.permute.xlu0 0
        %5250 = vperm.xlu0 %5249, %v5078
        %v5251 = vpop.permute.xlu0 %5250
        %v5254 = vunpack.c.l.s4 839922192
        %v5255 = vunpack.c.0.s8 %v5254
        %v5256 = vlaneseq
        %v5257 = vshrl.u32 %v5256, 7
        %v5258 = vsub.s32 %v5255, %v5257
        %v5259 = vrot.slane %v5251, %v5258
        %5261 = vset.pattern.permute.xlu0 0
        %5262 = vperm.xlu0 %5261, %v5079
        %v5263 = vpop.permute.xlu0 %5262
        %v5266 = vunpack.c.l.s4 839922192
        %v5267 = vunpack.c.0.s8 %v5266
        %v5268 = vlaneseq
        %v5269 = vshrl.u32 %v5268, 7
        %v5270 = vsub.s32 %v5267, %v5269
        %v5271 = vrot.slane %v5263, %v5270
        %v5288 = vunpack.c.l.b16 %v5091
        %v5289 = vunpack.c.l.b16 %v5103
        %v5290 = vunpack.c.l.b16 %v5115
        %v5291 = vunpack.c.l.b16 %v5127
        %v5292 = vunpack.c.l.b16 %v5139
        %v5293 = vunpack.c.l.b16 %v5151
        %v5294 = vunpack.c.l.b16 %v5163
        %v5295 = vunpack.c.l.b16 %v5175
        %v5296 = vunpack.c.l.b16 %v5187
        %v5297 = vunpack.c.l.b16 %v5199
        %v5298 = vunpack.c.l.b16 %v5211
        %v5299 = vunpack.c.l.b16 %v5223
        %v5300 = vunpack.c.l.b16 %v5235
        %v5301 = vunpack.c.l.b16 %v5247
        %v5302 = vunpack.c.l.b16 %v5259
        %v5303 = vunpack.c.l.b16 %v5271
        %v5304 = vpack.c.b16 %v5289, %v5288
        %v5305 = vpack.c.b16 %v5291, %v5290
        %v5306 = vpack.c.b16 %v5293, %v5292
        %v5307 = vpack.c.b16 %v5295, %v5294
        %v5308 = vpack.c.b16 %v5297, %v5296
        %v5309 = vpack.c.b16 %v5299, %v5298
        %v5310 = vpack.c.b16 %v5301, %v5300
        %v5311 = vpack.c.b16 %v5303, %v5302
        %v5320 = vmul.bf16 %v5056, %v5304
        %v5321 = vmul.bf16 %v5057, %v5305
        %v5322 = vmul.bf16 %v5058, %v5306
        %v5323 = vmul.bf16 %v5059, %v5307
        %v5324 = vmul.bf16 %v5060, %v5308
        %v5325 = vmul.bf16 %v5061, %v5309
        %v5326 = vmul.bf16 %v5062, %v5310
        %v5327 = vmul.bf16 %v5063, %v5311
        %v5328 = vld [vmem:[#allocation3 + $0x18] sm:$0xff]
        %v5329 = vld [vmem:[#allocation3 + $0x20] sm:$0xff]
        %v5330 = vld [vmem:[#allocation3 + $0x28] sm:$0xff]
        %v5331 = vld [vmem:[#allocation3 + $0x30] sm:$0xff]
        %v5332 = vld [vmem:[#allocation3 + $0x38] sm:$0xff]
        %v5333 = vld [vmem:[#allocation3 + $0x40] sm:$0xff]
        %v5334 = vld [vmem:[#allocation3 + $0x48] sm:$0xff]
        %v5335 = vld [vmem:[#allocation3 + $0x50] sm:$0xff]
        %v5336 = vld [vmem:[#allocation3 + $0x58] sm:$0xff]
        %v5337 = vld [vmem:[#allocation3 + $0x60] sm:$0xff]
        %v5338 = vld [vmem:[#allocation3 + $0x68] sm:$0xff]
        %v5339 = vld [vmem:[#allocation3 + $0x70] sm:$0xff]
        %v5340 = vld [vmem:[#allocation3 + $0x78] sm:$0xff]
        %v5341 = vld [vmem:[#allocation3 + $0x80] sm:$0xff]
        %v5342 = vld [vmem:[#allocation3 + $0x88] sm:$0xff]
        %v5343 = vld [vmem:[#allocation3 + $0x90] sm:$0xff]
        %v5344 = vpack.c.bf16 %v5329, %v5328
        %v5345 = vpack.c.bf16 %v5331, %v5330
        %v5346 = vpack.c.bf16 %v5333, %v5332
        %v5347 = vpack.c.bf16 %v5335, %v5334
        %v5348 = vpack.c.bf16 %v5337, %v5336
        %v5349 = vpack.c.bf16 %v5339, %v5338
        %v5350 = vpack.c.bf16 %v5341, %v5340
        %v5351 = vpack.c.bf16 %v5343, %v5342
        %v5352 = vld [vmem:[%s2304] sm:$0xf]
        %v5353 = vld [vmem:[%s2304 + $0x4] sm:$0xf]
        %v5354 = vld [vmem:[%s2304 + $0x8] sm:$0xf]
        %v5355 = vld [vmem:[%s2304 + $0xc] sm:$0xf]
        %v5356 = vld [vmem:[%s2304 + $0x10] sm:$0xf]
        %v5357 = vld [vmem:[%s2304 + $0x14] sm:$0xf]
        %v5358 = vld [vmem:[%s2304 + $0x18] sm:$0xf]
        %v5359 = vld [vmem:[%s2304 + $0x1c] sm:$0xf]
        %v5360 = vld [vmem:[%s2304 + $0x20] sm:$0xf]
        %v5361 = vld [vmem:[%s2304 + $0x24] sm:$0xf]
        %v5362 = vld [vmem:[%s2304 + $0x28] sm:$0xf]
        %v5363 = vld [vmem:[%s2304 + $0x2c] sm:$0xf]
        %v5364 = vld [vmem:[%s2304 + $0x30] sm:$0xf]
        %v5365 = vld [vmem:[%s2304 + $0x34] sm:$0xf]
        %v5366 = vld [vmem:[%s2304 + $0x38] sm:$0xf]
        %v5367 = vld [vmem:[%s2304 + $0x3c] sm:$0xf]
        %5369 = vset.pattern.permute.xlu0 0
        %5370 = vperm.xlu0 %5369, %v5352
        %v5371 = vpop.permute.xlu0 %5370
        %v5374 = vunpack.c.l.s4 839922192
        %v5375 = vunpack.c.0.s8 %v5374
        %v5376 = vlaneseq
        %v5377 = vshrl.u32 %v5376, 7
        %v5378 = vsub.s32 %v5375, %v5377
        %v5379 = vrot.slane %v5371, %v5378
        %5381 = vset.pattern.permute.xlu0 0
        %5382 = vperm.xlu0 %5381, %v5353
        %v5383 = vpop.permute.xlu0 %5382
        %v5386 = vunpack.c.l.s4 839922192
        %v5387 = vunpack.c.0.s8 %v5386
        %v5388 = vlaneseq
        %v5389 = vshrl.u32 %v5388, 7
        %v5390 = vsub.s32 %v5387, %v5389
        %v5391 = vrot.slane %v5383, %v5390
        %5393 = vset.pattern.permute.xlu0 0
        %5394 = vperm.xlu0 %5393, %v5354
        %v5395 = vpop.permute.xlu0 %5394
        %v5398 = vunpack.c.l.s4 839922192
        %v5399 = vunpack.c.0.s8 %v5398
        %v5400 = vlaneseq
        %v5401 = vshrl.u32 %v5400, 7
        %v5402 = vsub.s32 %v5399, %v5401
        %v5403 = vrot.slane %v5395, %v5402
        %5405 = vset.pattern.permute.xlu0 0
        %5406 = vperm.xlu0 %5405, %v5355
        %v5407 = vpop.permute.xlu0 %5406
        %v5410 = vunpack.c.l.s4 839922192
        %v5411 = vunpack.c.0.s8 %v5410
        %v5412 = vlaneseq
        %v5413 = vshrl.u32 %v5412, 7
        %v5414 = vsub.s32 %v5411, %v5413
        %v5415 = vrot.slane %v5407, %v5414
        %5417 = vset.pattern.permute.xlu0 0
        %5418 = vperm.xlu0 %5417, %v5356
        %v5419 = vpop.permute.xlu0 %5418
        %v5422 = vunpack.c.l.s4 839922192
        %v5423 = vunpack.c.0.s8 %v5422
        %v5424 = vlaneseq
        %v5425 = vshrl.u32 %v5424, 7
        %v5426 = vsub.s32 %v5423, %v5425
        %v5427 = vrot.slane %v5419, %v5426
        %5429 = vset.pattern.permute.xlu0 0
        %5430 = vperm.xlu0 %5429, %v5357
        %v5431 = vpop.permute.xlu0 %5430
        %v5434 = vunpack.c.l.s4 839922192
        %v5435 = vunpack.c.0.s8 %v5434
        %v5436 = vlaneseq
        %v5437 = vshrl.u32 %v5436, 7
        %v5438 = vsub.s32 %v5435, %v5437
        %v5439 = vrot.slane %v5431, %v5438
        %5441 = vset.pattern.permute.xlu0 0
        %5442 = vperm.xlu0 %5441, %v5358
        %v5443 = vpop.permute.xlu0 %5442
        %v5446 = vunpack.c.l.s4 839922192
        %v5447 = vunpack.c.0.s8 %v5446
        %v5448 = vlaneseq
        %v5449 = vshrl.u32 %v5448, 7
        %v5450 = vsub.s32 %v5447, %v5449
        %v5451 = vrot.slane %v5443, %v5450
        %5453 = vset.pattern.permute.xlu0 0
        %5454 = vperm.xlu0 %5453, %v5359
        %v5455 = vpop.permute.xlu0 %5454
        %v5458 = vunpack.c.l.s4 839922192
        %v5459 = vunpack.c.0.s8 %v5458
        %v5460 = vlaneseq
        %v5461 = vshrl.u32 %v5460, 7
        %v5462 = vsub.s32 %v5459, %v5461
        %v5463 = vrot.slane %v5455, %v5462
        %5465 = vset.pattern.permute.xlu0 0
        %5466 = vperm.xlu0 %5465, %v5360
        %v5467 = vpop.permute.xlu0 %5466
        %v5470 = vunpack.c.l.s4 839922192
        %v5471 = vunpack.c.0.s8 %v5470
        %v5472 = vlaneseq
        %v5473 = vshrl.u32 %v5472, 7
        %v5474 = vsub.s32 %v5471, %v5473
        %v5475 = vrot.slane %v5467, %v5474
        %5477 = vset.pattern.permute.xlu0 0
        %5478 = vperm.xlu0 %5477, %v5361
        %v5479 = vpop.permute.xlu0 %5478
        %v5482 = vunpack.c.l.s4 839922192
        %v5483 = vunpack.c.0.s8 %v5482
        %v5484 = vlaneseq
        %v5485 = vshrl.u32 %v5484, 7
        %v5486 = vsub.s32 %v5483, %v5485
        %v5487 = vrot.slane %v5479, %v5486
        %5489 = vset.pattern.permute.xlu0 0
        %5490 = vperm.xlu0 %5489, %v5362
        %v5491 = vpop.permute.xlu0 %5490
        %v5494 = vunpack.c.l.s4 839922192
        %v5495 = vunpack.c.0.s8 %v5494
        %v5496 = vlaneseq
        %v5497 = vshrl.u32 %v5496, 7
        %v5498 = vsub.s32 %v5495, %v5497
        %v5499 = vrot.slane %v5491, %v5498
        %5501 = vset.pattern.permute.xlu0 0
        %5502 = vperm.xlu0 %5501, %v5363
        %v5503 = vpop.permute.xlu0 %5502
        %v5506 = vunpack.c.l.s4 839922192
        %v5507 = vunpack.c.0.s8 %v5506
        %v5508 = vlaneseq
        %v5509 = vshrl.u32 %v5508, 7
        %v5510 = vsub.s32 %v5507, %v5509
        %v5511 = vrot.slane %v5503, %v5510
        %5513 = vset.pattern.permute.xlu0 0
        %5514 = vperm.xlu0 %5513, %v5364
        %v5515 = vpop.permute.xlu0 %5514
        %v5518 = vunpack.c.l.s4 839922192
        %v5519 = vunpack.c.0.s8 %v5518
        %v5520 = vlaneseq
        %v5521 = vshrl.u32 %v5520, 7
        %v5522 = vsub.s32 %v5519, %v5521
        %v5523 = vrot.slane %v5515, %v5522
        %5525 = vset.pattern.permute.xlu0 0
        %5526 = vperm.xlu0 %5525, %v5365
        %v5527 = vpop.permute.xlu0 %5526
        %v5530 = vunpack.c.l.s4 839922192
        %v5531 = vunpack.c.0.s8 %v5530
        %v5532 = vlaneseq
        %v5533 = vshrl.u32 %v5532, 7
        %v5534 = vsub.s32 %v5531, %v5533
        %v5535 = vrot.slane %v5527, %v5534
        %5537 = vset.pattern.permute.xlu0 0
        %5538 = vperm.xlu0 %5537, %v5366
        %v5539 = vpop.permute.xlu0 %5538
        %v5542 = vunpack.c.l.s4 839922192
        %v5543 = vunpack.c.0.s8 %v5542
        %v5544 = vlaneseq
        %v5545 = vshrl.u32 %v5544, 7
        %v5546 = vsub.s32 %v5543, %v5545
        %v5547 = vrot.slane %v5539, %v5546
        %5549 = vset.pattern.permute.xlu0 0
        %5550 = vperm.xlu0 %5549, %v5367
        %v5551 = vpop.permute.xlu0 %5550
        %v5554 = vunpack.c.l.s4 839922192
        %v5555 = vunpack.c.0.s8 %v5554
        %v5556 = vlaneseq
        %v5557 = vshrl.u32 %v5556, 7
        %v5558 = vsub.s32 %v5555, %v5557
        %v5559 = vrot.slane %v5551, %v5558
        %v5576 = vunpack.c.l.b16 %v5379
        %v5577 = vunpack.c.l.b16 %v5391
        %v5578 = vunpack.c.l.b16 %v5403
        %v5579 = vunpack.c.l.b16 %v5415
        %v5580 = vunpack.c.l.b16 %v5427
        %v5581 = vunpack.c.l.b16 %v5439
        %v5582 = vunpack.c.l.b16 %v5451
        %v5583 = vunpack.c.l.b16 %v5463
        %v5584 = vunpack.c.l.b16 %v5475
        %v5585 = vunpack.c.l.b16 %v5487
        %v5586 = vunpack.c.l.b16 %v5499
        %v5587 = vunpack.c.l.b16 %v5511
        %v5588 = vunpack.c.l.b16 %v5523
        %v5589 = vunpack.c.l.b16 %v5535
        %v5590 = vunpack.c.l.b16 %v5547
        %v5591 = vunpack.c.l.b16 %v5559
        %v5592 = vpack.c.b16 %v5577, %v5576
        %v5593 = vpack.c.b16 %v5579, %v5578
        %v5594 = vpack.c.b16 %v5581, %v5580
        %v5595 = vpack.c.b16 %v5583, %v5582
        %v5596 = vpack.c.b16 %v5585, %v5584
        %v5597 = vpack.c.b16 %v5587, %v5586
        %v5598 = vpack.c.b16 %v5589, %v5588
        %v5599 = vpack.c.b16 %v5591, %v5590
        %v5608 = vmul.bf16 %v5344, %v5592
        %v5609 = vmul.bf16 %v5345, %v5593
        %v5610 = vmul.bf16 %v5346, %v5594
        %v5611 = vmul.bf16 %v5347, %v5595
        %v5612 = vmul.bf16 %v5348, %v5596
        %v5613 = vmul.bf16 %v5349, %v5597
        %v5614 = vmul.bf16 %v5350, %v5598
        %v5615 = vmul.bf16 %v5351, %v5599
        %v5616 = vld [vmem:[#allocation3 + $0x19] sm:$0xff]
        %v5617 = vld [vmem:[#allocation3 + $0x21] sm:$0xff]
        %v5618 = vld [vmem:[#allocation3 + $0x29] sm:$0xff]
        %v5619 = vld [vmem:[#allocation3 + $0x31] sm:$0xff]
        %v5620 = vld [vmem:[#allocation3 + $0x39] sm:$0xff]
        %v5621 = vld [vmem:[#allocation3 + $0x41] sm:$0xff]
        %v5622 = vld [vmem:[#allocation3 + $0x49] sm:$0xff]
        %v5623 = vld [vmem:[#allocation3 + $0x51] sm:$0xff]
        %v5624 = vld [vmem:[#allocation3 + $0x59] sm:$0xff]
        %v5625 = vld [vmem:[#allocation3 + $0x61] sm:$0xff]
        %v5626 = vld [vmem:[#allocation3 + $0x69] sm:$0xff]
        %v5627 = vld [vmem:[#allocation3 + $0x71] sm:$0xff]
        %v5628 = vld [vmem:[#allocation3 + $0x79] sm:$0xff]
        %v5629 = vld [vmem:[#allocation3 + $0x81] sm:$0xff]
        %v5630 = vld [vmem:[#allocation3 + $0x89] sm:$0xff]
        %v5631 = vld [vmem:[#allocation3 + $0x91] sm:$0xff]
        %v5632 = vpack.c.bf16 %v5617, %v5616
        %v5633 = vpack.c.bf16 %v5619, %v5618
        %v5634 = vpack.c.bf16 %v5621, %v5620
        %v5635 = vpack.c.bf16 %v5623, %v5622
        %v5636 = vpack.c.bf16 %v5625, %v5624
        %v5637 = vpack.c.bf16 %v5627, %v5626
        %v5638 = vpack.c.bf16 %v5629, %v5628
        %v5639 = vpack.c.bf16 %v5631, %v5630
        %v5640 = vld [vmem:[%s2593] sm:$0xf]
        %v5641 = vld [vmem:[%s2593 + $0x4] sm:$0xf]
        %v5642 = vld [vmem:[%s2593 + $0x8] sm:$0xf]
        %v5643 = vld [vmem:[%s2593 + $0xc] sm:$0xf]
        %v5644 = vld [vmem:[%s2593 + $0x10] sm:$0xf]
        %v5645 = vld [vmem:[%s2593 + $0x14] sm:$0xf]
        %v5646 = vld [vmem:[%s2593 + $0x18] sm:$0xf]
        %v5647 = vld [vmem:[%s2593 + $0x1c] sm:$0xf]
        %v5648 = vld [vmem:[%s2593 + $0x20] sm:$0xf]
        %v5649 = vld [vmem:[%s2593 + $0x24] sm:$0xf]
        %v5650 = vld [vmem:[%s2593 + $0x28] sm:$0xf]
        %v5651 = vld [vmem:[%s2593 + $0x2c] sm:$0xf]
        %v5652 = vld [vmem:[%s2593 + $0x30] sm:$0xf]
        %v5653 = vld [vmem:[%s2593 + $0x34] sm:$0xf]
        %v5654 = vld [vmem:[%s2593 + $0x38] sm:$0xf]
        %v5655 = vld [vmem:[%s2593 + $0x3c] sm:$0xf]
        %5657 = vset.pattern.permute.xlu0 0
        %5658 = vperm.xlu0 %5657, %v5640
        %v5659 = vpop.permute.xlu0 %5658
        %v5662 = vunpack.c.l.s4 839922192
        %v5663 = vunpack.c.0.s8 %v5662
        %v5664 = vlaneseq
        %v5665 = vshrl.u32 %v5664, 7
        %v5666 = vsub.s32 %v5663, %v5665
        %v5667 = vrot.slane %v5659, %v5666
        %5669 = vset.pattern.permute.xlu0 0
        %5670 = vperm.xlu0 %5669, %v5641
        %v5671 = vpop.permute.xlu0 %5670
        %v5674 = vunpack.c.l.s4 839922192
        %v5675 = vunpack.c.0.s8 %v5674
        %v5676 = vlaneseq
        %v5677 = vshrl.u32 %v5676, 7
        %v5678 = vsub.s32 %v5675, %v5677
        %v5679 = vrot.slane %v5671, %v5678
        %5681 = vset.pattern.permute.xlu0 0
        %5682 = vperm.xlu0 %5681, %v5642
        %v5683 = vpop.permute.xlu0 %5682
        %v5686 = vunpack.c.l.s4 839922192
        %v5687 = vunpack.c.0.s8 %v5686
        %v5688 = vlaneseq
        %v5689 = vshrl.u32 %v5688, 7
        %v5690 = vsub.s32 %v5687, %v5689
        %v5691 = vrot.slane %v5683, %v5690
        %5693 = vset.pattern.permute.xlu0 0
        %5694 = vperm.xlu0 %5693, %v5643
        %v5695 = vpop.permute.xlu0 %5694
        %v5698 = vunpack.c.l.s4 839922192
        %v5699 = vunpack.c.0.s8 %v5698
        %v5700 = vlaneseq
        %v5701 = vshrl.u32 %v5700, 7
        %v5702 = vsub.s32 %v5699, %v5701
        %v5703 = vrot.slane %v5695, %v5702
        %5705 = vset.pattern.permute.xlu0 0
        %5706 = vperm.xlu0 %5705, %v5644
        %v5707 = vpop.permute.xlu0 %5706
        %v5710 = vunpack.c.l.s4 839922192
        %v5711 = vunpack.c.0.s8 %v5710
        %v5712 = vlaneseq
        %v5713 = vshrl.u32 %v5712, 7
        %v5714 = vsub.s32 %v5711, %v5713
        %v5715 = vrot.slane %v5707, %v5714
        %5717 = vset.pattern.permute.xlu0 0
        %5718 = vperm.xlu0 %5717, %v5645
        %v5719 = vpop.permute.xlu0 %5718
        %v5722 = vunpack.c.l.s4 839922192
        %v5723 = vunpack.c.0.s8 %v5722
        %v5724 = vlaneseq
        %v5725 = vshrl.u32 %v5724, 7
        %v5726 = vsub.s32 %v5723, %v5725
        %v5727 = vrot.slane %v5719, %v5726
        %5729 = vset.pattern.permute.xlu0 0
        %5730 = vperm.xlu0 %5729, %v5646
        %v5731 = vpop.permute.xlu0 %5730
        %v5734 = vunpack.c.l.s4 839922192
        %v5735 = vunpack.c.0.s8 %v5734
        %v5736 = vlaneseq
        %v5737 = vshrl.u32 %v5736, 7
        %v5738 = vsub.s32 %v5735, %v5737
        %v5739 = vrot.slane %v5731, %v5738
        %5741 = vset.pattern.permute.xlu0 0
        %5742 = vperm.xlu0 %5741, %v5647
        %v5743 = vpop.permute.xlu0 %5742
        %v5746 = vunpack.c.l.s4 839922192
        %v5747 = vunpack.c.0.s8 %v5746
        %v5748 = vlaneseq
        %v5749 = vshrl.u32 %v5748, 7
        %v5750 = vsub.s32 %v5747, %v5749
        %v5751 = vrot.slane %v5743, %v5750
        %5753 = vset.pattern.permute.xlu0 0
        %5754 = vperm.xlu0 %5753, %v5648
        %v5755 = vpop.permute.xlu0 %5754
        %v5758 = vunpack.c.l.s4 839922192
        %v5759 = vunpack.c.0.s8 %v5758
        %v5760 = vlaneseq
        %v5761 = vshrl.u32 %v5760, 7
        %v5762 = vsub.s32 %v5759, %v5761
        %v5763 = vrot.slane %v5755, %v5762
        %5765 = vset.pattern.permute.xlu0 0
        %5766 = vperm.xlu0 %5765, %v5649
        %v5767 = vpop.permute.xlu0 %5766
        %v5770 = vunpack.c.l.s4 839922192
        %v5771 = vunpack.c.0.s8 %v5770
        %v5772 = vlaneseq
        %v5773 = vshrl.u32 %v5772, 7
        %v5774 = vsub.s32 %v5771, %v5773
        %v5775 = vrot.slane %v5767, %v5774
        %5777 = vset.pattern.permute.xlu0 0
        %5778 = vperm.xlu0 %5777, %v5650
        %v5779 = vpop.permute.xlu0 %5778
        %v5782 = vunpack.c.l.s4 839922192
        %v5783 = vunpack.c.0.s8 %v5782
        %v5784 = vlaneseq
        %v5785 = vshrl.u32 %v5784, 7
        %v5786 = vsub.s32 %v5783, %v5785
        %v5787 = vrot.slane %v5779, %v5786
        %5789 = vset.pattern.permute.xlu0 0
        %5790 = vperm.xlu0 %5789, %v5651
        %v5791 = vpop.permute.xlu0 %5790
        %v5794 = vunpack.c.l.s4 839922192
        %v5795 = vunpack.c.0.s8 %v5794
        %v5796 = vlaneseq
        %v5797 = vshrl.u32 %v5796, 7
        %v5798 = vsub.s32 %v5795, %v5797
        %v5799 = vrot.slane %v5791, %v5798
        %5801 = vset.pattern.permute.xlu0 0
        %5802 = vperm.xlu0 %5801, %v5652
        %v5803 = vpop.permute.xlu0 %5802
        %v5806 = vunpack.c.l.s4 839922192
        %v5807 = vunpack.c.0.s8 %v5806
        %v5808 = vlaneseq
        %v5809 = vshrl.u32 %v5808, 7
        %v5810 = vsub.s32 %v5807, %v5809
        %v5811 = vrot.slane %v5803, %v5810
        %5813 = vset.pattern.permute.xlu0 0
        %5814 = vperm.xlu0 %5813, %v5653
        %v5815 = vpop.permute.xlu0 %5814
        %v5818 = vunpack.c.l.s4 839922192
        %v5819 = vunpack.c.0.s8 %v5818
        %v5820 = vlaneseq
        %v5821 = vshrl.u32 %v5820, 7
        %v5822 = vsub.s32 %v5819, %v5821
        %v5823 = vrot.slane %v5815, %v5822
        %5825 = vset.pattern.permute.xlu0 0
        %5826 = vperm.xlu0 %5825, %v5654
        %v5827 = vpop.permute.xlu0 %5826
        %v5830 = vunpack.c.l.s4 839922192
        %v5831 = vunpack.c.0.s8 %v5830
        %v5832 = vlaneseq
        %v5833 = vshrl.u32 %v5832, 7
        %v5834 = vsub.s32 %v5831, %v5833
        %v5835 = vrot.slane %v5827, %v5834
        %5837 = vset.pattern.permute.xlu0 0
        %5838 = vperm.xlu0 %5837, %v5655
        %v5839 = vpop.permute.xlu0 %5838
        %v5842 = vunpack.c.l.s4 839922192
        %v5843 = vunpack.c.0.s8 %v5842
        %v5844 = vlaneseq
        %v5845 = vshrl.u32 %v5844, 7
        %v5846 = vsub.s32 %v5843, %v5845
        %v5847 = vrot.slane %v5839, %v5846
        %v5864 = vunpack.c.l.b16 %v5667
        %v5865 = vunpack.c.l.b16 %v5679
        %v5866 = vunpack.c.l.b16 %v5691
        %v5867 = vunpack.c.l.b16 %v5703
        %v5868 = vunpack.c.l.b16 %v5715
        %v5869 = vunpack.c.l.b16 %v5727
        %v5870 = vunpack.c.l.b16 %v5739
        %v5871 = vunpack.c.l.b16 %v5751
        %v5872 = vunpack.c.l.b16 %v5763
        %v5873 = vunpack.c.l.b16 %v5775
        %v5874 = vunpack.c.l.b16 %v5787
        %v5875 = vunpack.c.l.b16 %v5799
        %v5876 = vunpack.c.l.b16 %v5811
        %v5877 = vunpack.c.l.b16 %v5823
        %v5878 = vunpack.c.l.b16 %v5835
        %v5879 = vunpack.c.l.b16 %v5847
        %v5880 = vpack.c.b16 %v5865, %v5864
        %v5881 = vpack.c.b16 %v5867, %v5866
        %v5882 = vpack.c.b16 %v5869, %v5868
        %v5883 = vpack.c.b16 %v5871, %v5870
        %v5884 = vpack.c.b16 %v5873, %v5872
        %v5885 = vpack.c.b16 %v5875, %v5874
        %v5886 = vpack.c.b16 %v5877, %v5876
        %v5887 = vpack.c.b16 %v5879, %v5878
        %v5896 = vmul.bf16 %v5632, %v5880
        %v5897 = vmul.bf16 %v5633, %v5881
        %v5898 = vmul.bf16 %v5634, %v5882
        %v5899 = vmul.bf16 %v5635, %v5883
        %v5900 = vmul.bf16 %v5636, %v5884
        %v5901 = vmul.bf16 %v5637, %v5885
        %v5902 = vmul.bf16 %v5638, %v5886
        %v5903 = vmul.bf16 %v5639, %v5887
        %5912 = vrot.lane.b32.xlu0 %v4144, 32
        %v5913 = vpop.permute.xlu0 %5912
        %5914 = vrot.lane.b32.xlu0 %v4145, 32
        %v5915 = vpop.permute.xlu0 %5914
        %5916 = vrot.lane.b32.xlu0 %v4146, 32
        %v5917 = vpop.permute.xlu0 %5916
        %5918 = vrot.lane.b32.xlu0 %v4147, 32
        %v5919 = vpop.permute.xlu0 %5918
        %5920 = vrot.lane.b32.xlu0 %v4148, 32
        %v5921 = vpop.permute.xlu0 %5920
        %5922 = vrot.lane.b32.xlu0 %v4149, 32
        %v5923 = vpop.permute.xlu0 %5922
        %5924 = vrot.lane.b32.xlu0 %v4150, 32
        %v5925 = vpop.permute.xlu0 %5924
        %5926 = vrot.lane.b32.xlu0 %v4151, 32
        %v5927 = vpop.permute.xlu0 %5926
        %5936 = vrot.lane.b32.xlu0 %v4432, 64
        %v5937 = vpop.permute.xlu0 %5936
        %5938 = vrot.lane.b32.xlu0 %v4433, 64
        %v5939 = vpop.permute.xlu0 %5938
        %5940 = vrot.lane.b32.xlu0 %v4434, 64
        %v5941 = vpop.permute.xlu0 %5940
        %5942 = vrot.lane.b32.xlu0 %v4435, 64
        %v5943 = vpop.permute.xlu0 %5942
        %5944 = vrot.lane.b32.xlu0 %v4436, 64
        %v5945 = vpop.permute.xlu0 %5944
        %5946 = vrot.lane.b32.xlu0 %v4437, 64
        %v5947 = vpop.permute.xlu0 %5946
        %5948 = vrot.lane.b32.xlu0 %v4438, 64
        %v5949 = vpop.permute.xlu0 %5948
        %5950 = vrot.lane.b32.xlu0 %v4439, 64
        %v5951 = vpop.permute.xlu0 %5950
        %5960 = vrot.lane.b32.xlu0 %v4720, 96
        %v5961 = vpop.permute.xlu0 %5960
        %5962 = vrot.lane.b32.xlu0 %v4721, 96
        %v5963 = vpop.permute.xlu0 %5962
        %5964 = vrot.lane.b32.xlu0 %v4722, 96
        %v5965 = vpop.permute.xlu0 %5964
        %5966 = vrot.lane.b32.xlu0 %v4723, 96
        %v5967 = vpop.permute.xlu0 %5966
        %5968 = vrot.lane.b32.xlu0 %v4724, 96
        %v5969 = vpop.permute.xlu0 %5968
        %5970 = vrot.lane.b32.xlu0 %v4725, 96
        %v5971 = vpop.permute.xlu0 %5970
        %5972 = vrot.lane.b32.xlu0 %v4726, 96
        %v5973 = vpop.permute.xlu0 %5972
        %5974 = vrot.lane.b32.xlu0 %v4727, 96
        %v5975 = vpop.permute.xlu0 %5974
        %5984 = vrot.lane.b32.xlu0 %v5032, 32
        %v5985 = vpop.permute.xlu0 %5984
        %5986 = vrot.lane.b32.xlu0 %v5033, 32
        %v5987 = vpop.permute.xlu0 %5986
        %5988 = vrot.lane.b32.xlu0 %v5034, 32
        %v5989 = vpop.permute.xlu0 %5988
        %5990 = vrot.lane.b32.xlu0 %v5035, 32
        %v5991 = vpop.permute.xlu0 %5990
        %5992 = vrot.lane.b32.xlu0 %v5036, 32
        %v5993 = vpop.permute.xlu0 %5992
        %5994 = vrot.lane.b32.xlu0 %v5037, 32
        %v5995 = vpop.permute.xlu0 %5994
        %5996 = vrot.lane.b32.xlu0 %v5038, 32
        %v5997 = vpop.permute.xlu0 %5996
        %5998 = vrot.lane.b32.xlu0 %v5039, 32
        %v5999 = vpop.permute.xlu0 %5998
        %6008 = vrot.lane.b32.xlu0 %v5320, 64
        %v6009 = vpop.permute.xlu0 %6008
        %6010 = vrot.lane.b32.xlu0 %v5321, 64
        %v6011 = vpop.permute.xlu0 %6010
        %6012 = vrot.lane.b32.xlu0 %v5322, 64
        %v6013 = vpop.permute.xlu0 %6012
        %6014 = vrot.lane.b32.xlu0 %v5323, 64
        %v6015 = vpop.permute.xlu0 %6014
        %6016 = vrot.lane.b32.xlu0 %v5324, 64
        %v6017 = vpop.permute.xlu0 %6016
        %6018 = vrot.lane.b32.xlu0 %v5325, 64
        %v6019 = vpop.permute.xlu0 %6018
        %6020 = vrot.lane.b32.xlu0 %v5326, 64
        %v6021 = vpop.permute.xlu0 %6020
        %6022 = vrot.lane.b32.xlu0 %v5327, 64
        %v6023 = vpop.permute.xlu0 %6022
        %6032 = vrot.lane.b32.xlu0 %v5608, 96
        %v6033 = vpop.permute.xlu0 %6032
        %6034 = vrot.lane.b32.xlu0 %v5609, 96
        %v6035 = vpop.permute.xlu0 %6034
        %6036 = vrot.lane.b32.xlu0 %v5610, 96
        %v6037 = vpop.permute.xlu0 %6036
        %6038 = vrot.lane.b32.xlu0 %v5611, 96
        %v6039 = vpop.permute.xlu0 %6038
        %6040 = vrot.lane.b32.xlu0 %v5612, 96
        %v6041 = vpop.permute.xlu0 %6040
        %6042 = vrot.lane.b32.xlu0 %v5613, 96
        %v6043 = vpop.permute.xlu0 %6042
        %6044 = vrot.lane.b32.xlu0 %v5614, 96
        %v6045 = vpop.permute.xlu0 %6044
        %6046 = vrot.lane.b32.xlu0 %v5615, 96
        %v6047 = vpop.permute.xlu0 %6046
        %v6050 = vsel %vm470, %v3856, %v5913
        %v6053 = vsel %vm470, %v3857, %v5915
        %v6056 = vsel %vm470, %v3858, %v5917
        %v6059 = vsel %vm470, %v3859, %v5919
        %v6062 = vsel %vm470, %v3860, %v5921
        %v6065 = vsel %vm470, %v3861, %v5923
        %v6068 = vsel %vm470, %v3862, %v5925
        %v6071 = vsel %vm470, %v3863, %v5927
        %v6073 = vsel %vm3026, %v6050, %v5937
        %v6075 = vsel %vm3026, %v6053, %v5939
        %v6077 = vsel %vm3026, %v6056, %v5941
        %v6079 = vsel %vm3026, %v6059, %v5943
        %v6081 = vsel %vm3026, %v6062, %v5945
        %v6083 = vsel %vm3026, %v6065, %v5947
        %v6085 = vsel %vm3026, %v6068, %v5949
        %v6087 = vsel %vm3026, %v6071, %v5951
        %v6089 = vsel %vm3043, %v6073, %v5961
        %v6092 = vsel %vm3043, %v6075, %v5963
        %v6095 = vsel %vm3043, %v6077, %v5965
        %v6098 = vsel %vm3043, %v6079, %v5967
        %v6101 = vsel %vm3043, %v6081, %v5969
        %v6104 = vsel %vm3043, %v6083, %v5971
        %v6107 = vsel %vm3043, %v6085, %v5973
        %v6110 = vsel %vm3043, %v6087, %v5975
        %v6114 = vsel %vm470, %v4744, %v5985
        %v6117 = vsel %vm470, %v4745, %v5987
        %v6120 = vsel %vm470, %v4746, %v5989
        %v6123 = vsel %vm470, %v4747, %v5991
        %v6126 = vsel %vm470, %v4748, %v5993
        %v6129 = vsel %vm470, %v4749, %v5995
        %v6132 = vsel %vm470, %v4750, %v5997
        %v6135 = vsel %vm470, %v4751, %v5999
        %v6137 = vsel %vm3026, %v6114, %v6009
        %v6139 = vsel %vm3026, %v6117, %v6011
        %v6141 = vsel %vm3026, %v6120, %v6013
        %v6143 = vsel %vm3026, %v6123, %v6015
        %v6145 = vsel %vm3026, %v6126, %v6017
        %v6147 = vsel %vm3026, %v6129, %v6019
        %v6149 = vsel %vm3026, %v6132, %v6021
        %v6151 = vsel %vm3026, %v6135, %v6023
        %v6153 = vsel %vm3043, %v6137, %v6033
        %v6156 = vsel %vm3043, %v6139, %v6035
        %v6159 = vsel %vm3043, %v6141, %v6037
        %v6162 = vsel %vm3043, %v6143, %v6039
        %v6165 = vsel %vm3043, %v6145, %v6041
        %v6168 = vsel %vm3043, %v6147, %v6043
        %v6171 = vsel %vm3043, %v6149, %v6045
        %v6174 = vsel %vm3043, %v6151, %v6047
        %v6176 = vld [vmem:[%s7] sm:$0xf]
        %v6177 = vld [vmem:[%s7 + $0x4] sm:$0xf]
        %v6178 = vld [vmem:[%s7 + $0x8] sm:$0xf]
        %v6179 = vld [vmem:[%s7 + $0xc] sm:$0xf]
        %v6180 = vld [vmem:[%s7 + $0x10] sm:$0xf]
        %v6181 = vld [vmem:[%s7 + $0x14] sm:$0xf]
        %v6182 = vld [vmem:[%s7 + $0x18] sm:$0xf]
        %v6183 = vld [vmem:[%s7 + $0x1c] sm:$0xf]
        %v6184 = vld [vmem:[%s7 + $0x20] sm:$0xf]
        %v6185 = vld [vmem:[%s7 + $0x24] sm:$0xf]
        %v6186 = vld [vmem:[%s7 + $0x28] sm:$0xf]
        %v6187 = vld [vmem:[%s7 + $0x2c] sm:$0xf]
        %v6188 = vld [vmem:[%s7 + $0x30] sm:$0xf]
        %v6189 = vld [vmem:[%s7 + $0x34] sm:$0xf]
        %v6190 = vld [vmem:[%s7 + $0x38] sm:$0xf]
        %v6191 = vld [vmem:[%s7 + $0x3c] sm:$0xf]
        %v6192 = vld [vmem:[%s7 + $0x40] sm:$0xf]
        %v6193 = vld [vmem:[%s7 + $0x44] sm:$0xf]
        %v6194 = vld [vmem:[%s7 + $0x48] sm:$0xf]
        %v6195 = vld [vmem:[%s7 + $0x4c] sm:$0xf]
        %v6196 = vld [vmem:[%s7 + $0x50] sm:$0xf]
        %v6197 = vld [vmem:[%s7 + $0x54] sm:$0xf]
        %v6198 = vld [vmem:[%s7 + $0x58] sm:$0xf]
        %v6199 = vld [vmem:[%s7 + $0x5c] sm:$0xf]
        %v6200 = vld [vmem:[%s7 + $0x60] sm:$0xf]
        %v6201 = vld [vmem:[%s7 + $0x64] sm:$0xf]
        %v6202 = vld [vmem:[%s7 + $0x68] sm:$0xf]
        %v6203 = vld [vmem:[%s7 + $0x6c] sm:$0xf]
        %v6204 = vld [vmem:[%s7 + $0x70] sm:$0xf]
        %v6205 = vld [vmem:[%s7 + $0x74] sm:$0xf]
        %v6206 = vld [vmem:[%s7 + $0x78] sm:$0xf]
        %v6207 = vld [vmem:[%s7 + $0x7c] sm:$0xf]
        %v6208 = vld [vmem:[%s7 + $0x80] sm:$0xf]
        %v6209 = vld [vmem:[%s7 + $0x84] sm:$0xf]
        %v6210 = vld [vmem:[%s7 + $0x88] sm:$0xf]
        %v6211 = vld [vmem:[%s7 + $0x8c] sm:$0xf]
        %v6248 = vunpack.c.l.b16 %v6176
        %v6249 = vunpack.c.l.b16 %v6177
        %v6250 = vunpack.c.l.b16 %v6178
        %v6251 = vunpack.c.l.b16 %v6179
        %v6252 = vunpack.c.l.b16 %v6180
        %v6253 = vunpack.c.l.b16 %v6181
        %v6254 = vunpack.c.l.b16 %v6182
        %v6255 = vunpack.c.l.b16 %v6183
        %v6256 = vunpack.c.l.b16 %v6184
        %v6257 = vunpack.c.l.b16 %v6185
        %v6258 = vunpack.c.l.b16 %v6186
        %v6259 = vunpack.c.l.b16 %v6187
        %v6260 = vunpack.c.l.b16 %v6188
        %v6261 = vunpack.c.l.b16 %v6189
        %v6262 = vunpack.c.l.b16 %v6190
        %v6263 = vunpack.c.l.b16 %v6191
        %v6264 = vunpack.c.l.b16 %v6192
        %v6265 = vunpack.c.l.b16 %v6193
        %v6266 = vunpack.c.l.b16 %v6194
        %v6267 = vunpack.c.l.b16 %v6195
        %v6268 = vunpack.c.l.b16 %v6196
        %v6269 = vunpack.c.l.b16 %v6197
        %v6270 = vunpack.c.l.b16 %v6198
        %v6271 = vunpack.c.l.b16 %v6199
        %v6272 = vunpack.c.l.b16 %v6200
        %v6273 = vunpack.c.l.b16 %v6201
        %v6274 = vunpack.c.l.b16 %v6202
        %v6275 = vunpack.c.l.b16 %v6203
        %v6276 = vunpack.c.l.b16 %v6204
        %v6277 = vunpack.c.l.b16 %v6205
        %v6278 = vunpack.c.l.b16 %v6206
        %v6279 = vunpack.c.l.b16 %v6207
        %v6280 = vunpack.c.l.b16 %v6208
        %v6281 = vunpack.c.l.b16 %v6209
        %v6282 = vunpack.c.l.b16 %v6210
        %v6283 = vunpack.c.l.b16 %v6211
        %v6284 = vpack.c.b16 %v6249, %v6248
        %v6285 = vpack.c.b16 %v6251, %v6250
        %v6286 = vpack.c.b16 %v6253, %v6252
        %v6287 = vpack.c.b16 %v6255, %v6254
        %v6288 = vpack.c.b16 %v6257, %v6256
        %v6289 = vpack.c.b16 %v6259, %v6258
        %v6290 = vpack.c.b16 %v6261, %v6260
        %v6291 = vpack.c.b16 %v6263, %v6262
        %v6292 = vpack.c.b16 %v6265, %v6264
        %v6293 = vpack.c.b16 %v6267, %v6266
        %v6294 = vpack.c.b16 %v6269, %v6268
        %v6295 = vpack.c.b16 %v6271, %v6270
        %v6296 = vpack.c.b16 %v6273, %v6272
        %v6297 = vpack.c.b16 %v6275, %v6274
        %v6298 = vpack.c.b16 %v6277, %v6276
        %v6299 = vpack.c.b16 %v6279, %v6278
        %v6300 = vpack.c.b16 %v6281, %v6280
        %v6301 = vpack.c.b16 %v6283, %v6282
        %v6321 = vsel %vm470, %v5896, 0
        %v6324 = vsel %vm470, %v5897, 0
        %v6327 = vsel %vm470, %v5898, 0
        %v6330 = vsel %vm470, %v5899, 0
        %v6333 = vsel %vm470, %v5900, 0
        %v6336 = vsel %vm470, %v5901, 0
        %v6339 = vsel %vm470, %v5902, 0
        %v6342 = vsel %vm470, %v5903, 0
        %6344 = vmatprep.subr.bf16.mxu0 0
        %6345 = vmatpush1.bf16.msra.mxu0 %v6284
        %6346 = vmatprep.subr.bf16.mxu0 0
        %6347 = vmatpush1.bf16.msra.mxu0 %v6285
        %6348 = vmatprep.subr.bf16.mxu0 0
        %6349 = vmatpush1.bf16.msra.mxu0 %v6286
        %6350 = vmatprep.subr.bf16.mxu0 0
        %6351 = vmatpush1.bf16.msra.mxu0 %v6287
        %6352 = vmatprep.subr.bf16.mxu0 0
        %6353 = vmatpush1.bf16.msra.mxu0 %v6288
        %6354 = vmatprep.subr.bf16.mxu0 0
        %6355 = vmatpush1.bf16.msra.mxu0 %v6289
        %6356 = vmatprep.subr.bf16.mxu0 0
        %6357 = vmatpush1.bf16.msra.mxu0 %v6290
        %6358 = vmatprep.subr.bf16.mxu0 0
        %6359 = vmatpush1.bf16.msra.mxu0 %v6291
        %6360 = vmatprep.subr.bf16.mxu0 0
        %6361 = vmatpush1.bf16.msra.mxu0 %v6292
        %6362 = vmatprep.subr.bf16.mxu0 0
        %6363 = vmatpush1.bf16.msra.mxu0 %v6293
        %6364 = vmatprep.subr.bf16.mxu0 0
        %6365 = vmatpush1.bf16.msra.mxu0 %v6294
        %6366 = vmatprep.subr.bf16.mxu0 0
        %6367 = vmatpush1.bf16.msra.mxu0 %v6295
        %6368 = vmatprep.subr.bf16.mxu0 0
        %6369 = vmatpush1.bf16.msra.mxu0 %v6296
        %6370 = vmatprep.subr.bf16.mxu0 0
        %6371 = vmatpush1.bf16.msra.mxu0 %v6297
        %6372 = vmatprep.subr.bf16.mxu0 0
        %6373 = vmatpush1.bf16.msra.mxu0 %v6298
        %6374 = vmatprep.subr.bf16.mxu0 0
        %6375 = vmatpush1.bf16.msra.mxu0 %v6299
        %6376 = vmatprep.mubr.bf16.mxu0 %v6153
        %6377 = vmatmul.mubr.bf16.gmra.mrb[0].mxu0 %v6089
        %v6378 = vpop.f32.mrb[0].mxu0
        %v6379 = vadd.f32 0.0, %v6378
        %v6380 = vpop.f32.mrb[0].mxu0
        %v6381 = vpop.f32.mrb[0].mxu0
        %v6382 = vadd.f32 0.0, %v6381
        %v6383 = vpop.f32.mrb[0].mxu0
        %6384 = vmatprep.mubr.bf16.mxu0 %v6156
        %6385 = vmatmul.mubr.bf16.gmra.mrb[0].mxu0 %v6092
        %v6386 = vpop.f32.mrb[0].mxu0
        %v6387 = vadd.f32 0.0, %v6386
        %v6388 = vpop.f32.mrb[0].mxu0
        %v6389 = vpop.f32.mrb[0].mxu0
        %v6390 = vadd.f32 0.0, %v6389
        %v6391 = vpop.f32.mrb[0].mxu0
        %6392 = vmatprep.mubr.bf16.mxu0 %v6159
        %6393 = vmatmul.mubr.bf16.gmra.mrb[0].mxu0 %v6095
        %v6394 = vpop.f32.mrb[0].mxu0
        %v6395 = vadd.f32 0.0, %v6394
        %v6396 = vpop.f32.mrb[0].mxu0
        %v6397 = vpop.f32.mrb[0].mxu0
        %v6398 = vadd.f32 0.0, %v6397
        %v6399 = vpop.f32.mrb[0].mxu0
        %6400 = vmatprep.mubr.bf16.mxu0 %v6162
        %6401 = vmatmul.mubr.bf16.gmra.mrb[0].mxu0 %v6098
        %v6402 = vpop.f32.mrb[0].mxu0
        %v6403 = vadd.f32 0.0, %v6402
        %v6404 = vpop.f32.mrb[0].mxu0
        %v6405 = vpop.f32.mrb[0].mxu0
        %v6406 = vadd.f32 0.0, %v6405
        %v6407 = vpop.f32.mrb[0].mxu0
        %6408 = vmatprep.mubr.bf16.mxu0 %v6165
        %6409 = vmatmul.mubr.bf16.gmra.mrb[0].mxu0 %v6101
        %v6410 = vpop.f32.mrb[0].mxu0
        %v6411 = vadd.f32 0.0, %v6410
        %v6412 = vpop.f32.mrb[0].mxu0
        %v6413 = vpop.f32.mrb[0].mxu0
        %v6414 = vadd.f32 0.0, %v6413
        %v6415 = vpop.f32.mrb[0].mxu0
        %6416 = vmatprep.mubr.bf16.mxu0 %v6168
        %6417 = vmatmul.mubr.bf16.gmra.mrb[0].mxu0 %v6104
        %v6418 = vpop.f32.mrb[0].mxu0
        %v6419 = vadd.f32 0.0, %v6418
        %v6420 = vpop.f32.mrb[0].mxu0
        %v6421 = vpop.f32.mrb[0].mxu0
        %v6422 = vadd.f32 0.0, %v6421
        %v6423 = vpop.f32.mrb[0].mxu0
        %6424 = vmatprep.mubr.bf16.mxu0 %v6171
        %6425 = vmatmul.mubr.bf16.gmra.mrb[0].mxu0 %v6107
        %v6426 = vpop.f32.mrb[0].mxu0
        %v6427 = vadd.f32 0.0, %v6426
        %v6428 = vpop.f32.mrb[0].mxu0
        %v6429 = vpop.f32.mrb[0].mxu0
        %v6430 = vadd.f32 0.0, %v6429
        %v6431 = vpop.f32.mrb[0].mxu0
        %6432 = vmatprep.mubr.bf16.mxu0 %v6174
        %6433 = vmatmul.mubr.bf16.gmra.mrb[0].mxu0 %v6110
        %v6434 = vpop.f32.mrb[0].mxu0
        %v6435 = vadd.f32 0.0, %v6434
        %v6436 = vpop.f32.mrb[0].mxu0
        %v6437 = vpop.f32.mrb[0].mxu0
        %v6438 = vadd.f32 0.0, %v6437
        %v6439 = vpop.f32.mrb[0].mxu0
        %6440 = vdwg.mxu0
        %6441 = vmatprep.subr.bf16.mxu0 0
        %6442 = vmatpush1.bf16.msra.mxu0 %v6300
        %6443 = vmatprep.subr.bf16.mxu0 0
        %6444 = vmatpush1.bf16.msra.mxu0 %v6301
        %6445 = vmatprep.subr.bf16.mxu0 0
        %6446 = vmatpush1.bf16.msra.mxu0 0
        %6447 = vmatprep.subr.bf16.mxu0 0
        %6448 = vmatpush1.bf16.msra.mxu0 0
        %6449 = vmatprep.subr.bf16.mxu0 0
        %6450 = vmatpush1.bf16.msra.mxu0 0
        %6451 = vmatprep.subr.bf16.mxu0 0
        %6452 = vmatpush1.bf16.msra.mxu0 0
        %6453 = vmatprep.subr.bf16.mxu0 0
        %6454 = vmatpush1.bf16.msra.mxu0 0
        %6455 = vmatprep.subr.bf16.mxu0 0
        %6456 = vmatpush1.bf16.msra.mxu0 0
        %6457 = vmatprep.subr.bf16.mxu0 0
        %6458 = vmatpush1.bf16.msra.mxu0 0
        %6459 = vmatprep.subr.bf16.mxu0 0
        %6460 = vmatpush1.bf16.msra.mxu0 0
        %6461 = vmatprep.subr.bf16.mxu0 0
        %6462 = vmatpush1.bf16.msra.mxu0 0
        %6463 = vmatprep.subr.bf16.mxu0 0
        %6464 = vmatpush1.bf16.msra.mxu0 0
        %6465 = vmatprep.subr.bf16.mxu0 0
        %6466 = vmatpush1.bf16.msra.mxu0 0
        %6467 = vmatprep.subr.bf16.mxu0 0
        %6468 = vmatpush1.bf16.msra.mxu0 0
        %6469 = vmatprep.subr.bf16.mxu0 0
        %6470 = vmatpush1.bf16.msra.mxu0 0
        %6471 = vmatprep.subr.bf16.mxu0 0
        %6472 = vmatpush1.bf16.msra.mxu0 0
        %6473 = vmatprep.mubr.bf16.mxu0 0
        %6474 = vmatmul.mubr.bf16.gmra.mrb[0].mxu0 %v6321
        %v6475 = vpop.f32.mrb[0].mxu0
        %v6476 = vadd.f32 %v6379, %v6475
        %v6477 = vpop.f32.mrb[0].mxu0
        %v6478 = vpop.f32.mrb[0].mxu0
        %v6479 = vadd.f32 %v6382, %v6478
        %v6480 = vpop.f32.mrb[0].mxu0
        %6481 = vmatprep.mubr.bf16.mxu0 0
        %6482 = vmatmul.mubr.bf16.gmra.mrb[0].mxu0 %v6324
        %v6483 = vpop.f32.mrb[0].mxu0
        %v6484 = vadd.f32 %v6387, %v6483
        %v6485 = vpop.f32.mrb[0].mxu0
        %v6486 = vpop.f32.mrb[0].mxu0
        %v6487 = vadd.f32 %v6390, %v6486
        %v6488 = vpop.f32.mrb[0].mxu0
        %6489 = vmatprep.mubr.bf16.mxu0 0
        %6490 = vmatmul.mubr.bf16.gmra.mrb[0].mxu0 %v6327
        %v6491 = vpop.f32.mrb[0].mxu0
        %v6492 = vadd.f32 %v6395, %v6491
        %v6493 = vpop.f32.mrb[0].mxu0
        %v6494 = vpop.f32.mrb[0].mxu0
        %v6495 = vadd.f32 %v6398, %v6494
        %v6496 = vpop.f32.mrb[0].mxu0
        %6497 = vmatprep.mubr.bf16.mxu0 0
        %6498 = vmatmul.mubr.bf16.gmra.mrb[0].mxu0 %v6330
        %v6499 = vpop.f32.mrb[0].mxu0
        %v6500 = vadd.f32 %v6403, %v6499
        %v6501 = vpop.f32.mrb[0].mxu0
        %v6502 = vpop.f32.mrb[0].mxu0
        %v6503 = vadd.f32 %v6406, %v6502
        %v6504 = vpop.f32.mrb[0].mxu0
        %6505 = vmatprep.mubr.bf16.mxu0 0
        %6506 = vmatmul.mubr.bf16.gmra.mrb[0].mxu0 %v6333
        %v6507 = vpop.f32.mrb[0].mxu0
        %v6508 = vadd.f32 %v6411, %v6507
        %v6509 = vpop.f32.mrb[0].mxu0
        %v6510 = vpop.f32.mrb[0].mxu0
        %v6511 = vadd.f32 %v6414, %v6510
        %v6512 = vpop.f32.mrb[0].mxu0
        %6513 = vmatprep.mubr.bf16.mxu0 0
        %6514 = vmatmul.mubr.bf16.gmra.mrb[0].mxu0 %v6336
        %v6515 = vpop.f32.mrb[0].mxu0
        %v6516 = vadd.f32 %v6419, %v6515
        %v6517 = vpop.f32.mrb[0].mxu0
        %v6518 = vpop.f32.mrb[0].mxu0
        %v6519 = vadd.f32 %v6422, %v6518
        %v6520 = vpop.f32.mrb[0].mxu0
        %6521 = vmatprep.mubr.bf16.mxu0 0
        %6522 = vmatmul.mubr.bf16.gmra.mrb[0].mxu0 %v6339
        %v6523 = vpop.f32.mrb[0].mxu0
        %v6524 = vadd.f32 %v6427, %v6523
        %v6525 = vpop.f32.mrb[0].mxu0
        %v6526 = vpop.f32.mrb[0].mxu0
        %v6527 = vadd.f32 %v6430, %v6526
        %v6528 = vpop.f32.mrb[0].mxu0
        %6529 = vmatprep.mubr.bf16.mxu0 0
        %6530 = vmatmul.mubr.bf16.gmra.mrb[0].mxu0 %v6342
        %v6531 = vpop.f32.mrb[0].mxu0
        %v6532 = vadd.f32 %v6435, %v6531
        %v6533 = vpop.f32.mrb[0].mxu0
        %v6534 = vpop.f32.mrb[0].mxu0
        %v6535 = vadd.f32 %v6438, %v6534
        %v6536 = vpop.f32.mrb[0].mxu0
        %6537 = vdwg.mxu0
        %v6538 = vld [vmem:[%s8] sm:$0x1]
        %v6540 = vlaneseq
        %v6541 = vshrl.u32 %v6540, 7
        %v6542 = vsub.s32 0, %v6541
        %v6543 = vrot.slane %v6538, %v6542
        %v6545 = vmul.f32 %v6476, %v6543
        %v6546 = vmul.f32 %v6479, %v6543
        %v6547 = vmul.f32 %v6484, %v6543
        %v6548 = vmul.f32 %v6487, %v6543
        %v6549 = vmul.f32 %v6492, %v6543
        %v6550 = vmul.f32 %v6495, %v6543
        %v6551 = vmul.f32 %v6500, %v6543
        %v6552 = vmul.f32 %v6503, %v6543
        %v6553 = vmul.f32 %v6508, %v6543
        %v6554 = vmul.f32 %v6511, %v6543
        %v6555 = vmul.f32 %v6516, %v6543
        %v6556 = vmul.f32 %v6519, %v6543
        %v6557 = vmul.f32 %v6524, %v6543
        %v6558 = vmul.f32 %v6527, %v6543
        %v6559 = vmul.f32 %v6532, %v6543
        %v6560 = vmul.f32 %v6535, %v6543
        %v6561 = vld [vmem:[%s9] sm:$0x1]
        %v6563 = vlaneseq
        %v6564 = vshrl.u32 %v6563, 7
        %v6565 = vsub.s32 0, %v6564
        %v6566 = vrot.slane %v6561, %v6565
        %v6568 = vadd.f32 %v6545, %v6566
        %v6569 = vadd.f32 %v6546, %v6566
        %v6570 = vadd.f32 %v6547, %v6566
        %v6571 = vadd.f32 %v6548, %v6566
        %v6572 = vadd.f32 %v6549, %v6566
        %v6573 = vadd.f32 %v6550, %v6566
        %v6574 = vadd.f32 %v6551, %v6566
        %v6575 = vadd.f32 %v6552, %v6566
        %v6576 = vadd.f32 %v6553, %v6566
        %v6577 = vadd.f32 %v6554, %v6566
        %v6578 = vadd.f32 %v6555, %v6566
        %v6579 = vadd.f32 %v6556, %v6566
        %v6580 = vadd.f32 %v6557, %v6566
        %v6581 = vadd.f32 %v6558, %v6566
        %v6582 = vadd.f32 %v6559, %v6566
        %v6583 = vadd.f32 %v6560, %v6566
        %v6584 = vld [vmem:[%s2] sm:$0x3]
        %6585 = vmatprep.subr.mxu0 0.0
        %6586 = vmatpush1.msra.mxu0 %v6568
        %6587 = vmatprep.subr.mxu0 0.0
        %6588 = vmatpush1.msra.mxu0 %v6569
        %6589 = vmatprep.subr.mxu0 0.0
        %6590 = vmatpush1.msra.mxu0 %v6570
        %6591 = vmatprep.subr.mxu0 0.0
        %6592 = vmatpush1.msra.mxu0 %v6571
        %6593 = vmatprep.subr.mxu0 0.0
        %6594 = vmatpush1.msra.mxu0 %v6572
        %6595 = vmatprep.subr.mxu0 0.0
        %6596 = vmatpush1.msra.mxu0 %v6573
        %6597 = vmatprep.subr.mxu0 0.0
        %6598 = vmatpush1.msra.mxu0 %v6574
        %6599 = vmatprep.subr.mxu0 0.0
        %6600 = vmatpush1.msra.mxu0 %v6575
        %6601 = vmatprep.subr.mxu0 0.0
        %6602 = vmatpush1.msra.mxu0 %v6576
        %6603 = vmatprep.subr.mxu0 0.0
        %6604 = vmatpush1.msra.mxu0 %v6577
        %6605 = vmatprep.subr.mxu0 0.0
        %6606 = vmatpush1.msra.mxu0 %v6578
        %6607 = vmatprep.subr.mxu0 0.0
        %6608 = vmatpush1.msra.mxu0 %v6579
        %6609 = vmatprep.subr.mxu0 0.0
        %6610 = vmatpush1.msra.mxu0 %v6580
        %6611 = vmatprep.subr.mxu0 0.0
        %6612 = vmatpush1.msra.mxu0 %v6581
        %6613 = vmatprep.subr.mxu0 0.0
        %6614 = vmatpush1.msra.mxu0 %v6582
        %6615 = vmatprep.subr.mxu0 0.0
        %6616 = vmatpush1.msra.mxu0 %v6583
        %6617 = vmatprep.subr.mxu0 0.0
        %6618 = vmatpush1.msra.mxu0 0.0
        %6619 = vmatprep.subr.mxu0 0.0
        %6620 = vmatpush1.msra.mxu0 0.0
        %6621 = vmatprep.subr.mxu0 0.0
        %6622 = vmatpush1.msra.mxu0 0.0
        %6623 = vmatprep.subr.mxu0 0.0
        %6624 = vmatpush1.msra.mxu0 0.0
        %6625 = vmatprep.subr.mxu0 0.0
        %6626 = vmatpush1.msra.mxu0 0.0
        %6627 = vmatprep.subr.mxu0 0.0
        %6628 = vmatpush1.msra.mxu0 0.0
        %6629 = vmatprep.subr.mxu0 0.0
        %6630 = vmatpush1.msra.mxu0 0.0
        %6631 = vmatprep.subr.mxu0 0.0
        %6632 = vmatpush1.msra.mxu0 0.0
        %6633 = vmatprep.subr.mxu0 0.0
        %6634 = vmatpush1.msra.mxu0 0.0
        %6635 = vmatprep.subr.mxu0 0.0
        %6636 = vmatpush1.msra.mxu0 0.0
        %6637 = vmatprep.subr.mxu0 0.0
        %6638 = vmatpush1.msra.mxu0 0.0
        %6639 = vmatprep.subr.mxu0 0.0
        %6640 = vmatpush1.msra.mxu0 0.0
        %6641 = vmatprep.subr.mxu0 0.0
        %6642 = vmatpush1.msra.mxu0 0.0
        %6643 = vmatprep.subr.mxu0 0.0
        %6644 = vmatpush1.msra.mxu0 0.0
        %6645 = vmatprep.subr.mxu0 0.0
        %6646 = vmatpush1.msra.mxu0 0.0
        %6647 = vmatprep.subr.mxu0 0.0
        %6648 = vmatpush1.msra.mxu0 0.0
        %6649 = vmatprep.mubr.f32.mxu0 0.0
        %6650 = vmatmul.mubr.f32.gmra.mrb[0].mxu0 %v6584
        %v6651 = vpop.f32.mrb[0].mxu0
        %v6652 = vadd.f32 0.0, %v6651
        %v6653 = vpop.f32.mrb[0].mxu0
        %6654 = vdwg.mxu0
        %v6655 = vld [vmem:[%s10] sm:$0xff]
        %v6656 = vld [vmem:[%s10 + $0x8] sm:$0xff]
        %v6657 = vld [vmem:[%s10 + $0x10] sm:$0xff]
        %v6658 = vld [vmem:[%s10 + $0x18] sm:$0xff]
        %v6659 = vld [vmem:[%s11] sm:$0x1]
        %v6661 = vlaneseq
        %v6662 = vshrl.u32 %v6661, 7
        %v6663 = vsub.s32 0, %v6662
        %v6664 = vrot.slane %v6659, %v6663
        %v6667 = vsel %vm470, %v6652, 0
        %6669 = vmatprep.subr.mxu0 0.0
        %6670 = vmatpush1.msra.mxu0 %v6655
        %6671 = vmatprep.subr.mxu0 0.0
        %6672 = vmatpush1.msra.mxu0 %v6656
        %6673 = vmatprep.subr.mxu0 0.0
        %6674 = vmatpush1.msra.mxu0 %v6657
        %6675 = vmatprep.subr.mxu0 0.0
        %6676 = vmatpush1.msra.mxu0 %v6658
        %6677 = vmatprep.subr.mxu0 0.0
        %6678 = vmatpush1.msra.mxu0 0.0
        %6679 = vmatprep.subr.mxu0 0.0
        %6680 = vmatpush1.msra.mxu0 0.0
        %6681 = vmatprep.subr.mxu0 0.0
        %6682 = vmatpush1.msra.mxu0 0.0
        %6683 = vmatprep.subr.mxu0 0.0
        %6684 = vmatpush1.msra.mxu0 0.0
        %6685 = vmatprep.subr.mxu0 0.0
        %6686 = vmatpush1.msra.mxu0 0.0
        %6687 = vmatprep.subr.mxu0 0.0
        %6688 = vmatpush1.msra.mxu0 0.0
        %6689 = vmatprep.subr.mxu0 0.0
        %6690 = vmatpush1.msra.mxu0 0.0
        %6691 = vmatprep.subr.mxu0 0.0
        %6692 = vmatpush1.msra.mxu0 0.0
        %6693 = vmatprep.subr.mxu0 0.0
        %6694 = vmatpush1.msra.mxu0 0.0
        %6695 = vmatprep.subr.mxu0 0.0
        %6696 = vmatpush1.msra.mxu0 0.0
        %6697 = vmatprep.subr.mxu0 0.0
        %6698 = vmatpush1.msra.mxu0 0.0
        %6699 = vmatprep.subr.mxu0 0.0
        %6700 = vmatpush1.msra.mxu0 0.0
        %6701 = vmatprep.subr.mxu0 0.0
        %6702 = vmatpush1.msra.mxu0 0.0
        %6703 = vmatprep.subr.mxu0 0.0
        %6704 = vmatpush1.msra.mxu0 0.0
        %6705 = vmatprep.subr.mxu0 0.0
        %6706 = vmatpush1.msra.mxu0 0.0
        %6707 = vmatprep.subr.mxu0 0.0
        %6708 = vmatpush1.msra.mxu0 0.0
        %6709 = vmatprep.subr.mxu0 0.0
        %6710 = vmatpush1.msra.mxu0 0.0
        %6711 = vmatprep.subr.mxu0 0.0
        %6712 = vmatpush1.msra.mxu0 0.0
        %6713 = vmatprep.subr.mxu0 0.0
        %6714 = vmatpush1.msra.mxu0 0.0
        %6715 = vmatprep.subr.mxu0 0.0
        %6716 = vmatpush1.msra.mxu0 0.0
        %6717 = vmatprep.subr.mxu0 0.0
        %6718 = vmatpush1.msra.mxu0 0.0
        %6719 = vmatprep.subr.mxu0 0.0
        %6720 = vmatpush1.msra.mxu0 0.0
        %6721 = vmatprep.subr.mxu0 0.0
        %6722 = vmatpush1.msra.mxu0 0.0
        %6723 = vmatprep.subr.mxu0 0.0
        %6724 = vmatpush1.msra.mxu0 0.0
        %6725 = vmatprep.subr.mxu0 0.0
        %6726 = vmatpush1.msra.mxu0 0.0
        %6727 = vmatprep.subr.mxu0 0.0
        %6728 = vmatpush1.msra.mxu0 0.0
        %6729 = vmatprep.subr.mxu0 0.0
        %6730 = vmatpush1.msra.mxu0 0.0
        %6731 = vmatprep.subr.mxu0 0.0
        %6732 = vmatpush1.msra.mxu0 0.0
        %6733 = vmatprep.mubr.f32.mxu0 0.0
        %6734 = vmatmul.mubr.f32.gmra.mrb[0].mxu0 %v6667
        %v6735 = vpop.f32.mrb[0].mxu0
        %v6736 = vadd.f32 %v6664, %v6735
        %v6737 = vpop.f32.mrb[0].mxu0
        %6738 = vdwg.mxu0
        %v6739 = vmax.f32 %v6736, 0.0
        %v6740 = vld [vmem:[%s12] sm:$0x3]
        %v6741 = vld [vmem:[%s13] sm:$0x1]
        %v6743 = vlaneseq
        %v6744 = vshrl.u32 %v6743, 7
        %v6745 = vsub.s32 0, %v6744
        %v6746 = vrot.slane %v6741, %v6745
        %vm6748 = vcmask 15360
        %v6750 = vsel %vm6748, %v6739, 0
        %vm6752 = vcmask 1041408
        %v6754 = vsel %vm6752, %v6740, 0
        %6756 = vmatprep.subr.mxu0 0.0
        %6757 = vmatpush1.msra.mxu0 %v6754
        %6758 = vmatprep.subr.mxu0 0.0
        %6759 = vmatpush1.msra.mxu0 0.0
        %6760 = vmatprep.subr.mxu0 0.0
        %6761 = vmatpush1.msra.mxu0 0.0
        %6762 = vmatprep.subr.mxu0 0.0
        %6763 = vmatpush1.msra.mxu0 0.0
        %6764 = vmatprep.subr.mxu0 0.0
        %6765 = vmatpush1.msra.mxu0 0.0
        %6766 = vmatprep.subr.mxu0 0.0
        %6767 = vmatpush1.msra.mxu0 0.0
        %6768 = vmatprep.subr.mxu0 0.0
        %6769 = vmatpush1.msra.mxu0 0.0
        %6770 = vmatprep.subr.mxu0 0.0
        %6771 = vmatpush1.msra.mxu0 0.0
        %6772 = vmatprep.subr.mxu0 0.0
        %6773 = vmatpush1.msra.mxu0 0.0
        %6774 = vmatprep.subr.mxu0 0.0
        %6775 = vmatpush1.msra.mxu0 0.0
        %6776 = vmatprep.subr.mxu0 0.0
        %6777 = vmatpush1.msra.mxu0 0.0
        %6778 = vmatprep.subr.mxu0 0.0
        %6779 = vmatpush1.msra.mxu0 0.0
        %6780 = vmatprep.subr.mxu0 0.0
        %6781 = vmatpush1.msra.mxu0 0.0
        %6782 = vmatprep.subr.mxu0 0.0
        %6783 = vmatpush1.msra.mxu0 0.0
        %6784 = vmatprep.subr.mxu0 0.0
        %6785 = vmatpush1.msra.mxu0 0.0
        %6786 = vmatprep.subr.mxu0 0.0
        %6787 = vmatpush1.msra.mxu0 0.0
        %6788 = vmatprep.subr.mxu0 0.0
        %6789 = vmatpush1.msra.mxu0 0.0
        %6790 = vmatprep.subr.mxu0 0.0
        %6791 = vmatpush1.msra.mxu0 0.0
        %6792 = vmatprep.subr.mxu0 0.0
        %6793 = vmatpush1.msra.mxu0 0.0
        %6794 = vmatprep.subr.mxu0 0.0
        %6795 = vmatpush1.msra.mxu0 0.0
        %6796 = vmatprep.subr.mxu0 0.0
        %6797 = vmatpush1.msra.mxu0 0.0
        %6798 = vmatprep.subr.mxu0 0.0
        %6799 = vmatpush1.msra.mxu0 0.0
        %6800 = vmatprep.subr.mxu0 0.0
        %6801 = vmatpush1.msra.mxu0 0.0
        %6802 = vmatprep.subr.mxu0 0.0
        %6803 = vmatpush1.msra.mxu0 0.0
        %6804 = vmatprep.subr.mxu0 0.0
        %6805 = vmatpush1.msra.mxu0 0.0
        %6806 = vmatprep.subr.mxu0 0.0
        %6807 = vmatpush1.msra.mxu0 0.0
        %6808 = vmatprep.subr.mxu0 0.0
        %6809 = vmatpush1.msra.mxu0 0.0
        %6810 = vmatprep.subr.mxu0 0.0
        %6811 = vmatpush1.msra.mxu0 0.0
        %6812 = vmatprep.subr.mxu0 0.0
        %6813 = vmatpush1.msra.mxu0 0.0
        %6814 = vmatprep.subr.mxu0 0.0
        %6815 = vmatpush1.msra.mxu0 0.0
        %6816 = vmatprep.subr.mxu0 0.0
        %6817 = vmatpush1.msra.mxu0 0.0
        %6818 = vmatprep.subr.mxu0 0.0
        %6819 = vmatpush1.msra.mxu0 0.0
        %6820 = vmatprep.mubr.f32.mxu0 0.0
        %6821 = vmatmul.mubr.f32.gmra.mrb[0].mxu0 %v6750
        %v6822 = vpop.f32.mrb[0].mxu0
        %v6823 = vadd.f32 %v6746, %v6822
        %v6824 = vpop.f32.mrb[0].mxu0
        %6825 = vdwg.mxu0
        %v6826 = vsub.f32 0.0, %v6823
        %v6827 = vmul.f32 %v6826, 1.442695
        %v6828 = vpow.pop %v6827
        %v6829 = vadd.f32 %v6828, 1.0
        %v6830 = vrcp.pop %v6829
        %v6831 = vld [vmem:[%s3] sm:$0xff]
        %v6832 = vld [vmem:[%s3 + $0x8] sm:$0xff]
        %v6833 = vld [vmem:[%s3 + $0x10] sm:$0xff]
        %v6834 = vld [vmem:[%s3 + $0x18] sm:$0xff]
        %v6835 = vld [vmem:[%s3 + $0x20] sm:$0xff]
        %v6836 = vld [vmem:[%s3 + $0x28] sm:$0xff]
        %v6837 = vld [vmem:[%s3 + $0x30] sm:$0xff]
        %v6838 = vld [vmem:[%s3 + $0x38] sm:$0xff]
        %v6839 = vld [vmem:[%s3 + $0x40] sm:$0xff]
        %v6840 = vld [vmem:[%s3 + $0x48] sm:$0xff]
        %v6841 = vld [vmem:[%s3 + $0x50] sm:$0xff]
        %v6842 = vld [vmem:[%s3 + $0x58] sm:$0xff]
        %v6843 = vld [vmem:[%s3 + $0x60] sm:$0xff]
        %v6844 = vld [vmem:[%s3 + $0x68] sm:$0xff]
        %v6845 = vld [vmem:[%s3 + $0x70] sm:$0xff]
        %v6846 = vld [vmem:[%s3 + $0x78] sm:$0xff]
        %v6848 = vsel %vm6748, %v6831, 0
        %v6851 = vsel %vm6748, %v6832, 0
        %v6854 = vsel %vm6748, %v6833, 0
        %v6857 = vsel %vm6748, %v6834, 0
        %v6860 = vsel %vm6748, %v6835, 0
        %v6863 = vsel %vm6748, %v6836, 0
        %v6866 = vsel %vm6748, %v6837, 0
        %v6869 = vsel %vm6748, %v6838, 0
        %v6872 = vsel %vm6748, %v6839, 0
        %v6875 = vsel %vm6748, %v6840, 0
        %v6878 = vsel %vm6748, %v6841, 0
        %v6881 = vsel %vm6748, %v6842, 0
        %v6884 = vsel %vm6748, %v6843, 0
        %v6887 = vsel %vm6748, %v6844, 0
        %v6890 = vsel %vm6748, %v6845, 0
        %v6893 = vsel %vm6748, %v6846, 0
        %v6896 = vsel %vm6752, %v6830, 0
        %6898 = vmatprep.subr.mxu0 0.0
        %6899 = vmatpush1.msra.mxu0 %v6896
        %6900 = vmatprep.subr.mxu0 0.0
        %6901 = vmatpush1.msra.mxu0 0.0
        %6902 = vmatprep.subr.mxu0 0.0
        %6903 = vmatpush1.msra.mxu0 0.0
        %6904 = vmatprep.subr.mxu0 0.0
        %6905 = vmatpush1.msra.mxu0 0.0
        %6906 = vmatprep.subr.mxu0 0.0
        %6907 = vmatpush1.msra.mxu0 0.0
        %6908 = vmatprep.subr.mxu0 0.0
        %6909 = vmatpush1.msra.mxu0 0.0
        %6910 = vmatprep.subr.mxu0 0.0
        %6911 = vmatpush1.msra.mxu0 0.0
        %6912 = vmatprep.subr.mxu0 0.0
        %6913 = vmatpush1.msra.mxu0 0.0
        %6914 = vmatprep.subr.mxu0 0.0
        %6915 = vmatpush1.msra.mxu0 0.0
        %6916 = vmatprep.subr.mxu0 0.0
        %6917 = vmatpush1.msra.mxu0 0.0
        %6918 = vmatprep.subr.mxu0 0.0
        %6919 = vmatpush1.msra.mxu0 0.0
        %6920 = vmatprep.subr.mxu0 0.0
        %6921 = vmatpush1.msra.mxu0 0.0
        %6922 = vmatprep.subr.mxu0 0.0
        %6923 = vmatpush1.msra.mxu0 0.0
        %6924 = vmatprep.subr.mxu0 0.0
        %6925 = vmatpush1.msra.mxu0 0.0
        %6926 = vmatprep.subr.mxu0 0.0
        %6927 = vmatpush1.msra.mxu0 0.0
        %6928 = vmatprep.subr.mxu0 0.0
        %6929 = vmatpush1.msra.mxu0 0.0
        %6930 = vmatprep.subr.mxu0 0.0
        %6931 = vmatpush1.msra.mxu0 0.0
        %6932 = vmatprep.subr.mxu0 0.0
        %6933 = vmatpush1.msra.mxu0 0.0
        %6934 = vmatprep.subr.mxu0 0.0
        %6935 = vmatpush1.msra.mxu0 0.0
        %6936 = vmatprep.subr.mxu0 0.0
        %6937 = vmatpush1.msra.mxu0 0.0
        %6938 = vmatprep.subr.mxu0 0.0
        %6939 = vmatpush1.msra.mxu0 0.0
        %6940 = vmatprep.subr.mxu0 0.0
        %6941 = vmatpush1.msra.mxu0 0.0
        %6942 = vmatprep.subr.mxu0 0.0
        %6943 = vmatpush1.msra.mxu0 0.0
        %6944 = vmatprep.subr.mxu0 0.0
        %6945 = vmatpush1.msra.mxu0 0.0
        %6946 = vmatprep.subr.mxu0 0.0
        %6947 = vmatpush1.msra.mxu0 0.0
        %6948 = vmatprep.subr.mxu0 0.0
        %6949 = vmatpush1.msra.mxu0 0.0
        %6950 = vmatprep.subr.mxu0 0.0
        %6951 = vmatpush1.msra.mxu0 0.0
        %6952 = vmatprep.subr.mxu0 0.0
        %6953 = vmatpush1.msra.mxu0 0.0
        %6954 = vmatprep.subr.mxu0 0.0
        %6955 = vmatpush1.msra.mxu0 0.0
        %6956 = vmatprep.subr.mxu0 0.0
        %6957 = vmatpush1.msra.mxu0 0.0
        %6958 = vmatprep.subr.mxu0 0.0
        %6959 = vmatpush1.msra.mxu0 0.0
        %6960 = vmatprep.subr.mxu0 0.0
        %6961 = vmatpush1.msra.mxu0 0.0
        %6962 = vmatprep.mubr.f32.mxu0 0.0
        %6963 = vmatmul.mubr.f32.gmra.mrb[0].mxu0 %v6848
        %v6964 = vpop.f32.mrb[0].mxu0
        %v6965 = vadd.f32 0.0, %v6964
        %v6966 = vpop.f32.mrb[0].mxu0
        %6967 = vmatprep.mubr.f32.mxu0 0.0
        %6968 = vmatmul.mubr.f32.gmra.mrb[0].mxu0 %v6851
        %v6969 = vpop.f32.mrb[0].mxu0
        %v6970 = vadd.f32 0.0, %v6969
        %v6971 = vpop.f32.mrb[0].mxu0
        %6972 = vmatprep.mubr.f32.mxu0 0.0
        %6973 = vmatmul.mubr.f32.gmra.mrb[0].mxu0 %v6854
        %v6974 = vpop.f32.mrb[0].mxu0
        %v6975 = vadd.f32 0.0, %v6974
        %v6976 = vpop.f32.mrb[0].mxu0
        %6977 = vmatprep.mubr.f32.mxu0 0.0
        %6978 = vmatmul.mubr.f32.gmra.mrb[0].mxu0 %v6857
        %v6979 = vpop.f32.mrb[0].mxu0
        %v6980 = vadd.f32 0.0, %v6979
        %v6981 = vpop.f32.mrb[0].mxu0
        %6982 = vmatprep.mubr.f32.mxu0 0.0
        %6983 = vmatmul.mubr.f32.gmra.mrb[0].mxu0 %v6860
        %v6984 = vpop.f32.mrb[0].mxu0
        %v6985 = vadd.f32 0.0, %v6984
        %v6986 = vpop.f32.mrb[0].mxu0
        %6987 = vmatprep.mubr.f32.mxu0 0.0
        %6988 = vmatmul.mubr.f32.gmra.mrb[0].mxu0 %v6863
        %v6989 = vpop.f32.mrb[0].mxu0
        %v6990 = vadd.f32 0.0, %v6989
        %v6991 = vpop.f32.mrb[0].mxu0
        %6992 = vmatprep.mubr.f32.mxu0 0.0
        %6993 = vmatmul.mubr.f32.gmra.mrb[0].mxu0 %v6866
        %v6994 = vpop.f32.mrb[0].mxu0
        %v6995 = vadd.f32 0.0, %v6994
        %v6996 = vpop.f32.mrb[0].mxu0
        %6997 = vmatprep.mubr.f32.mxu0 0.0
        %6998 = vmatmul.mubr.f32.gmra.mrb[0].mxu0 %v6869
        %v6999 = vpop.f32.mrb[0].mxu0
        %v7000 = vadd.f32 0.0, %v6999
        %v7001 = vpop.f32.mrb[0].mxu0
        %7002 = vmatprep.mubr.f32.mxu0 0.0
        %7003 = vmatmul.mubr.f32.gmra.mrb[0].mxu0 %v6872
        %v7004 = vpop.f32.mrb[0].mxu0
        %v7005 = vadd.f32 0.0, %v7004
        %v7006 = vpop.f32.mrb[0].mxu0
        %7007 = vmatprep.mubr.f32.mxu0 0.0
        %7008 = vmatmul.mubr.f32.gmra.mrb[0].mxu0 %v6875
        %v7009 = vpop.f32.mrb[0].mxu0
        %v7010 = vadd.f32 0.0, %v7009
        %v7011 = vpop.f32.mrb[0].mxu0
        %7012 = vmatprep.mubr.f32.mxu0 0.0
        %7013 = vmatmul.mubr.f32.gmra.mrb[0].mxu0 %v6878
        %v7014 = vpop.f32.mrb[0].mxu0
        %v7015 = vadd.f32 0.0, %v7014
        %v7016 = vpop.f32.mrb[0].mxu0
        %7017 = vmatprep.mubr.f32.mxu0 0.0
        %7018 = vmatmul.mubr.f32.gmra.mrb[0].mxu0 %v6881
        %v7019 = vpop.f32.mrb[0].mxu0
        %v7020 = vadd.f32 0.0, %v7019
        %v7021 = vpop.f32.mrb[0].mxu0
        %7022 = vmatprep.mubr.f32.mxu0 0.0
        %7023 = vmatmul.mubr.f32.gmra.mrb[0].mxu0 %v6884
        %v7024 = vpop.f32.mrb[0].mxu0
        %v7025 = vadd.f32 0.0, %v7024
        %v7026 = vpop.f32.mrb[0].mxu0
        %7027 = vmatprep.mubr.f32.mxu0 0.0
        %7028 = vmatmul.mubr.f32.gmra.mrb[0].mxu0 %v6887
        %v7029 = vpop.f32.mrb[0].mxu0
        %v7030 = vadd.f32 0.0, %v7029
        %v7031 = vpop.f32.mrb[0].mxu0
        %7032 = vmatprep.mubr.f32.mxu0 0.0
        %7033 = vmatmul.mubr.f32.gmra.mrb[0].mxu0 %v6890
        %v7034 = vpop.f32.mrb[0].mxu0
        %v7035 = vadd.f32 0.0, %v7034
        %v7036 = vpop.f32.mrb[0].mxu0
        %7037 = vmatprep.mubr.f32.mxu0 0.0
        %7038 = vmatmul.mubr.f32.gmra.mrb[0].mxu0 %v6893
        %v7039 = vpop.f32.mrb[0].mxu0
        %v7040 = vadd.f32 0.0, %v7039
        %v7041 = vpop.f32.mrb[0].mxu0
        %7042 = vdwg.mxu0
        %v7043 = vld [vmem:[#allocation2 + $0x10] sm:$0xff]
        %v7044 = vld [vmem:[#allocation2 + $0x18] sm:$0xff]
        %v7045 = vld [vmem:[#allocation2 + $0x20] sm:$0xff]
        %v7046 = vld [vmem:[#allocation2 + $0x28] sm:$0xff]
        %v7047 = vld [vmem:[#allocation2 + $0x30] sm:$0xff]
        %v7048 = vld [vmem:[#allocation2 + $0x38] sm:$0xff]
        %v7049 = vld [vmem:[#allocation2 + $0x40] sm:$0xff]
        %v7050 = vld [vmem:[#allocation2 + $0x48] sm:$0xff]
        %v7051 = vld [vmem:[#allocation2 + $0x50] sm:$0xff]
        %v7052 = vld [vmem:[#allocation2 + $0x58] sm:$0xff]
        %v7053 = vld [vmem:[#allocation2 + $0x60] sm:$0xff]
        %v7054 = vld [vmem:[#allocation2 + $0x68] sm:$0xff]
        %v7055 = vld [vmem:[#allocation2 + $0x70] sm:$0xff]
        %v7056 = vld [vmem:[#allocation2 + $0x78] sm:$0xff]
        %v7057 = vld [vmem:[#allocation2 + $0x80] sm:$0xff]
        %v7058 = vld [vmem:[#allocation2 + $0x88] sm:$0xff]
        %v7059 = vmul.f32 %v6568, %v6965
        %v7060 = vmul.f32 %v6569, %v6970
        %v7061 = vmul.f32 %v6570, %v6975
        %v7062 = vmul.f32 %v6571, %v6980
        %v7063 = vmul.f32 %v6572, %v6985
        %v7064 = vmul.f32 %v6573, %v6990
        %v7065 = vmul.f32 %v6574, %v6995
        %v7066 = vmul.f32 %v6575, %v7000
        %v7067 = vmul.f32 %v6576, %v7005
        %v7068 = vmul.f32 %v6577, %v7010
        %v7069 = vmul.f32 %v6578, %v7015
        %v7070 = vmul.f32 %v6579, %v7020
        %v7071 = vmul.f32 %v6580, %v7025
        %v7072 = vmul.f32 %v6581, %v7030
        %v7073 = vmul.f32 %v6582, %v7035
        %v7074 = vmul.f32 %v6583, %v7040
        %v7075 = vadd.f32 %v7059, %v7043
        %v7076 = vadd.f32 %v7060, %v7044
        %v7077 = vadd.f32 %v7061, %v7045
        %v7078 = vadd.f32 %v7062, %v7046
        %v7079 = vadd.f32 %v7063, %v7047
        %v7080 = vadd.f32 %v7064, %v7048
        %v7081 = vadd.f32 %v7065, %v7049
        %v7082 = vadd.f32 %v7066, %v7050
        %v7083 = vadd.f32 %v7067, %v7051
        %v7084 = vadd.f32 %v7068, %v7052
        %v7085 = vadd.f32 %v7069, %v7053
        %v7086 = vadd.f32 %v7070, %v7054
        %v7087 = vadd.f32 %v7071, %v7055
        %v7088 = vadd.f32 %v7072, %v7056
        %v7089 = vadd.f32 %v7073, %v7057
        %v7090 = vadd.f32 %v7074, %v7058
        %v7091 = vmax.f32 %v7075, 0.0
        %v7092 = vmax.f32 %v7076, 0.0
        %v7093 = vmax.f32 %v7077, 0.0
        %v7094 = vmax.f32 %v7078, 0.0
        %v7095 = vmax.f32 %v7079, 0.0
        %v7096 = vmax.f32 %v7080, 0.0
        %v7097 = vmax.f32 %v7081, 0.0
        %v7098 = vmax.f32 %v7082, 0.0
        %v7099 = vmax.f32 %v7083, 0.0
        %v7100 = vmax.f32 %v7084, 0.0
        %v7101 = vmax.f32 %v7085, 0.0
        %v7102 = vmax.f32 %v7086, 0.0
        %v7103 = vmax.f32 %v7087, 0.0
        %v7104 = vmax.f32 %v7088, 0.0
        %v7105 = vmax.f32 %v7089, 0.0
        %v7106 = vmax.f32 %v7090, 0.0
        %7107 = vst.msk [vmem:[%s461] sm:$0xff] %vm470, %v7091
        %7108 = vst.msk [vmem:[%s461 + $0x8] sm:$0xff] %vm470, %v7092
        %7109 = vst.msk [vmem:[%s461 + $0x10] sm:$0xff] %vm470, %v7093
        %7110 = vst.msk [vmem:[%s461 + $0x18] sm:$0xff] %vm470, %v7094
        %7111 = vst.msk [vmem:[%s461 + $0x20] sm:$0xff] %vm470, %v7095
        %7112 = vst.msk [vmem:[%s461 + $0x28] sm:$0xff] %vm470, %v7096
        %7113 = vst.msk [vmem:[%s461 + $0x30] sm:$0xff] %vm470, %v7097
        %7114 = vst.msk [vmem:[%s461 + $0x38] sm:$0xff] %vm470, %v7098
        %7115 = vst.msk [vmem:[%s461 + $0x40] sm:$0xff] %vm470, %v7099
        %7116 = vst.msk [vmem:[%s461 + $0x48] sm:$0xff] %vm470, %v7100
        %7117 = vst.msk [vmem:[%s461 + $0x50] sm:$0xff] %vm470, %v7101
        %7118 = vst.msk [vmem:[%s461 + $0x58] sm:$0xff] %vm470, %v7102
        %7119 = vst.msk [vmem:[%s461 + $0x60] sm:$0xff] %vm470, %v7103
        %7120 = vst.msk [vmem:[%s461 + $0x68] sm:$0xff] %vm470, %v7104
        %7121 = vst.msk [vmem:[%s461 + $0x70] sm:$0xff] %vm470, %v7105
        %7122 = vst.msk [vmem:[%s461 + $0x78] sm:$0xff] %vm470, %v7106
        %s7123 = sand.u32 %s335, 1
        %s7124 = scalar_lea.sflag [#allocation5], %s7123
        %s7125 = sand.u32 %s335, 1
        %s7126 = smul.addr %s7125, 128
        %s7127 = scalar_lea.vmem [#allocation4], %s7126
        // Predicated region
        $region77: #{basic_block_forward.1} parent=75 // pred_check
          %p7128 = pneg %p345
        $region78: #{basic_block_forward.1} parent=75 // pred_check_branch
          %7130 = sbr.rel (%p7128) target = $region80
        $region79: #{basic_block_forward.1} parent=75 // pred_region
          %s7131 = smul.u32 16, %s28
          %s7133 = ssub.s32 2048, 2048
          %7134 = vsyncadd %s7124, %s7133
          %s7135 = smul.addr %s7131, 128
          %s7136 = scalar_lea.hbm %s14, %s7135
          %s7137 = sshll.u32 %s7127, 4
          %s7138 = int_to_ptr.vmem [resolvable:$true] %s7137
          %7143 = dma.vmem_to_hbm [thread:$0]  %s7138, 2048, %s7136, %s7124, 128, 128, 8
        $region80: #{basic_block_forward.1} parent=75 // pred_fallthru
          _
      $region76: #{basic_block_forward.1} parent=5 // pred_fallthru
        _
      %p7144 = scmp.le.s32.totalorder 2, %s23
      // Predicated region
      $region81: #{basic_block_forward.1} parent=5 // pred_check
        %p7145 = pneg %p7144
      $region82: #{basic_block_forward.1} parent=5 // pred_check_branch
        %7147 = sbr.rel (%p7145) target = $region84
      $region83: #{basic_block_forward.1} parent=5 // pred_region
        %s7148 = ssub.s32 %s23, 2
        // Predicated region
        $region85: #{basic_block_forward.1} parent=83 // pred_check
          %p7149 = pneg %p351
        $region86: #{basic_block_forward.1} parent=83 // pred_check_branch
          %7151 = sbr.rel (%p7149) target = $region88
        $region87: #{basic_block_forward.1} parent=83 // pred_region
          %s7152 = sand.u32 %s336, 1
          %s7153 = scalar_lea.sflag [#allocation5], %s7152
          %s7154 = sand.u32 %s336, 1
          %s7155 = smul.addr %s7154, 128
          %s7156 = scalar_lea.vmem [#allocation4], %s7155
          %7157 = dma.done %s7153, 2048
        $region88: #{basic_block_forward.1} parent=83 // pred_fallthru
          _
      $region84: #{basic_block_forward.1} parent=5 // pred_fallthru
        _
    $region6: #{basic_block_forward.1} parent=1 // loop_footer
      %s27 = sadd.s32 1, %s23
    $region7: #{basic_block_forward.1} parent=1 // loop_footer_branch
      %22 = sbr.rel target = $region3
    $region8: #{basic_block_forward.1} parent=1 // loop_exit
      _
    %7158 = vsyncpa [#allocation5], 1
    %s7159 = scalar_lea.sflag [#allocation5], 1
    %7160 = vsyncpa %s7159, 1

</llo_original>
